<compile_context>
chip_gen: v6e
topology: v6e:2x2x1
jax: 0.10.0
libtpu: 0.0.40
codegen_flags: <defaults>
</compile_context>

<pallas_src>
import jax
import jax.numpy as jnp
from jax.experimental import pallas as pl
from jax.experimental.pallas import tpu as pltpu

# ----------------------------- configuration -----------------------------
B, N, F, T = 2, 16, 4, 8          # batch, nodes, input features, time steps
K = 3                             # Chebyshev order per graph
G = 16                            # gcn_filter
TF = 16                           # time_filter
NG = 3                            # number of graphs in MultiGraphConv
LN_EPS = 1e-5


# ----------------------------- fused kernel -------------------------------
def fused_kernel(x_ref, xc_ref, u1_ref, u2t_ref, u3_ref, be_ref, ve_ref,
                 a_ref, mw_ref, bgt_ref, wb_ref, btr_ref, wrb_ref, brr_ref,
                 mmean_ref, gam_ref, bet_ref, o_ref,
                 attk_ref, axcat_ref, pad_ref):
    f32 = jnp.float32
    xb = x_ref[0]                                        # (N, F, T)  original x
    xc = xc_ref[0]                                       # (N, F*T)   same data, 2-D view

    # ---- temporal attention: att (T, T), softmax over torch dim=1 (axis 0 here) ----
    u1 = u1_ref[...]                                     # (N, 1)
    lhs1 = jnp.sum(xb * u1[:, :, None], axis=0)          # (F, T)
    lhsT = jnp.dot(u2t_ref[...], lhs1,
                   preferred_element_type=f32)           # (N, T)
    u3 = u3_ref[...]                                     # (1, F)
    rhs = jnp.sum(xb * u3[:, :, None], axis=1)           # (N, T)
    product = jax.lax.dot_general(lhsT, rhs, (((0,), (0,)), ((), ())),
                                  preferred_element_type=f32)        # (T, T)
    e = jnp.dot(ve_ref[...], jax.nn.sigmoid(product + be_ref[...]),
                preferred_element_type=f32)              # (T, T)
    e = e - jnp.max(e, axis=0, keepdims=True)
    p = jnp.exp(e)
    att = p * pl.reciprocal(jnp.sum(p, axis=0, keepdims=True), approx=True)

    # ---- build kron(I_F, att) in VMEM scratch (applies attention per feature block) ----
    attk_ref[...] = jnp.zeros((F * T, F * T), f32)
    for f in range(F):
        attk_ref[f * T:(f + 1) * T, f * T:(f + 1) * T] = att

    # ---- multi-graph Chebyshev GCN, all T timesteps at once ----
    # ax_raw[(i*K+k)*N + n, f*T + t] = sum_m A[i,k,n,m] * x[m,f,t]
    ax_raw = jnp.dot(a_ref[...], xc, preferred_element_type=f32)          # (NG*K*N, F*T)
    # attention commutes with A (it only mixes the time axis):
    ax_all = jnp.dot(ax_raw, attk_ref[...], preferred_element_type=f32)   # (NG*K*N, F*T)

    spatial = jnp.zeros((N, T * G), f32)                 # cols = (t, g)
    for i in range(NG):
        for k in range(K):
            blk = ax_all[(i * K + k) * N:(i * K + k + 1) * N, :]          # (N, F*T)
            axcat_ref[:, k * F * T:(k + 1) * F * T] = blk
        y = jnp.dot(axcat_ref[...], mw_ref[i],
                    preferred_element_type=f32)          # (N, T*G)
        spatial = spatial + jnp.maximum(y + bgt_ref[i], 0.0)   # ReLU per GCN, 'sum' agg

    # ---- dilated (k=3, d=2, pad=2) gated temporal conv via padded VMEM scratch ----
    pad_ref[:, :2 * G] = jnp.zeros((N, 2 * G), f32)
    pad_ref[:, (T + 2) * G:] = jnp.zeros((N, 2 * G), f32)
    pad_ref[:, 2 * G:(T + 2) * G] = spatial

    tconv = jnp.zeros((N, 2 * TF * T), f32)              # cols = (c, t)
    for j in range(3):                                   # 3 dilated taps (t-2, t, t+2)
        tap = pad_ref[:, 2 * j * G: 2 * j * G + T * G]   # (N, T*G)
        tconv = tconv + jnp.dot(tap, wb_ref[j], preferred_element_type=f32)
    tconv = tconv + btr_ref[...]
    gated = jnp.tanh(tconv[:, :TF * T]) * jax.nn.sigmoid(tconv[:, TF * T:])  # (N, TF*T)

    # ---- 1x1 residual conv on original x, ReLU, LayerNorm over TF ----
    res = jnp.dot(xc, wrb_ref[...], preferred_element_type=f32) + brr_ref[...]  # (N, TF*T)
    h = jnp.maximum(res + gated, 0.0)
    mean = jnp.dot(h, mmean_ref[...], preferred_element_type=f32)    # mean over TF per (n,t)
    c = h - mean
    var = jnp.dot(c * c, mmean_ref[...], preferred_element_type=f32)
    hn = c * jax.lax.rsqrt(var + LN_EPS)
    o_ref[0] = hn * gam_ref[...] + bet_ref[...]          # lane-dense (N, TF*T = 128) store


# ----------------------------- wrapper ------------------------------------
@jax.jit
def sta_mgcn_block_pallas(x, A, params):
    (U1, U2, U3, be, Ve, Wg, bg, Wt, bt, Wr, br, gamma, beta) = params
    f32 = jnp.float32
    eyeT = jnp.eye(T, dtype=f32)

    # contiguous views of the input (free reshapes, no transposes)
    x_c = x.reshape(B, N, F * T)                         # [b, n, f*T + t]
    a_stack = A.reshape(NG * K * N, N)                   # [(i*K+k)*N + n, m]

    # ---- parameter prep: fold structure into lane-dense matrices (host side, tiny) ----
    # Chebyshev weights with per-timestep identity: MW[i][(k*F+f)*T+t, t'*G+g] = Wg[i,k,f,g]*d(t,t')
    mw = jnp.einsum('ikfg,ts->ikftsg', Wg, eyeT).reshape(NG, K * F * T, T * G)
    bg_t = jnp.tile(bg, (1, T)).reshape(NG, 1, T * G)    # [i, 0, t*G+g] = bg[i, g]
    # dilated conv taps: WB[j][t*G+g, c*T+s] = Wt[c,g,0,j] * d(t,s)
    wb = jnp.einsum('cgj,ts->jtgcs', Wt[:, :, 0, :], eyeT).reshape(3, T * G, 2 * TF * T)
    bt_rep = jnp.repeat(bt, T).reshape(1, 2 * TF * T)    # [0, c*T+t] = bt[c]
    # 1x1 residual conv: WRB[f*T+t, c*T+s] = Wr[c,f] * d(t,s)
    wrb = jnp.einsum('cf,ts->ftcs', Wr[:, :, 0, 0], eyeT).reshape(F * T, TF * T)
    br_rep = jnp.repeat(br, T).reshape(1, TF * T)
    # LayerNorm averaging matrix over TF (per time step): (TF*T, TF*T)
    mmean = jnp.kron(jnp.ones((TF, TF), f32) / TF, eyeT)
    gam_rep = jnp.repeat(gamma, T).reshape(1, TF * T)
    bet_rep = jnp.repeat(beta, T).reshape(1, TF * T)

    out = pl.pallas_call(
        fused_kernel,
        out_shape=jax.ShapeDtypeStruct((B, N, TF * T), f32),
        grid_spec=pltpu.PrefetchScalarGridSpec(
            num_scalar_prefetch=0,
            grid=(B,),
            in_specs=[
                pl.BlockSpec((1, N, F, T), lambda b: (b, 0, 0, 0)),       # x (native)
                pl.BlockSpec((1, N, F * T), lambda b: (b, 0, 0)),         # x (2-D view)
                pl.BlockSpec((N, 1), lambda b: (0, 0)),                   # U1
                pl.BlockSpec((N, F), lambda b: (0, 0)),                   # U2^T
                pl.BlockSpec((1, F), lambda b: (0, 0)),                   # U3
                pl.BlockSpec((T, T), lambda b: (0, 0)),                   # be
                pl.BlockSpec((T, T), lambda b: (0, 0)),                   # Ve
                pl.BlockSpec((NG * K * N, N), lambda b: (0, 0)),          # A stacked
                pl.BlockSpec((NG, K * F * T, T * G), lambda b: (0, 0, 0)),  # MW
                pl.BlockSpec((NG, 1, T * G), lambda b: (0, 0, 0)),        # bg tiled
                pl.BlockSpec((3, T * G, 2 * TF * T), lambda b: (0, 0, 0)),  # WB taps
                pl.BlockSpec((1, 2 * TF * T), lambda b: (0, 0)),          # bt rep
                pl.BlockSpec((F * T, TF * T), lambda b: (0, 0)),          # WRB
                pl.BlockSpec((1, TF * T), lambda b: (0, 0)),              # br rep
                pl.BlockSpec((TF * T, TF * T), lambda b: (0, 0)),         # LN mean matrix
                pl.BlockSpec((1, TF * T), lambda b: (0, 0)),              # gamma rep
                pl.BlockSpec((1, TF * T), lambda b: (0, 0)),              # beta rep
            ],
            out_specs=pl.BlockSpec((1, N, TF * T), lambda b: (b, 0, 0)),
            scratch_shapes=[
                pltpu.VMEM((F * T, F * T), f32),          # kron(I_F, att)
                pltpu.VMEM((N, K * F * T), f32),          # concat of K Chebyshev blocks
                pltpu.VMEM((N, (T + 4) * G), f32),        # time-padded GCN output
            ],
        ),
        compiler_params=pltpu.CompilerParams(dimension_semantics=("parallel",)),
    )(x, x_c, U1.reshape(N, 1), U2.T, U3.reshape(1, F), be[0], Ve,
      a_stack, mw, bg_t, wb, bt_rep, wrb, br_rep, mmean, gam_rep, bet_rep)

    # (B, N, TF*T) -> (B, N, TF, T): contiguous reshape, no transpose needed.
    return out.reshape(B, N, TF, T)


# ----------------------------- pure-JAX reference -------------------------
def sta_mgcn_block_ref(x, A, params):
    (U1, U2, U3, be, Ve, Wg, bg, Wt, bt, Wr, br, gamma, beta) = params
    # temporal attention
    lhs1 = jnp.einsum('bnft,n->btf', x, U1)
    lhs = jnp.einsum('btf,fn->btn', lhs1, U2)
    rhs = jnp.einsum('f,bnft->bnt', U3, x)
    product = jnp.einsum('btn,bns->bts', lhs, rhs)
    e = jnp.einsum('tu,bus->bts', Ve, jax.nn.sigmoid(product + be))
    att = jax.nn.softmax(e, axis=1)
    x_att = jnp.einsum('bmt,bts->bms', x.reshape(B, N * F, T), att).reshape(B, N, F, T)
    # multi-graph GCN
    spatial = jnp.zeros((B, N, G, T), jnp.float32)
    for i in range(NG):
        acc = jnp.zeros((B, N, G, T), jnp.float32)
        for k in range(K):
            ax = jnp.einsum('nm,bmft->bnft', A[i, k], x_att)
            acc = acc + jnp.einsum('bnft,fg->bngt', ax, Wg[i, k])
        acc = acc + bg[i][None, None, :, None]
        spatial = spatial + jax.nn.relu(acc)
    # gated dilated time conv (padding=2, dilation=2, kernel 1x3)
    inp = jnp.transpose(spatial, (0, 2, 1, 3))             # (B, G, N, T)
    t_x = jax.lax.conv_general_dilated(
        inp, Wt, window_strides=(1, 1), padding=((0, 0), (2, 2)),
        rhs_dilation=(1, 2), dimension_numbers=('NCHW', 'OIHW', 'NCHW'))
    t_x = t_x + bt[None, :, None, None]
    gated = jnp.tanh(t_x[:, :TF]) * jax.nn.sigmoid(t_x[:, TF:])
    # residual 1x1 conv
    res = jnp.einsum('bnft,cf->bcnt', x, Wr[:, :, 0, 0]) + br[None, :, None, None]
    h = jax.nn.relu(res + gated)                           # (B, TF, N, T)
    h = jnp.transpose(h, (0, 3, 2, 1))                     # (B, T, N, TF)
    mean = jnp.mean(h, axis=-1, keepdims=True)
    var = jnp.mean((h - mean) ** 2, axis=-1, keepdims=True)
    hn = (h - mean) / jnp.sqrt(var + LN_EPS) * gamma + beta
    return jnp.transpose(hn, (0, 2, 3, 1))                 # (B, N, TF, T)


# ----------------------------- main ----------------------------------------
if __name__ == "__main__":
    keys = jax.random.split(jax.random.PRNGKey(0), 16)

    # deterministic parameter init (synthetic, torch-shaped)
    U1 = jax.random.uniform(keys[0], (N,), jnp.float32)
    U2 = jax.random.normal(keys[1], (F, N), jnp.float32) * 0.1
    U3 = jax.random.uniform(keys[2], (F,), jnp.float32)
    be = jax.random.normal(keys[3], (1, T, T), jnp.float32) * 0.1
    Ve = jax.random.normal(keys[4], (T, T), jnp.float32) * 0.1
    Wg = jax.random.normal(keys[5], (NG, K, F, G), jnp.float32) * 0.1
    bg = jax.random.normal(keys[6], (NG, G), jnp.float32) * 0.1
    Wt = jax.random.normal(keys[7], (2 * TF, G, 1, 3), jnp.float32) * 0.1
    bt = jax.random.normal(keys[8], (2 * TF,), jnp.float32) * 0.1
    Wr = jax.random.normal(keys[9], (TF, F, 1, 1), jnp.float32) * 0.1
    br = jax.random.normal(keys[10], (TF,), jnp.float32) * 0.1
    gamma = jnp.ones((TF,), jnp.float32) + 0.1 * jax.random.normal(keys[11], (TF,), jnp.float32)
    beta = 0.1 * jax.random.normal(keys[12], (TF,), jnp.float32)
    params = (U1, U2, U3, be, Ve, Wg, bg, Wt, bt, Wr, br, gamma, beta)

    # inputs
    x = jax.random.normal(keys[13], (B, N, F, T), jnp.float32) * 0.5
    A_raw = jax.random.uniform(keys[14], (NG, K, N, N), jnp.float32)
    A = A_raw / jnp.sum(A_raw, axis=-1, keepdims=True)     # row-normalized supports

    out = jax.block_until_ready(sta_mgcn_block_pallas(x, A, params))
    ref = jax.block_until_ready(sta_mgcn_block_ref(x, A, params))

    assert out.shape == (B, N, TF, T), out.shape
    assert bool(jnp.all(jnp.isfinite(out)))
    max_err = float(jnp.max(jnp.abs(out - ref)))
    assert max_err < 5e-2, f"max abs error vs reference: {max_err}"
    print("KERNEL_OK")
</pallas_src>

<mosaic_0001>
module attributes {stable_mosaic.version = 11 : i64} {
  func.func @fused_kernel(%arg0: i32, %arg1: memref<1x16x4x8xf32, #tpu.memory_space<vmem>>, %arg2: memref<1x16x32xf32, #tpu.memory_space<vmem>>, %arg3: memref<16x1xf32, #tpu.memory_space<vmem>>, %arg4: memref<16x4xf32, #tpu.memory_space<vmem>>, %arg5: memref<1x4xf32, #tpu.memory_space<vmem>>, %arg6: memref<8x8xf32, #tpu.memory_space<vmem>>, %arg7: memref<8x8xf32, #tpu.memory_space<vmem>>, %arg8: memref<144x16xf32, #tpu.memory_space<vmem>>, %arg9: memref<3x96x128xf32, #tpu.memory_space<vmem>>, %arg10: memref<3x1x128xf32, #tpu.memory_space<vmem>>, %arg11: memref<3x128x256xf32, #tpu.memory_space<vmem>>, %arg12: memref<1x256xf32, #tpu.memory_space<vmem>>, %arg13: memref<32x128xf32, #tpu.memory_space<vmem>>, %arg14: memref<1x128xf32, #tpu.memory_space<vmem>>, %arg15: memref<128x128xf32, #tpu.memory_space<vmem>>, %arg16: memref<1x128xf32, #tpu.memory_space<vmem>>, %arg17: memref<1x128xf32, #tpu.memory_space<vmem>>, %arg18: memref<1x16x128xf32, #tpu.memory_space<vmem>>, %arg19: memref<32x32xf32, #tpu.memory_space<vmem>>, %arg20: memref<16x96xf32, #tpu.memory_space<vmem>>, %arg21: memref<16x192xf32, #tpu.memory_space<vmem>>) attributes {dimension_semantics = [#tpu.dimension_semantics<parallel>], iteration_bounds = array<i64: 2>, scalar_prefetch = 0 : i64, scratch_operands = 3 : i64, tpu.core_type = #tpu.core_type<tc>, window_params = [{transform_indices = @transform_0, window_bounds = array<i64: 1, 16, 4, 8>}, {transform_indices = @transform_1, window_bounds = array<i64: 1, 16, 32>}, {pipeline_mode = #tpu.pipeline_mode<synchronous>, transform_indices = @transform_2, window_bounds = array<i64: 16, 1>}, {pipeline_mode = #tpu.pipeline_mode<synchronous>, transform_indices = @transform_3, window_bounds = array<i64: 16, 4>}, {pipeline_mode = #tpu.pipeline_mode<synchronous>, transform_indices = @transform_4, window_bounds = array<i64: 1, 4>}, {pipeline_mode = #tpu.pipeline_mode<synchronous>, transform_indices = @transform_5, window_bounds = array<i64: 8, 8>}, {pipeline_mode = #tpu.pipeline_mode<synchronous>, transform_indices = @transform_6, window_bounds = array<i64: 8, 8>}, {pipeline_mode = #tpu.pipeline_mode<synchronous>, transform_indices = @transform_7, window_bounds = array<i64: 144, 16>}, {pipeline_mode = #tpu.pipeline_mode<synchronous>, transform_indices = @transform_8, window_bounds = array<i64: 3, 96, 128>}, {pipeline_mode = #tpu.pipeline_mode<synchronous>, transform_indices = @transform_9, window_bounds = array<i64: 3, 1, 128>}, {pipeline_mode = #tpu.pipeline_mode<synchronous>, transform_indices = @transform_10, window_bounds = array<i64: 3, 128, 256>}, {pipeline_mode = #tpu.pipeline_mode<synchronous>, transform_indices = @transform_11, window_bounds = array<i64: 1, 256>}, {pipeline_mode = #tpu.pipeline_mode<synchronous>, transform_indices = @transform_12, window_bounds = array<i64: 32, 128>}, {pipeline_mode = #tpu.pipeline_mode<synchronous>, transform_indices = @transform_13, window_bounds = array<i64: 1, 128>}, {pipeline_mode = #tpu.pipeline_mode<synchronous>, transform_indices = @transform_14, window_bounds = array<i64: 128, 128>}, {pipeline_mode = #tpu.pipeline_mode<synchronous>, transform_indices = @transform_15, window_bounds = array<i64: 1, 128>}, {pipeline_mode = #tpu.pipeline_mode<synchronous>, transform_indices = @transform_16, window_bounds = array<i64: 1, 128>}, {transform_indices = @transform_17, window_bounds = array<i64: 1, 16, 128>}]} {
    %c0 = arith.constant 0 : index
    %c0_0 = arith.constant 0 : index
    %c0_1 = arith.constant 0 : index
    %c0_2 = arith.constant 0 : index
    %0 = vector.load %arg1[%c0, %c0_0, %c0_1, %c0_2] : memref<1x16x4x8xf32, #tpu.memory_space<vmem>>, vector<1x16x4x8xf32>
    %1 = vector.shape_cast %0 : vector<1x16x4x8xf32> to vector<16x4x8xf32>
    %c0_3 = arith.constant 0 : index
    %c0_4 = arith.constant 0 : index
    %c0_5 = arith.constant 0 : index
    %2 = vector.load %arg2[%c0_3, %c0_4, %c0_5] : memref<1x16x32xf32, #tpu.memory_space<vmem>>, vector<1x16x32xf32>
    %3 = vector.shape_cast %2 : vector<1x16x32xf32> to vector<16x32xf32>
    %c0_6 = arith.constant 0 : index
    %c0_7 = arith.constant 0 : index
    %4 = vector.load %arg3[%c0_6, %c0_7] : memref<16x1xf32, #tpu.memory_space<vmem>>, vector<16x1xf32>
    %5 = vector.shape_cast %4 : vector<16x1xf32> to vector<16x1x1xf32>
    %6 = vector.broadcast %5 : vector<16x1x1xf32> to vector<16x4x8xf32>
    %7 = arith.mulf %1, %6 : vector<16x4x8xf32>
    %cst = arith.constant dense<0.000000e+00> : vector<4x8xf32>
    %8 = vector.multi_reduction <add>, %7, %cst [0] : vector<16x4x8xf32> to vector<4x8xf32>
    %c0_8 = arith.constant 0 : index
    %c0_9 = arith.constant 0 : index
    %9 = vector.load %arg4[%c0_8, %c0_9] : memref<16x4xf32, #tpu.memory_space<vmem>>, vector<16x4xf32>
    %cst_10 = arith.constant dense<0.000000e+00> : vector<16x8xf32>
    %10 = tpu.matmul %9, %8, %cst_10 {dimension_numbers = #tpu.dot_dimension_numbers<[1], [0], [0], [1], [0, 0, 1, 1], [], []>} : vector<16x4xf32>, vector<4x8xf32>, vector<16x8xf32> -> vector<16x8xf32>
    %c0_11 = arith.constant 0 : index
    %c0_12 = arith.constant 0 : index
    %11 = vector.load %arg5[%c0_11, %c0_12] : memref<1x4xf32, #tpu.memory_space<vmem>>, vector<1x4xf32>
    %12 = vector.shape_cast %11 : vector<1x4xf32> to vector<1x4x1xf32>
    %13 = vector.broadcast %12 : vector<1x4x1xf32> to vector<16x4x8xf32>
    %14 = arith.mulf %1, %13 : vector<16x4x8xf32>
    %cst_13 = arith.constant dense<0.000000e+00> : vector<16x8xf32>
    %15 = vector.multi_reduction <add>, %14, %cst_13 [1] : vector<16x4x8xf32> to vector<16x8xf32>
    %cst_14 = arith.constant dense<0.000000e+00> : vector<8x8xf32>
    %16 = tpu.matmul %10, %15, %cst_14 {dimension_numbers = #tpu.dot_dimension_numbers<[0], [0], [1], [1], [0, 1, 1, 1], [], []>} : vector<16x8xf32>, vector<16x8xf32>, vector<8x8xf32> -> vector<8x8xf32>
    %c0_15 = arith.constant 0 : index
    %c0_16 = arith.constant 0 : index
    %17 = vector.load %arg7[%c0_15, %c0_16] : memref<8x8xf32, #tpu.memory_space<vmem>>, vector<8x8xf32>
    %c0_17 = arith.constant 0 : index
    %c0_18 = arith.constant 0 : index
    %18 = vector.load %arg6[%c0_17, %c0_18] : memref<8x8xf32, #tpu.memory_space<vmem>>, vector<8x8xf32>
    %19 = arith.addf %16, %18 : vector<8x8xf32>
    %20 = arith.negf %19 : vector<8x8xf32>
    %21 = math.exp %20 : vector<8x8xf32>
    %cst_19 = arith.constant 1.000000e+00 : f32
    %22 = vector.broadcast %cst_19 : f32 to vector<8x8xf32>
    %23 = arith.addf %22, %21 : vector<8x8xf32>
    %24 = arith.divf %22, %23 : vector<8x8xf32>
    %cst_20 = arith.constant dense<0.000000e+00> : vector<8x8xf32>
    %25 = tpu.matmul %17, %24, %cst_20 {dimension_numbers = #tpu.dot_dimension_numbers<[1], [0], [0], [1], [0, 0, 1, 1], [], []>} : vector<8x8xf32>, vector<8x8xf32>, vector<8x8xf32> -> vector<8x8xf32>
    %cst_21 = arith.constant dense<0xFF800000> : vector<8xf32>
    %26 = vector.multi_reduction <maximumf>, %25, %cst_21 [0] : vector<8x8xf32> to vector<8xf32>
    %27 = vector.shape_cast %26 : vector<8xf32> to vector<1x8xf32>
    %28 = vector.broadcast %27 : vector<1x8xf32> to vector<8x8xf32>
    %29 = arith.subf %25, %28 : vector<8x8xf32>
    %30 = math.exp %29 : vector<8x8xf32>
    %cst_22 = arith.constant dense<0.000000e+00> : vector<8xf32>
    %31 = vector.multi_reduction <add>, %30, %cst_22 [0] : vector<8x8xf32> to vector<8xf32>
    %32 = vector.shape_cast %31 : vector<8xf32> to vector<1x8xf32>
    %33 = tpu.reciprocal %32 {approx = true} : vector<1x8xf32> -> vector<1x8xf32>
    %34 = vector.broadcast %33 : vector<1x8xf32> to vector<8x8xf32>
    %35 = arith.mulf %30, %34 : vector<8x8xf32>
    %cst_23 = arith.constant 0.000000e+00 : f32
    %36 = vector.broadcast %cst_23 : f32 to vector<32x32xf32>
    %c0_24 = arith.constant 0 : index
    %c0_25 = arith.constant 0 : index
    %37 = vector.load %arg19[%c0_24, %c0_25] : memref<32x32xf32, #tpu.memory_space<vmem>>, vector<32x32xf32>
    tpu.vector_store %arg19[%c0_24, %c0_25], %36 {strides = array<i32>} : memref<32x32xf32, #tpu.memory_space<vmem>>, vector<32x32xf32>,
    %c0_26 = arith.constant 0 : index
    %c0_27 = arith.constant 0 : index
    %38 = vector.load %arg19[%c0_26, %c0_27] : memref<32x32xf32, #tpu.memory_space<vmem>>, vector<8x8xf32>
    tpu.vector_store %arg19[%c0_26, %c0_27], %35 {strides = array<i32>} : memref<32x32xf32, #tpu.memory_space<vmem>>, vector<8x8xf32>,
    %c8 = arith.constant 8 : index
    %c8_28 = arith.constant 8 : index
    %39 = vector.load %arg19[%c8, %c8_28] : memref<32x32xf32, #tpu.memory_space<vmem>>, vector<8x8xf32>
    tpu.vector_store %arg19[%c8, %c8_28], %35 {strides = array<i32>} : memref<32x32xf32, #tpu.memory_space<vmem>>, vector<8x8xf32>,
    %c16 = arith.constant 16 : index
    %c16_29 = arith.constant 16 : index
    %40 = vector.load %arg19[%c16, %c16_29] : memref<32x32xf32, #tpu.memory_space<vmem>>, vector<8x8xf32>
    tpu.vector_store %arg19[%c16, %c16_29], %35 {strides = array<i32>} : memref<32x32xf32, #tpu.memory_space<vmem>>, vector<8x8xf32>,
    %c24 = arith.constant 24 : index
    %c24_30 = arith.constant 24 : index
    %41 = vector.load %arg19[%c24, %c24_30] : memref<32x32xf32, #tpu.memory_space<vmem>>, vector<8x8xf32>
    tpu.vector_store %arg19[%c24, %c24_30], %35 {strides = array<i32>} : memref<32x32xf32, #tpu.memory_space<vmem>>, vector<8x8xf32>,
    %c0_31 = arith.constant 0 : index
    %c0_32 = arith.constant 0 : index
    %42 = vector.load %arg8[%c0_31, %c0_32] : memref<144x16xf32, #tpu.memory_space<vmem>>, vector<144x16xf32>
    %cst_33 = arith.constant dense<0.000000e+00> : vector<144x32xf32>
    %43 = tpu.matmul %42, %3, %cst_33 {dimension_numbers = #tpu.dot_dimension_numbers<[1], [0], [0], [1], [0, 0, 1, 1], [], []>} : vector<144x16xf32>, vector<16x32xf32>, vector<144x32xf32> -> vector<144x32xf32>
    %c0_34 = arith.constant 0 : index
    %c0_35 = arith.constant 0 : index
    %44 = vector.load %arg19[%c0_34, %c0_35] : memref<32x32xf32, #tpu.memory_space<vmem>>, vector<32x32xf32>
    %cst_36 = arith.constant dense<0.000000e+00> : vector<144x32xf32>
    %45 = tpu.matmul %43, %44, %cst_36 {dimension_numbers = #tpu.dot_dimension_numbers<[1], [0], [0], [1], [0, 0, 1, 1], [], []>} : vector<144x32xf32>, vector<32x32xf32>, vector<144x32xf32> -> vector<144x32xf32>
    %cst_37 = arith.constant 0.000000e+00 : f32
    %46 = vector.broadcast %cst_37 : f32 to vector<16x128xf32>
    %47 = vector.extract_strided_slice %45 {offsets = [0, 0], sizes = [16, 32], strides = [1, 1]} : vector<144x32xf32> to vector<16x32xf32>
    %c0_38 = arith.constant 0 : index
    %c0_39 = arith.constant 0 : index
    %48 = vector.load %arg20[%c0_38, %c0_39] : memref<16x96xf32, #tpu.memory_space<vmem>>, vector<16x32xf32>
    tpu.vector_store %arg20[%c0_38, %c0_39], %47 {strides = array<i32>} : memref<16x96xf32, #tpu.memory_space<vmem>>, vector<16x32xf32>,
    %49 = vector.extract_strided_slice %45 {offsets = [16, 0], sizes = [16, 32], strides = [1, 1]} : vector<144x32xf32> to vector<16x32xf32>
    %c0_40 = arith.constant 0 : index
    %c32 = arith.constant 32 : index
    %50 = vector.load %arg20[%c0_40, %c32] : memref<16x96xf32, #tpu.memory_space<vmem>>, vector<16x32xf32>
    tpu.vector_store %arg20[%c0_40, %c32], %49 {strides = array<i32>} : memref<16x96xf32, #tpu.memory_space<vmem>>, vector<16x32xf32>,
    %51 = vector.extract_strided_slice %45 {offsets = [32, 0], sizes = [16, 32], strides = [1, 1]} : vector<144x32xf32> to vector<16x32xf32>
    %c0_41 = arith.constant 0 : index
    %c64 = arith.constant 64 : index
    %52 = vector.load %arg20[%c0_41, %c64] : memref<16x96xf32, #tpu.memory_space<vmem>>, vector<16x32xf32>
    tpu.vector_store %arg20[%c0_41, %c64], %51 {strides = array<i32>} : memref<16x96xf32, #tpu.memory_space<vmem>>, vector<16x32xf32>,
    %c0_42 = arith.constant 0 : index
    %c0_43 = arith.constant 0 : index
    %53 = vector.load %arg20[%c0_42, %c0_43] : memref<16x96xf32, #tpu.memory_space<vmem>>, vector<16x96xf32>
    %c0_44 = arith.constant 0 : index
    %c0_45 = arith.constant 0 : index
    %c0_46 = arith.constant 0 : index
    %54 = vector.load %arg9[%c0_44, %c0_45, %c0_46] : memref<3x96x128xf32, #tpu.memory_space<vmem>>, vector<1x96x128xf32>
    %55 = vector.shape_cast %54 : vector<1x96x128xf32> to vector<96x128xf32>
    %cst_47 = arith.constant dense<0.000000e+00> : vector<16x128xf32>
    %56 = tpu.matmul %53, %55, %cst_47 {dimension_numbers = #tpu.dot_dimension_numbers<[1], [0], [0], [1], [0, 0, 1, 1], [], []>} : vector<16x96xf32>, vector<96x128xf32>, vector<16x128xf32> -> vector<16x128xf32>
    %c0_48 = arith.constant 0 : index
    %c0_49 = arith.constant 0 : index
    %c0_50 = arith.constant 0 : index
    %57 = vector.load %arg10[%c0_48, %c0_49, %c0_50] : memref<3x1x128xf32, #tpu.memory_space<vmem>>, vector<1x1x128xf32>
    %58 = vector.shape_cast %57 : vector<1x1x128xf32> to vector<1x128xf32>
    %59 = vector.broadcast %58 : vector<1x128xf32> to vector<16x128xf32>
    %60 = arith.addf %56, %59 : vector<16x128xf32>
    %cst_51 = arith.constant 0.000000e+00 : f32
    %61 = vector.broadcast %cst_51 : f32 to vector<16x128xf32>
    %62 = arith.maximumf %60, %61 : vector<16x128xf32>
    %63 = arith.addf %46, %62 : vector<16x128xf32>
    %64 = vector.extract_strided_slice %45 {offsets = [48, 0], sizes = [16, 32], strides = [1, 1]} : vector<144x32xf32> to vector<16x32xf32>
    %c0_52 = arith.constant 0 : index
    %c0_53 = arith.constant 0 : index
    %65 = vector.load %arg20[%c0_52, %c0_53] : memref<16x96xf32, #tpu.memory_space<vmem>>, vector<16x32xf32>
    tpu.vector_store %arg20[%c0_52, %c0_53], %64 {strides = array<i32>} : memref<16x96xf32, #tpu.memory_space<vmem>>, vector<16x32xf32>,
    %66 = vector.extract_strided_slice %45 {offsets = [64, 0], sizes = [16, 32], strides = [1, 1]} : vector<144x32xf32> to vector<16x32xf32>
    %c0_54 = arith.constant 0 : index
    %c32_55 = arith.constant 32 : index
    %67 = vector.load %arg20[%c0_54, %c32_55] : memref<16x96xf32, #tpu.memory_space<vmem>>, vector<16x32xf32>
    tpu.vector_store %arg20[%c0_54, %c32_55], %66 {strides = array<i32>} : memref<16x96xf32, #tpu.memory_space<vmem>>, vector<16x32xf32>,
    %68 = vector.extract_strided_slice %45 {offsets = [80, 0], sizes = [16, 32], strides = [1, 1]} : vector<144x32xf32> to vector<16x32xf32>
    %c0_56 = arith.constant 0 : index
    %c64_57 = arith.constant 64 : index
    %69 = vector.load %arg20[%c0_56, %c64_57] : memref<16x96xf32, #tpu.memory_space<vmem>>, vector<16x32xf32>
    tpu.vector_store %arg20[%c0_56, %c64_57], %68 {strides = array<i32>} : memref<16x96xf32, #tpu.memory_space<vmem>>, vector<16x32xf32>,
    %c0_58 = arith.constant 0 : index
    %c0_59 = arith.constant 0 : index
    %70 = vector.load %arg20[%c0_58, %c0_59] : memref<16x96xf32, #tpu.memory_space<vmem>>, vector<16x96xf32>
    %c1 = arith.constant 1 : index
    %c0_60 = arith.constant 0 : index
    %c0_61 = arith.constant 0 : index
    %71 = vector.load %arg9[%c1, %c0_60, %c0_61] : memref<3x96x128xf32, #tpu.memory_space<vmem>>, vector<1x96x128xf32>
    %72 = vector.shape_cast %71 : vector<1x96x128xf32> to vector<96x128xf32>
    %cst_62 = arith.constant dense<0.000000e+00> : vector<16x128xf32>
    %73 = tpu.matmul %70, %72, %cst_62 {dimension_numbers = #tpu.dot_dimension_numbers<[1], [0], [0], [1], [0, 0, 1, 1], [], []>} : vector<16x96xf32>, vector<96x128xf32>, vector<16x128xf32> -> vector<16x128xf32>
    %c1_63 = arith.constant 1 : index
    %c0_64 = arith.constant 0 : index
    %c0_65 = arith.constant 0 : index
    %74 = vector.load %arg10[%c1_63, %c0_64, %c0_65] : memref<3x1x128xf32, #tpu.memory_space<vmem>>, vector<1x1x128xf32>
    %75 = vector.shape_cast %74 : vector<1x1x128xf32> to vector<1x128xf32>
    %76 = vector.broadcast %75 : vector<1x128xf32> to vector<16x128xf32>
    %77 = arith.addf %73, %76 : vector<16x128xf32>
    %cst_66 = arith.constant 0.000000e+00 : f32
    %78 = vector.broadcast %cst_66 : f32 to vector<16x128xf32>
    %79 = arith.maximumf %77, %78 : vector<16x128xf32>
    %80 = arith.addf %63, %79 : vector<16x128xf32>
    %81 = vector.extract_strided_slice %45 {offsets = [96, 0], sizes = [16, 32], strides = [1, 1]} : vector<144x32xf32> to vector<16x32xf32>
    %c0_67 = arith.constant 0 : index
    %c0_68 = arith.constant 0 : index
    %82 = vector.load %arg20[%c0_67, %c0_68] : memref<16x96xf32, #tpu.memory_space<vmem>>, vector<16x32xf32>
    tpu.vector_store %arg20[%c0_67, %c0_68], %81 {strides = array<i32>} : memref<16x96xf32, #tpu.memory_space<vmem>>, vector<16x32xf32>,
    %83 = vector.extract_strided_slice %45 {offsets = [112, 0], sizes = [16, 32], strides = [1, 1]} : vector<144x32xf32> to vector<16x32xf32>
    %c0_69 = arith.constant 0 : index
    %c32_70 = arith.constant 32 : index
    %84 = vector.load %arg20[%c0_69, %c32_70] : memref<16x96xf32, #tpu.memory_space<vmem>>, vector<16x32xf32>
    tpu.vector_store %arg20[%c0_69, %c32_70], %83 {strides = array<i32>} : memref<16x96xf32, #tpu.memory_space<vmem>>, vector<16x32xf32>,
    %85 = vector.extract_strided_slice %45 {offsets = [128, 0], sizes = [16, 32], strides = [1, 1]} : vector<144x32xf32> to vector<16x32xf32>
    %c0_71 = arith.constant 0 : index
    %c64_72 = arith.constant 64 : index
    %86 = vector.load %arg20[%c0_71, %c64_72] : memref<16x96xf32, #tpu.memory_space<vmem>>, vector<16x32xf32>
    tpu.vector_store %arg20[%c0_71, %c64_72], %85 {strides = array<i32>} : memref<16x96xf32, #tpu.memory_space<vmem>>, vector<16x32xf32>,
    %c0_73 = arith.constant 0 : index
    %c0_74 = arith.constant 0 : index
    %87 = vector.load %arg20[%c0_73, %c0_74] : memref<16x96xf32, #tpu.memory_space<vmem>>, vector<16x96xf32>
    %c2 = arith.constant 2 : index
    %c0_75 = arith.constant 0 : index
    %c0_76 = arith.constant 0 : index
    %88 = vector.load %arg9[%c2, %c0_75, %c0_76] : memref<3x96x128xf32, #tpu.memory_space<vmem>>, vector<1x96x128xf32>
    %89 = vector.shape_cast %88 : vector<1x96x128xf32> to vector<96x128xf32>
    %cst_77 = arith.constant dense<0.000000e+00> : vector<16x128xf32>
    %90 = tpu.matmul %87, %89, %cst_77 {dimension_numbers = #tpu.dot_dimension_numbers<[1], [0], [0], [1], [0, 0, 1, 1], [], []>} : vector<16x96xf32>, vector<96x128xf32>, vector<16x128xf32> -> vector<16x128xf32>
    %c2_78 = arith.constant 2 : index
    %c0_79 = arith.constant 0 : index
    %c0_80 = arith.constant 0 : index
    %91 = vector.load %arg10[%c2_78, %c0_79, %c0_80] : memref<3x1x128xf32, #tpu.memory_space<vmem>>, vector<1x1x128xf32>
    %92 = vector.shape_cast %91 : vector<1x1x128xf32> to vector<1x128xf32>
    %93 = vector.broadcast %92 : vector<1x128xf32> to vector<16x128xf32>
    %94 = arith.addf %90, %93 : vector<16x128xf32>
    %cst_81 = arith.constant 0.000000e+00 : f32
    %95 = vector.broadcast %cst_81 : f32 to vector<16x128xf32>
    %96 = arith.maximumf %94, %95 : vector<16x128xf32>
    %97 = arith.addf %80, %96 : vector<16x128xf32>
    %cst_82 = arith.constant 0.000000e+00 : f32
    %98 = vector.broadcast %cst_82 : f32 to vector<16x32xf32>
    %c0_83 = arith.constant 0 : index
    %c0_84 = arith.constant 0 : index
    %99 = vector.load %arg21[%c0_83, %c0_84] : memref<16x192xf32, #tpu.memory_space<vmem>>, vector<16x32xf32>
    tpu.vector_store %arg21[%c0_83, %c0_84], %98 {strides = array<i32>} : memref<16x192xf32, #tpu.memory_space<vmem>>, vector<16x32xf32>,
    %cst_85 = arith.constant 0.000000e+00 : f32
    %100 = vector.broadcast %cst_85 : f32 to vector<16x32xf32>
    %c0_86 = arith.constant 0 : index
    %c160 = arith.constant 160 : index
    %101 = vector.load %arg21[%c0_86, %c160] : memref<16x192xf32, #tpu.memory_space<vmem>>, vector<16x32xf32>
    tpu.vector_store %arg21[%c0_86, %c160], %100 {strides = array<i32>} : memref<16x192xf32, #tpu.memory_space<vmem>>, vector<16x32xf32>,
    %c0_87 = arith.constant 0 : index
    %c32_88 = arith.constant 32 : index
    %102 = vector.load %arg21[%c0_87, %c32_88] : memref<16x192xf32, #tpu.memory_space<vmem>>, vector<16x128xf32>
    tpu.vector_store %arg21[%c0_87, %c32_88], %97 {strides = array<i32>} : memref<16x192xf32, #tpu.memory_space<vmem>>, vector<16x128xf32>,
    %cst_89 = arith.constant 0.000000e+00 : f32
    %103 = vector.broadcast %cst_89 : f32 to vector<16x256xf32>
    %c0_90 = arith.constant 0 : index
    %c0_91 = arith.constant 0 : index
    %104 = vector.load %arg21[%c0_90, %c0_91] : memref<16x192xf32, #tpu.memory_space<vmem>>, vector<16x128xf32>
    %c0_92 = arith.constant 0 : index
    %c0_93 = arith.constant 0 : index
    %c0_94 = arith.constant 0 : index
    %105 = vector.load %arg11[%c0_92, %c0_93, %c0_94] : memref<3x128x256xf32, #tpu.memory_space<vmem>>, vector<1x128x256xf32>
    %106 = vector.shape_cast %105 : vector<1x128x256xf32> to vector<128x256xf32>
    %cst_95 = arith.constant dense<0.000000e+00> : vector<16x256xf32>
    %107 = tpu.matmul %104, %106, %cst_95 {dimension_numbers = #tpu.dot_dimension_numbers<[1], [0], [0], [1], [0, 0, 1, 1], [], []>} : vector<16x128xf32>, vector<128x256xf32>, vector<16x256xf32> -> vector<16x256xf32>
    %108 = arith.addf %103, %107 : vector<16x256xf32>
    %c0_96 = arith.constant 0 : index
    %c32_97 = arith.constant 32 : index
    %109 = vector.load %arg21[%c0_96, %c32_97] : memref<16x192xf32, #tpu.memory_space<vmem>>, vector<16x128xf32>
    %c1_98 = arith.constant 1 : index
    %c0_99 = arith.constant 0 : index
    %c0_100 = arith.constant 0 : index
    %110 = vector.load %arg11[%c1_98, %c0_99, %c0_100] : memref<3x128x256xf32, #tpu.memory_space<vmem>>, vector<1x128x256xf32>
    %111 = vector.shape_cast %110 : vector<1x128x256xf32> to vector<128x256xf32>
    %cst_101 = arith.constant dense<0.000000e+00> : vector<16x256xf32>
    %112 = tpu.matmul %109, %111, %cst_101 {dimension_numbers = #tpu.dot_dimension_numbers<[1], [0], [0], [1], [0, 0, 1, 1], [], []>} : vector<16x128xf32>, vector<128x256xf32>, vector<16x256xf32> -> vector<16x256xf32>
    %113 = arith.addf %108, %112 : vector<16x256xf32>
    %c0_102 = arith.constant 0 : index
    %c64_103 = arith.constant 64 : index
    %114 = vector.load %arg21[%c0_102, %c64_103] : memref<16x192xf32, #tpu.memory_space<vmem>>, vector<16x128xf32>
    %c2_104 = arith.constant 2 : index
    %c0_105 = arith.constant 0 : index
    %c0_106 = arith.constant 0 : index
    %115 = vector.load %arg11[%c2_104, %c0_105, %c0_106] : memref<3x128x256xf32, #tpu.memory_space<vmem>>, vector<1x128x256xf32>
    %116 = vector.shape_cast %115 : vector<1x128x256xf32> to vector<128x256xf32>
    %cst_107 = arith.constant dense<0.000000e+00> : vector<16x256xf32>
    %117 = tpu.matmul %114, %116, %cst_107 {dimension_numbers = #tpu.dot_dimension_numbers<[1], [0], [0], [1], [0, 0, 1, 1], [], []>} : vector<16x128xf32>, vector<128x256xf32>, vector<16x256xf32> -> vector<16x256xf32>
    %118 = arith.addf %113, %117 : vector<16x256xf32>
    %c0_108 = arith.constant 0 : index
    %c0_109 = arith.constant 0 : index
    %119 = vector.load %arg12[%c0_108, %c0_109] : memref<1x256xf32, #tpu.memory_space<vmem>>, vector<1x256xf32>
    %120 = vector.broadcast %119 : vector<1x256xf32> to vector<16x256xf32>
    %121 = arith.addf %118, %120 : vector<16x256xf32>
    %122 = vector.extract_strided_slice %121 {offsets = [0, 0], sizes = [16, 128], strides = [1, 1]} : vector<16x256xf32> to vector<16x128xf32>
    %123 = math.tanh %122 : vector<16x128xf32>
    %124 = vector.extract_strided_slice %121 {offsets = [0, 128], sizes = [16, 128], strides = [1, 1]} : vector<16x256xf32> to vector<16x128xf32>
    %125 = arith.negf %124 : vector<16x128xf32>
    %126 = math.exp %125 : vector<16x128xf32>
    %cst_110 = arith.constant 1.000000e+00 : f32
    %127 = vector.broadcast %cst_110 : f32 to vector<16x128xf32>
    %128 = arith.addf %127, %126 : vector<16x128xf32>
    %129 = arith.divf %127, %128 : vector<16x128xf32>
    %130 = arith.mulf %123, %129 : vector<16x128xf32>
    %c0_111 = arith.constant 0 : index
    %c0_112 = arith.constant 0 : index
    %131 = vector.load %arg13[%c0_111, %c0_112] : memref<32x128xf32, #tpu.memory_space<vmem>>, vector<32x128xf32>
    %cst_113 = arith.constant dense<0.000000e+00> : vector<16x128xf32>
    %132 = tpu.matmul %3, %131, %cst_113 {dimension_numbers = #tpu.dot_dimension_numbers<[1], [0], [0], [1], [0, 0, 1, 1], [], []>} : vector<16x32xf32>, vector<32x128xf32>, vector<16x128xf32> -> vector<16x128xf32>
    %c0_114 = arith.constant 0 : index
    %c0_115 = arith.constant 0 : index
    %133 = vector.load %arg14[%c0_114, %c0_115] : memref<1x128xf32, #tpu.memory_space<vmem>>, vector<1x128xf32>
    %134 = vector.broadcast %133 : vector<1x128xf32> to vector<16x128xf32>
    %135 = arith.addf %132, %134 : vector<16x128xf32>
    %136 = arith.addf %135, %130 : vector<16x128xf32>
    %cst_116 = arith.constant 0.000000e+00 : f32
    %137 = vector.broadcast %cst_116 : f32 to vector<16x128xf32>
    %138 = arith.maximumf %136, %137 : vector<16x128xf32>
    %c0_117 = arith.constant 0 : index
    %c0_118 = arith.constant 0 : index
    %139 = vector.load %arg15[%c0_117, %c0_118] : memref<128x128xf32, #tpu.memory_space<vmem>>, vector<128x128xf32>
    %cst_119 = arith.constant dense<0.000000e+00> : vector<16x128xf32>
    %140 = tpu.matmul %138, %139, %cst_119 {dimension_numbers = #tpu.dot_dimension_numbers<[1], [0], [0], [1], [0, 0, 1, 1], [], []>} : vector<16x128xf32>, vector<128x128xf32>, vector<16x128xf32> -> vector<16x128xf32>
    %141 = arith.subf %138, %140 : vector<16x128xf32>
    %142 = arith.mulf %141, %141 : vector<16x128xf32>
    %c0_120 = arith.constant 0 : index
    %c0_121 = arith.constant 0 : index
    %143 = vector.load %arg15[%c0_120, %c0_121] : memref<128x128xf32, #tpu.memory_space<vmem>>, vector<128x128xf32>
    %cst_122 = arith.constant dense<0.000000e+00> : vector<16x128xf32>
    %144 = tpu.matmul %142, %143, %cst_122 {dimension_numbers = #tpu.dot_dimension_numbers<[1], [0], [0], [1], [0, 0, 1, 1], [], []>} : vector<16x128xf32>, vector<128x128xf32>, vector<16x128xf32> -> vector<16x128xf32>
    %cst_123 = arith.constant 9.99999974E-6 : f32
    %145 = vector.broadcast %cst_123 : f32 to vector<16x128xf32>
    %146 = arith.addf %144, %145 : vector<16x128xf32>
    %147 = math.rsqrt %146 : vector<16x128xf32>
    %148 = arith.mulf %141, %147 : vector<16x128xf32>
    %c0_124 = arith.constant 0 : index
    %c0_125 = arith.constant 0 : index
    %149 = vector.load %arg16[%c0_124, %c0_125] : memref<1x128xf32, #tpu.memory_space<vmem>>, vector<1x128xf32>
    %150 = vector.broadcast %149 : vector<1x128xf32> to vector<16x128xf32>
    %151 = arith.mulf %148, %150 : vector<16x128xf32>
    %c0_126 = arith.constant 0 : index
    %c0_127 = arith.constant 0 : index
    %152 = vector.load %arg17[%c0_126, %c0_127] : memref<1x128xf32, #tpu.memory_space<vmem>>, vector<1x128xf32>
    %153 = vector.broadcast %152 : vector<1x128xf32> to vector<16x128xf32>
    %154 = arith.addf %151, %153 : vector<16x128xf32>
    %c0_128 = arith.constant 0 : index
    %c0_129 = arith.constant 0 : index
    %c0_130 = arith.constant 0 : index
    %155 = vector.load %arg18[%c0_128, %c0_129, %c0_130] : memref<1x16x128xf32, #tpu.memory_space<vmem>>, vector<1x16x128xf32>
    %156 = vector.shape_cast %155 : vector<1x16x128xf32> to vector<16x128xf32>
    %157 = vector.shape_cast %154 : vector<16x128xf32> to vector<1x16x128xf32>
    tpu.vector_store %arg18[%c0_128, %c0_129, %c0_130], %157 {strides = array<i32>} : memref<1x16x128xf32, #tpu.memory_space<vmem>>, vector<1x16x128xf32>,
    return
  }
  func.func @transform_0(%arg0: i32) -> (i32, i32, i32, i32) {
    %c0_i32 = arith.constant 0 : i32
    %c0_i32_0 = arith.constant 0 : i32
    %c0_i32_1 = arith.constant 0 : i32
    %c0_i32_2 = arith.constant 0 : i32
    return %arg0, %c0_i32, %c0_i32_0, %c0_i32_1 : i32, i32, i32, i32
  }
  func.func @transform_1(%arg0: i32) -> (i32, i32, i32) {
    %c0_i32 = arith.constant 0 : i32
    %c0_i32_0 = arith.constant 0 : i32
    %c0_i32_1 = arith.constant 0 : i32
    return %arg0, %c0_i32, %c0_i32_0 : i32, i32, i32
  }
  func.func @transform_2(%arg0: i32) -> (i32, i32) {
    %c0_i32 = arith.constant 0 : i32
    %c0_i32_0 = arith.constant 0 : i32
    %c0_i32_1 = arith.constant 0 : i32
    return %c0_i32, %c0_i32_0 : i32, i32
  }
  func.func @transform_3(%arg0: i32) -> (i32, i32) {
    %c0_i32 = arith.constant 0 : i32
    %c0_i32_0 = arith.constant 0 : i32
    %c0_i32_1 = arith.constant 0 : i32
    return %c0_i32, %c0_i32_0 : i32, i32
  }
  func.func @transform_4(%arg0: i32) -> (i32, i32) {
    %c0_i32 = arith.constant 0 : i32
    %c0_i32_0 = arith.constant 0 : i32
    %c0_i32_1 = arith.constant 0 : i32
    return %c0_i32, %c0_i32_0 : i32, i32
  }
  func.func @transform_5(%arg0: i32) -> (i32, i32) {
    %c0_i32 = arith.constant 0 : i32
    %c0_i32_0 = arith.constant 0 : i32
    %c0_i32_1 = arith.constant 0 : i32
    return %c0_i32, %c0_i32_0 : i32, i32
  }
  func.func @transform_6(%arg0: i32) -> (i32, i32) {
    %c0_i32 = arith.constant 0 : i32
    %c0_i32_0 = arith.constant 0 : i32
    %c0_i32_1 = arith.constant 0 : i32
    return %c0_i32, %c0_i32_0 : i32, i32
  }
  func.func @transform_7(%arg0: i32) -> (i32, i32) {
    %c0_i32 = arith.constant 0 : i32
    %c0_i32_0 = arith.constant 0 : i32
    %c0_i32_1 = arith.constant 0 : i32
    return %c0_i32, %c0_i32_0 : i32, i32
  }
  func.func @transform_8(%arg0: i32) -> (i32, i32, i32) {
    %c0_i32 = arith.constant 0 : i32
    %c0_i32_0 = arith.constant 0 : i32
    %c0_i32_1 = arith.constant 0 : i32
    %c0_i32_2 = arith.constant 0 : i32
    return %c0_i32, %c0_i32_0, %c0_i32_1 : i32, i32, i32
  }
  func.func @transform_9(%arg0: i32) -> (i32, i32, i32) {
    %c0_i32 = arith.constant 0 : i32
    %c0_i32_0 = arith.constant 0 : i32
    %c0_i32_1 = arith.constant 0 : i32
    %c0_i32_2 = arith.constant 0 : i32
    return %c0_i32, %c0_i32_0, %c0_i32_1 : i32, i32, i32
  }
  func.func @transform_10(%arg0: i32) -> (i32, i32, i32) {
    %c0_i32 = arith.constant 0 : i32
    %c0_i32_0 = arith.constant 0 : i32
    %c0_i32_1 = arith.constant 0 : i32
    %c0_i32_2 = arith.constant 0 : i32
    return %c0_i32, %c0_i32_0, %c0_i32_1 : i32, i32, i32
  }
  func.func @transform_11(%arg0: i32) -> (i32, i32) {
    %c0_i32 = arith.constant 0 : i32
    %c0_i32_0 = arith.constant 0 : i32
    %c0_i32_1 = arith.constant 0 : i32
    return %c0_i32, %c0_i32_0 : i32, i32
  }
  func.func @transform_12(%arg0: i32) -> (i32, i32) {
    %c0_i32 = arith.constant 0 : i32
    %c0_i32_0 = arith.constant 0 : i32
    %c0_i32_1 = arith.constant 0 : i32
    return %c0_i32, %c0_i32_0 : i32, i32
  }
  func.func @transform_13(%arg0: i32) -> (i32, i32) {
    %c0_i32 = arith.constant 0 : i32
    %c0_i32_0 = arith.constant 0 : i32
    %c0_i32_1 = arith.constant 0 : i32
    return %c0_i32, %c0_i32_0 : i32, i32
  }
  func.func @transform_14(%arg0: i32) -> (i32, i32) {
    %c0_i32 = arith.constant 0 : i32
    %c0_i32_0 = arith.constant 0 : i32
    %c0_i32_1 = arith.constant 0 : i32
    return %c0_i32, %c0_i32_0 : i32, i32
  }
  func.func @transform_15(%arg0: i32) -> (i32, i32) {
    %c0_i32 = arith.constant 0 : i32
    %c0_i32_0 = arith.constant 0 : i32
    %c0_i32_1 = arith.constant 0 : i32
    return %c0_i32, %c0_i32_0 : i32, i32
  }
  func.func @transform_16(%arg0: i32) -> (i32, i32) {
    %c0_i32 = arith.constant 0 : i32
    %c0_i32_0 = arith.constant 0 : i32
    %c0_i32_1 = arith.constant 0 : i32
    return %c0_i32, %c0_i32_0 : i32, i32
  }
  func.func @transform_17(%arg0: i32) -> (i32, i32, i32) {
    %c0_i32 = arith.constant 0 : i32
    %c0_i32_0 = arith.constant 0 : i32
    %c0_i32_1 = arith.constant 0 : i32
    return %arg0, %c0_i32, %c0_i32_0 : i32, i32, i32
  }
}

</mosaic_0001>

<llo_original>
// kernel: sta_mgcn_block_pallas.1
$region0: #{sta_mgcn_block_pallas.1}
  #allocation0 [shape = 'u32[]', space=smem, size = 0x4, offset = 0x4, fixed_abs, tag = 'smem constant byte address 0x4 - core index']
  #allocation1 [shape = 'u32[144,128]{1,0:T(1,128)}', space=vmem, size = 0x12000, scoped, tag = 'internal scratch']
  #allocation2 [shape = 'f32[32,32]{1,0:T(8,128)}', space=vmem, size = 0x4000, scoped, tag = 'scratch operand']
  #allocation3 [shape = 'f32[16,96]{1,0:T(8,128)}', space=vmem, size = 0x2000, scoped, tag = 'scratch operand']
  #allocation4 [shape = 'f32[16,192]{1,0:T(8,128)}', space=vmem, size = 0x4000, scoped, tag = 'scratch operand']
  %s0 = inlined_call_operand.vmem [shape: f32[2,16,4,8], index: 0, kind: input, shape index: {}]
  %s1 = inlined_call_operand.vmem [shape: f32[2,16,32], index: 1, kind: input, shape index: {}]
  %s2 = inlined_call_operand.vmem [shape: f32[16,1], index: 2, kind: input, shape index: {}]
  %s3 = inlined_call_operand.vmem [shape: f32[16,4], index: 3, kind: input, shape index: {}]
  %s4 = inlined_call_operand.vmem [shape: f32[1,4], index: 4, kind: input, shape index: {}]
  %s5 = inlined_call_operand.vmem [shape: f32[8,8], index: 5, kind: input, shape index: {}]
  %s6 = inlined_call_operand.vmem [shape: f32[8,8], index: 6, kind: input, shape index: {}]
  %s7 = inlined_call_operand.vmem [shape: f32[144,16], index: 7, kind: input, shape index: {}]
  %s8 = inlined_call_operand.vmem [shape: f32[3,96,128], index: 8, kind: input, shape index: {}]
  %s9 = inlined_call_operand.vmem [shape: f32[3,1,128], index: 9, kind: input, shape index: {}]
  %s10 = inlined_call_operand.vmem [shape: f32[3,128,256], index: 10, kind: input, shape index: {}]
  %s11 = inlined_call_operand.vmem [shape: f32[1,256], index: 11, kind: input, shape index: {}]
  %s12 = inlined_call_operand.vmem [shape: f32[32,128], index: 12, kind: input, shape index: {}]
  %s13 = inlined_call_operand.vmem [shape: f32[1,128], index: 13, kind: input, shape index: {}]
  %s14 = inlined_call_operand.vmem [shape: f32[128,128], index: 14, kind: input, shape index: {}]
  %s15 = inlined_call_operand.vmem [shape: f32[1,128], index: 15, kind: input, shape index: {}]
  %s16 = inlined_call_operand.vmem [shape: f32[1,128], index: 16, kind: input, shape index: {}]
  %s17 = inlined_call_operand.vmem [shape: f32[2,16,128], index: 17, kind: output, shape index: {}]
  %s18 = sld [smem:[#allocation0]]
  $region101: #{sta_mgcn_block_pallas.1} parent=0
    _
  %s20 = ssub.s32 1, %s18
  %s21 = scalar_select 0, %s20, %s18
  loop: start=0, step=1, limit=4
  $region2: #{sta_mgcn_block_pallas.1} parent=0 // loop_pre_header
    _
  $region3: #{sta_mgcn_block_pallas.1} parent=0 // loop_header
    %s23 = sphi 0, %s27
    %p24 = scmp.ge.s32.totalorder %s23, 4
    %s33 = sphi 0, %s35
    %s36 = sphi 0, %s33
    %s37 = sphi 0, %s36
    %s53 = sphi 0, %s37
    %s59 = sphi 0, %s61
    %s62 = sphi 0, %s59
    %s63 = sphi 0, %s62
    %s79 = sphi 0, %s63
    %s83 = sphi 0, %s83
    %s85 = sphi 0, %s83
    %s86 = sphi 0, %s85
    %s100 = sphi 0, %s86
    %s104 = sphi 0, %s104
    %s106 = sphi 0, %s104
    %s107 = sphi 0, %s106
    %s121 = sphi 0, %s107
    %s125 = sphi 0, %s125
    %s127 = sphi 0, %s125
    %s128 = sphi 0, %s127
    %s142 = sphi 0, %s128
    %s146 = sphi 0, %s146
    %s148 = sphi 0, %s146
    %s149 = sphi 0, %s148
    %s163 = sphi 0, %s149
    %s167 = sphi 0, %s167
    %s169 = sphi 0, %s167
    %s170 = sphi 0, %s169
    %s184 = sphi 0, %s170
    %s188 = sphi 0, %s188
    %s190 = sphi 0, %s188
    %s191 = sphi 0, %s190
    %s205 = sphi 0, %s191
    %s209 = sphi 0, %s209
    %s211 = sphi 0, %s209
    %s212 = sphi 0, %s211
    %s226 = sphi 0, %s212
    %s230 = sphi 0, %s230
    %s232 = sphi 0, %s230
    %s233 = sphi 0, %s232
    %s247 = sphi 0, %s233
    %s251 = sphi 0, %s251
    %s253 = sphi 0, %s251
    %s254 = sphi 0, %s253
    %s268 = sphi 0, %s254
    %s272 = sphi 0, %s272
    %s274 = sphi 0, %s272
    %s275 = sphi 0, %s274
    %s289 = sphi 0, %s275
    %s293 = sphi 0, %s293
    %s295 = sphi 0, %s293
    %s296 = sphi 0, %s295
    %s310 = sphi 0, %s296
    %s314 = sphi 0, %s314
    %s316 = sphi 0, %s314
    %s317 = sphi 0, %s316
    %s331 = sphi 0, %s317
    %s335 = sphi 0, %s335
    %s337 = sphi 0, %s335
    %s338 = sphi 0, %s337
    %s352 = sphi 0, %s338
    %s356 = sphi 0, %s356
    %s358 = sphi 0, %s356
    %s359 = sphi 0, %s358
    %s373 = sphi 0, %s359
    %s377 = sphi 0, %s377
    %s379 = sphi 0, %s377
    %s380 = sphi 0, %s379
    %s394 = sphi 0, %s380
    %s400 = sphi 0, %s402
    %s403 = sphi 0, %s400
    %s404 = sphi 0, %s403
    %s420 = sphi 0, %s404
  $region4: #{sta_mgcn_block_pallas.1} parent=0 // loop_header_branch
    %26 = sbr.rel (%p24) target = $region8
  $region5: #{sta_mgcn_block_pallas.1} parent=0 // loop_body
    %s28 = ssub.s32 %s23, 1
    %s29 = ssub.s32 %s23, 2
    %s30 = sadd.s32 %s23, 1
    %s31 = ssub.s32 %s23, %s30
    %p32 = scmp.eq.s32.totalorder %s31, 0
    %s34 = sadd.s32 %s33, 1
    %s35 = scalar_select %p32, %s33, %s34
    %p38 = pneg %p32
    %p39 = scmp.eq.s32.totalorder %s23, 1
    %p40 = por %p38, %p39
    %p41 = scmp.ne.s32.totalorder %s33, %s36
    %p42 = scmp.eq.s32.totalorder %s23, 0
    %p43 = por %p41, %p42
    %p44 = scmp.ne.s32.totalorder %s33, %s36
    %p45 = scmp.eq.s32.totalorder %s28, 1
    %p46 = por %p44, %p45
    %p47 = scmp.ne.s32.totalorder %s36, %s37
    %p48 = scmp.eq.s32.totalorder %s28, 0
    %p49 = por %p47, %p48
    %p50 = scmp.ne.s32.totalorder %s36, %s37
    %p51 = scmp.eq.s32.totalorder %s29, 1
    %p52 = por %p50, %p51
    %p54 = scmp.ne.s32.totalorder %s37, %s53
    %p55 = scmp.eq.s32.totalorder %s29, 0
    %p56 = por %p54, %p55
    %s57 = ssub.s32 %s23, %s30
    %p58 = scmp.eq.s32.totalorder %s57, 0
    %s60 = sadd.s32 %s59, 1
    %s61 = scalar_select %p58, %s59, %s60
    %p64 = pneg %p58
    %p65 = scmp.eq.s32.totalorder %s23, 1
    %p66 = por %p64, %p65
    %p67 = scmp.ne.s32.totalorder %s59, %s62
    %p68 = scmp.eq.s32.totalorder %s23, 0
    %p69 = por %p67, %p68
    %p70 = scmp.ne.s32.totalorder %s59, %s62
    %p71 = scmp.eq.s32.totalorder %s28, 1
    %p72 = por %p70, %p71
    %p73 = scmp.ne.s32.totalorder %s62, %s63
    %p74 = scmp.eq.s32.totalorder %s28, 0
    %p75 = por %p73, %p74
    %p76 = scmp.ne.s32.totalorder %s62, %s63
    %p77 = scmp.eq.s32.totalorder %s29, 1
    %p78 = por %p76, %p77
    %p80 = scmp.ne.s32.totalorder %s63, %s79
    %p81 = scmp.eq.s32.totalorder %s29, 0
    %p82 = por %p80, %p81
    %s84 = sadd.s32 %s83, 1
    %p87 = scmp.eq.s32.totalorder %s23, 1
    %p88 = scmp.ne.s32.totalorder %s83, %s85
    %p89 = scmp.eq.s32.totalorder %s23, 0
    %p90 = por %p88, %p89
    %p91 = scmp.ne.s32.totalorder %s83, %s85
    %p92 = scmp.eq.s32.totalorder %s28, 1
    %p93 = por %p91, %p92
    %p94 = scmp.ne.s32.totalorder %s85, %s86
    %p95 = scmp.eq.s32.totalorder %s28, 0
    %p96 = por %p94, %p95
    %p97 = scmp.ne.s32.totalorder %s85, %s86
    %p98 = scmp.eq.s32.totalorder %s29, 1
    %p99 = por %p97, %p98
    %p101 = scmp.ne.s32.totalorder %s86, %s100
    %p102 = scmp.eq.s32.totalorder %s29, 0
    %p103 = por %p101, %p102
    %s105 = sadd.s32 %s104, 1
    %p108 = scmp.eq.s32.totalorder %s23, 1
    %p109 = scmp.ne.s32.totalorder %s104, %s106
    %p110 = scmp.eq.s32.totalorder %s23, 0
    %p111 = por %p109, %p110
    %p112 = scmp.ne.s32.totalorder %s104, %s106
    %p113 = scmp.eq.s32.totalorder %s28, 1
    %p114 = por %p112, %p113
    %p115 = scmp.ne.s32.totalorder %s106, %s107
    %p116 = scmp.eq.s32.totalorder %s28, 0
    %p117 = por %p115, %p116
    %p118 = scmp.ne.s32.totalorder %s106, %s107
    %p119 = scmp.eq.s32.totalorder %s29, 1
    %p120 = por %p118, %p119
    %p122 = scmp.ne.s32.totalorder %s107, %s121
    %p123 = scmp.eq.s32.totalorder %s29, 0
    %p124 = por %p122, %p123
    %s126 = sadd.s32 %s125, 1
    %p129 = scmp.eq.s32.totalorder %s23, 1
    %p130 = scmp.ne.s32.totalorder %s125, %s127
    %p131 = scmp.eq.s32.totalorder %s23, 0
    %p132 = por %p130, %p131
    %p133 = scmp.ne.s32.totalorder %s125, %s127
    %p134 = scmp.eq.s32.totalorder %s28, 1
    %p135 = por %p133, %p134
    %p136 = scmp.ne.s32.totalorder %s127, %s128
    %p137 = scmp.eq.s32.totalorder %s28, 0
    %p138 = por %p136, %p137
    %p139 = scmp.ne.s32.totalorder %s127, %s128
    %p140 = scmp.eq.s32.totalorder %s29, 1
    %p141 = por %p139, %p140
    %p143 = scmp.ne.s32.totalorder %s128, %s142
    %p144 = scmp.eq.s32.totalorder %s29, 0
    %p145 = por %p143, %p144
    %s147 = sadd.s32 %s146, 1
    %p150 = scmp.eq.s32.totalorder %s23, 1
    %p151 = scmp.ne.s32.totalorder %s146, %s148
    %p152 = scmp.eq.s32.totalorder %s23, 0
    %p153 = por %p151, %p152
    %p154 = scmp.ne.s32.totalorder %s146, %s148
    %p155 = scmp.eq.s32.totalorder %s28, 1
    %p156 = por %p154, %p155
    %p157 = scmp.ne.s32.totalorder %s148, %s149
    %p158 = scmp.eq.s32.totalorder %s28, 0
    %p159 = por %p157, %p158
    %p160 = scmp.ne.s32.totalorder %s148, %s149
    %p161 = scmp.eq.s32.totalorder %s29, 1
    %p162 = por %p160, %p161
    %p164 = scmp.ne.s32.totalorder %s149, %s163
    %p165 = scmp.eq.s32.totalorder %s29, 0
    %p166 = por %p164, %p165
    %s168 = sadd.s32 %s167, 1
    %p171 = scmp.eq.s32.totalorder %s23, 1
    %p172 = scmp.ne.s32.totalorder %s167, %s169
    %p173 = scmp.eq.s32.totalorder %s23, 0
    %p174 = por %p172, %p173
    %p175 = scmp.ne.s32.totalorder %s167, %s169
    %p176 = scmp.eq.s32.totalorder %s28, 1
    %p177 = por %p175, %p176
    %p178 = scmp.ne.s32.totalorder %s169, %s170
    %p179 = scmp.eq.s32.totalorder %s28, 0
    %p180 = por %p178, %p179
    %p181 = scmp.ne.s32.totalorder %s169, %s170
    %p182 = scmp.eq.s32.totalorder %s29, 1
    %p183 = por %p181, %p182
    %p185 = scmp.ne.s32.totalorder %s170, %s184
    %p186 = scmp.eq.s32.totalorder %s29, 0
    %p187 = por %p185, %p186
    %s189 = sadd.s32 %s188, 1
    %p192 = scmp.eq.s32.totalorder %s23, 1
    %p193 = scmp.ne.s32.totalorder %s188, %s190
    %p194 = scmp.eq.s32.totalorder %s23, 0
    %p195 = por %p193, %p194
    %p196 = scmp.ne.s32.totalorder %s188, %s190
    %p197 = scmp.eq.s32.totalorder %s28, 1
    %p198 = por %p196, %p197
    %p199 = scmp.ne.s32.totalorder %s190, %s191
    %p200 = scmp.eq.s32.totalorder %s28, 0
    %p201 = por %p199, %p200
    %p202 = scmp.ne.s32.totalorder %s190, %s191
    %p203 = scmp.eq.s32.totalorder %s29, 1
    %p204 = por %p202, %p203
    %p206 = scmp.ne.s32.totalorder %s191, %s205
    %p207 = scmp.eq.s32.totalorder %s29, 0
    %p208 = por %p206, %p207
    %s210 = sadd.s32 %s209, 1
    %p213 = scmp.eq.s32.totalorder %s23, 1
    %p214 = scmp.ne.s32.totalorder %s209, %s211
    %p215 = scmp.eq.s32.totalorder %s23, 0
    %p216 = por %p214, %p215
    %p217 = scmp.ne.s32.totalorder %s209, %s211
    %p218 = scmp.eq.s32.totalorder %s28, 1
    %p219 = por %p217, %p218
    %p220 = scmp.ne.s32.totalorder %s211, %s212
    %p221 = scmp.eq.s32.totalorder %s28, 0
    %p222 = por %p220, %p221
    %p223 = scmp.ne.s32.totalorder %s211, %s212
    %p224 = scmp.eq.s32.totalorder %s29, 1
    %p225 = por %p223, %p224
    %p227 = scmp.ne.s32.totalorder %s212, %s226
    %p228 = scmp.eq.s32.totalorder %s29, 0
    %p229 = por %p227, %p228
    %s231 = sadd.s32 %s230, 1
    %p234 = scmp.eq.s32.totalorder %s23, 1
    %p235 = scmp.ne.s32.totalorder %s230, %s232
    %p236 = scmp.eq.s32.totalorder %s23, 0
    %p237 = por %p235, %p236
    %p238 = scmp.ne.s32.totalorder %s230, %s232
    %p239 = scmp.eq.s32.totalorder %s28, 1
    %p240 = por %p238, %p239
    %p241 = scmp.ne.s32.totalorder %s232, %s233
    %p242 = scmp.eq.s32.totalorder %s28, 0
    %p243 = por %p241, %p242
    %p244 = scmp.ne.s32.totalorder %s232, %s233
    %p245 = scmp.eq.s32.totalorder %s29, 1
    %p246 = por %p244, %p245
    %p248 = scmp.ne.s32.totalorder %s233, %s247
    %p249 = scmp.eq.s32.totalorder %s29, 0
    %p250 = por %p248, %p249
    %s252 = sadd.s32 %s251, 1
    %p255 = scmp.eq.s32.totalorder %s23, 1
    %p256 = scmp.ne.s32.totalorder %s251, %s253
    %p257 = scmp.eq.s32.totalorder %s23, 0
    %p258 = por %p256, %p257
    %p259 = scmp.ne.s32.totalorder %s251, %s253
    %p260 = scmp.eq.s32.totalorder %s28, 1
    %p261 = por %p259, %p260
    %p262 = scmp.ne.s32.totalorder %s253, %s254
    %p263 = scmp.eq.s32.totalorder %s28, 0
    %p264 = por %p262, %p263
    %p265 = scmp.ne.s32.totalorder %s253, %s254
    %p266 = scmp.eq.s32.totalorder %s29, 1
    %p267 = por %p265, %p266
    %p269 = scmp.ne.s32.totalorder %s254, %s268
    %p270 = scmp.eq.s32.totalorder %s29, 0
    %p271 = por %p269, %p270
    %s273 = sadd.s32 %s272, 1
    %p276 = scmp.eq.s32.totalorder %s23, 1
    %p277 = scmp.ne.s32.totalorder %s272, %s274
    %p278 = scmp.eq.s32.totalorder %s23, 0
    %p279 = por %p277, %p278
    %p280 = scmp.ne.s32.totalorder %s272, %s274
    %p281 = scmp.eq.s32.totalorder %s28, 1
    %p282 = por %p280, %p281
    %p283 = scmp.ne.s32.totalorder %s274, %s275
    %p284 = scmp.eq.s32.totalorder %s28, 0
    %p285 = por %p283, %p284
    %p286 = scmp.ne.s32.totalorder %s274, %s275
    %p287 = scmp.eq.s32.totalorder %s29, 1
    %p288 = por %p286, %p287
    %p290 = scmp.ne.s32.totalorder %s275, %s289
    %p291 = scmp.eq.s32.totalorder %s29, 0
    %p292 = por %p290, %p291
    %s294 = sadd.s32 %s293, 1
    %p297 = scmp.eq.s32.totalorder %s23, 1
    %p298 = scmp.ne.s32.totalorder %s293, %s295
    %p299 = scmp.eq.s32.totalorder %s23, 0
    %p300 = por %p298, %p299
    %p301 = scmp.ne.s32.totalorder %s293, %s295
    %p302 = scmp.eq.s32.totalorder %s28, 1
    %p303 = por %p301, %p302
    %p304 = scmp.ne.s32.totalorder %s295, %s296
    %p305 = scmp.eq.s32.totalorder %s28, 0
    %p306 = por %p304, %p305
    %p307 = scmp.ne.s32.totalorder %s295, %s296
    %p308 = scmp.eq.s32.totalorder %s29, 1
    %p309 = por %p307, %p308
    %p311 = scmp.ne.s32.totalorder %s296, %s310
    %p312 = scmp.eq.s32.totalorder %s29, 0
    %p313 = por %p311, %p312
    %s315 = sadd.s32 %s314, 1
    %p318 = scmp.eq.s32.totalorder %s23, 1
    %p319 = scmp.ne.s32.totalorder %s314, %s316
    %p320 = scmp.eq.s32.totalorder %s23, 0
    %p321 = por %p319, %p320
    %p322 = scmp.ne.s32.totalorder %s314, %s316
    %p323 = scmp.eq.s32.totalorder %s28, 1
    %p324 = por %p322, %p323
    %p325 = scmp.ne.s32.totalorder %s316, %s317
    %p326 = scmp.eq.s32.totalorder %s28, 0
    %p327 = por %p325, %p326
    %p328 = scmp.ne.s32.totalorder %s316, %s317
    %p329 = scmp.eq.s32.totalorder %s29, 1
    %p330 = por %p328, %p329
    %p332 = scmp.ne.s32.totalorder %s317, %s331
    %p333 = scmp.eq.s32.totalorder %s29, 0
    %p334 = por %p332, %p333
    %s336 = sadd.s32 %s335, 1
    %p339 = scmp.eq.s32.totalorder %s23, 1
    %p340 = scmp.ne.s32.totalorder %s335, %s337
    %p341 = scmp.eq.s32.totalorder %s23, 0
    %p342 = por %p340, %p341
    %p343 = scmp.ne.s32.totalorder %s335, %s337
    %p344 = scmp.eq.s32.totalorder %s28, 1
    %p345 = por %p343, %p344
    %p346 = scmp.ne.s32.totalorder %s337, %s338
    %p347 = scmp.eq.s32.totalorder %s28, 0
    %p348 = por %p346, %p347
    %p349 = scmp.ne.s32.totalorder %s337, %s338
    %p350 = scmp.eq.s32.totalorder %s29, 1
    %p351 = por %p349, %p350
    %p353 = scmp.ne.s32.totalorder %s338, %s352
    %p354 = scmp.eq.s32.totalorder %s29, 0
    %p355 = por %p353, %p354
    %s357 = sadd.s32 %s356, 1
    %p360 = scmp.eq.s32.totalorder %s23, 1
    %p361 = scmp.ne.s32.totalorder %s356, %s358
    %p362 = scmp.eq.s32.totalorder %s23, 0
    %p363 = por %p361, %p362
    %p364 = scmp.ne.s32.totalorder %s356, %s358
    %p365 = scmp.eq.s32.totalorder %s28, 1
    %p366 = por %p364, %p365
    %p367 = scmp.ne.s32.totalorder %s358, %s359
    %p368 = scmp.eq.s32.totalorder %s28, 0
    %p369 = por %p367, %p368
    %p370 = scmp.ne.s32.totalorder %s358, %s359
    %p371 = scmp.eq.s32.totalorder %s29, 1
    %p372 = por %p370, %p371
    %p374 = scmp.ne.s32.totalorder %s359, %s373
    %p375 = scmp.eq.s32.totalorder %s29, 0
    %p376 = por %p374, %p375
    %s378 = sadd.s32 %s377, 1
    %p381 = scmp.eq.s32.totalorder %s23, 1
    %p382 = scmp.ne.s32.totalorder %s377, %s379
    %p383 = scmp.eq.s32.totalorder %s23, 0
    %p384 = por %p382, %p383
    %p385 = scmp.ne.s32.totalorder %s377, %s379
    %p386 = scmp.eq.s32.totalorder %s28, 1
    %p387 = por %p385, %p386
    %p388 = scmp.ne.s32.totalorder %s379, %s380
    %p389 = scmp.eq.s32.totalorder %s28, 0
    %p390 = por %p388, %p389
    %p391 = scmp.ne.s32.totalorder %s379, %s380
    %p392 = scmp.eq.s32.totalorder %s29, 1
    %p393 = por %p391, %p392
    %p395 = scmp.ne.s32.totalorder %s380, %s394
    %p396 = scmp.eq.s32.totalorder %s29, 0
    %p397 = por %p395, %p396
    %s398 = ssub.s32 %s23, %s30
    %p399 = scmp.eq.s32.totalorder %s398, 0
    %s401 = sadd.s32 %s400, 1
    %s402 = scalar_select %p399, %s400, %s401
    %p405 = pneg %p399
    %p406 = scmp.eq.s32.totalorder %s23, 1
    %p407 = por %p405, %p406
    %p408 = scmp.ne.s32.totalorder %s400, %s403
    %p409 = scmp.eq.s32.totalorder %s23, 0
    %p410 = por %p408, %p409
    %p411 = scmp.ne.s32.totalorder %s400, %s403
    %p412 = scmp.eq.s32.totalorder %s28, 1
    %p413 = por %p411, %p412
    %p414 = scmp.ne.s32.totalorder %s403, %s404
    %p415 = scmp.eq.s32.totalorder %s28, 0
    %p416 = por %p414, %p415
    %p417 = scmp.ne.s32.totalorder %s403, %s404
    %p418 = scmp.eq.s32.totalorder %s29, 1
    %p419 = por %p417, %p418
    %p421 = scmp.ne.s32.totalorder %s404, %s420
    %p422 = scmp.eq.s32.totalorder %s29, 0
    %p423 = por %p421, %p422
    %p424 = scmp.le.s32.totalorder 1, %s23
    %p425 = scmp.lt.s32.totalorder %s23, 3
    %p426 = pnand %p424, %p425
    %p427 = pneg %p426
    // Predicated region
    $region9: #{sta_mgcn_block_pallas.1} parent=5 // pred_check
      _
    $region10: #{sta_mgcn_block_pallas.1} parent=5 // pred_check_branch
      %429 = sbr.rel (%p426) target = $region12
    $region11: #{sta_mgcn_block_pallas.1} parent=5 // pred_region
      %s430 = ssub.s32 %s23, 1
      // Predicated region
      $region13: #{sta_mgcn_block_pallas.1} parent=11 // pred_check
        %p431 = pneg %p96
      $region14: #{sta_mgcn_block_pallas.1} parent=11 // pred_check_branch
        %433 = sbr.rel (%p431) target = $region16
      $region15: #{sta_mgcn_block_pallas.1} parent=11 // pred_region
        _
      $region16: #{sta_mgcn_block_pallas.1} parent=11 // pred_fallthru
        _
      // Predicated region
      $region17: #{sta_mgcn_block_pallas.1} parent=11 // pred_check
        %p434 = pneg %p117
      $region18: #{sta_mgcn_block_pallas.1} parent=11 // pred_check_branch
        %436 = sbr.rel (%p434) target = $region20
      $region19: #{sta_mgcn_block_pallas.1} parent=11 // pred_region
        _
      $region20: #{sta_mgcn_block_pallas.1} parent=11 // pred_fallthru
        _
      // Predicated region
      $region21: #{sta_mgcn_block_pallas.1} parent=11 // pred_check
        %p437 = pneg %p138
      $region22: #{sta_mgcn_block_pallas.1} parent=11 // pred_check_branch
        %439 = sbr.rel (%p437) target = $region24
      $region23: #{sta_mgcn_block_pallas.1} parent=11 // pred_region
        _
      $region24: #{sta_mgcn_block_pallas.1} parent=11 // pred_fallthru
        _
      // Predicated region
      $region25: #{sta_mgcn_block_pallas.1} parent=11 // pred_check
        %p440 = pneg %p159
      $region26: #{sta_mgcn_block_pallas.1} parent=11 // pred_check_branch
        %442 = sbr.rel (%p440) target = $region28
      $region27: #{sta_mgcn_block_pallas.1} parent=11 // pred_region
        _
      $region28: #{sta_mgcn_block_pallas.1} parent=11 // pred_fallthru
        _
      // Predicated region
      $region29: #{sta_mgcn_block_pallas.1} parent=11 // pred_check
        %p443 = pneg %p180
      $region30: #{sta_mgcn_block_pallas.1} parent=11 // pred_check_branch
        %445 = sbr.rel (%p443) target = $region32
      $region31: #{sta_mgcn_block_pallas.1} parent=11 // pred_region
        _
      $region32: #{sta_mgcn_block_pallas.1} parent=11 // pred_fallthru
        _
      // Predicated region
      $region33: #{sta_mgcn_block_pallas.1} parent=11 // pred_check
        %p446 = pneg %p201
      $region34: #{sta_mgcn_block_pallas.1} parent=11 // pred_check_branch
        %448 = sbr.rel (%p446) target = $region36
      $region35: #{sta_mgcn_block_pallas.1} parent=11 // pred_region
        _
      $region36: #{sta_mgcn_block_pallas.1} parent=11 // pred_fallthru
        _
      // Predicated region
      $region37: #{sta_mgcn_block_pallas.1} parent=11 // pred_check
        %p449 = pneg %p222
      $region38: #{sta_mgcn_block_pallas.1} parent=11 // pred_check_branch
        %451 = sbr.rel (%p449) target = $region40
      $region39: #{sta_mgcn_block_pallas.1} parent=11 // pred_region
        _
      $region40: #{sta_mgcn_block_pallas.1} parent=11 // pred_fallthru
        _
      // Predicated region
      $region41: #{sta_mgcn_block_pallas.1} parent=11 // pred_check
        %p452 = pneg %p243
      $region42: #{sta_mgcn_block_pallas.1} parent=11 // pred_check_branch
        %454 = sbr.rel (%p452) target = $region44
      $region43: #{sta_mgcn_block_pallas.1} parent=11 // pred_region
        _
      $region44: #{sta_mgcn_block_pallas.1} parent=11 // pred_fallthru
        _
      // Predicated region
      $region45: #{sta_mgcn_block_pallas.1} parent=11 // pred_check
        %p455 = pneg %p264
      $region46: #{sta_mgcn_block_pallas.1} parent=11 // pred_check_branch
        %457 = sbr.rel (%p455) target = $region48
      $region47: #{sta_mgcn_block_pallas.1} parent=11 // pred_region
        _
      $region48: #{sta_mgcn_block_pallas.1} parent=11 // pred_fallthru
        _
      // Predicated region
      $region49: #{sta_mgcn_block_pallas.1} parent=11 // pred_check
        %p458 = pneg %p285
      $region50: #{sta_mgcn_block_pallas.1} parent=11 // pred_check_branch
        %460 = sbr.rel (%p458) target = $region52
      $region51: #{sta_mgcn_block_pallas.1} parent=11 // pred_region
        _
      $region52: #{sta_mgcn_block_pallas.1} parent=11 // pred_fallthru
        _
      // Predicated region
      $region53: #{sta_mgcn_block_pallas.1} parent=11 // pred_check
        %p461 = pneg %p306
      $region54: #{sta_mgcn_block_pallas.1} parent=11 // pred_check_branch
        %463 = sbr.rel (%p461) target = $region56
      $region55: #{sta_mgcn_block_pallas.1} parent=11 // pred_region
        _
      $region56: #{sta_mgcn_block_pallas.1} parent=11 // pred_fallthru
        _
      // Predicated region
      $region57: #{sta_mgcn_block_pallas.1} parent=11 // pred_check
        %p464 = pneg %p327
      $region58: #{sta_mgcn_block_pallas.1} parent=11 // pred_check_branch
        %466 = sbr.rel (%p464) target = $region60
      $region59: #{sta_mgcn_block_pallas.1} parent=11 // pred_region
        _
      $region60: #{sta_mgcn_block_pallas.1} parent=11 // pred_fallthru
        _
      // Predicated region
      $region61: #{sta_mgcn_block_pallas.1} parent=11 // pred_check
        %p467 = pneg %p348
      $region62: #{sta_mgcn_block_pallas.1} parent=11 // pred_check_branch
        %469 = sbr.rel (%p467) target = $region64
      $region63: #{sta_mgcn_block_pallas.1} parent=11 // pred_region
        _
      $region64: #{sta_mgcn_block_pallas.1} parent=11 // pred_fallthru
        _
      // Predicated region
      $region65: #{sta_mgcn_block_pallas.1} parent=11 // pred_check
        %p470 = pneg %p369
      $region66: #{sta_mgcn_block_pallas.1} parent=11 // pred_check_branch
        %472 = sbr.rel (%p470) target = $region68
      $region67: #{sta_mgcn_block_pallas.1} parent=11 // pred_region
        _
      $region68: #{sta_mgcn_block_pallas.1} parent=11 // pred_fallthru
        _
      // Predicated region
      $region69: #{sta_mgcn_block_pallas.1} parent=11 // pred_check
        %p473 = pneg %p390
      $region70: #{sta_mgcn_block_pallas.1} parent=11 // pred_check_branch
        %475 = sbr.rel (%p473) target = $region72
      $region71: #{sta_mgcn_block_pallas.1} parent=11 // pred_region
        _
      $region72: #{sta_mgcn_block_pallas.1} parent=11 // pred_fallthru
        _
    $region12: #{sta_mgcn_block_pallas.1} parent=5 // pred_fallthru
      _
    %p476 = scmp.lt.s32.totalorder %s23, 2
    // Predicated region
    $region73: #{sta_mgcn_block_pallas.1} parent=5 // pred_check
      %p477 = pneg %p476
    $region74: #{sta_mgcn_block_pallas.1} parent=5 // pred_check_branch
      %479 = sbr.rel (%p477) target = $region76
    $region75: #{sta_mgcn_block_pallas.1} parent=5 // pred_region
      // Predicated region
      $region77: #{sta_mgcn_block_pallas.1} parent=75 // pred_check
        %p480 = pneg %p43
      $region78: #{sta_mgcn_block_pallas.1} parent=75 // pred_check_branch
        %482 = sbr.rel (%p480) target = $region80
      $region79: #{sta_mgcn_block_pallas.1} parent=75 // pred_region
        %p483 = scmp.lt.s32.totalorder %s23, 1
        %s484 = scalar_select %p483, %s23, 1
        %s485 = smul.addr %s484, 16
        %s486 = smul.addr %s485, 4
        %s487 = scalar_lea.vmem %s0, %s486
      $region80: #{sta_mgcn_block_pallas.1} parent=75 // pred_fallthru
        _
      // Predicated region
      $region81: #{sta_mgcn_block_pallas.1} parent=75 // pred_check
        %p488 = pneg %p69
      $region82: #{sta_mgcn_block_pallas.1} parent=75 // pred_check_branch
        %490 = sbr.rel (%p488) target = $region84
      $region83: #{sta_mgcn_block_pallas.1} parent=75 // pred_region
        %p491 = scmp.lt.s32.totalorder %s23, 1
        %s492 = scalar_select %p491, %s23, 1
        %s493 = smul.addr %s492, 2
        %s494 = smul.addr %s493, 8
        %s495 = scalar_lea.vmem %s1, %s494
      $region84: #{sta_mgcn_block_pallas.1} parent=75 // pred_fallthru
        _
    $region76: #{sta_mgcn_block_pallas.1} parent=5 // pred_fallthru
      _
    %p496 = scmp.le.s32.totalorder 1, %s23
    %p497 = scmp.lt.s32.totalorder %s23, 3
    %p498 = pnand %p496, %p497
    %p499 = pneg %p498
    // Predicated region
    $region85: #{sta_mgcn_block_pallas.1} parent=5 // pred_check
      _
    $region86: #{sta_mgcn_block_pallas.1} parent=5 // pred_check_branch
      %501 = sbr.rel (%p498) target = $region88
    $region87: #{sta_mgcn_block_pallas.1} parent=5 // pred_region
      %s502 = ssub.s32 %s23, 1
      %p503 = scmp.lt.s32.totalorder %s28, 1
      %s504 = scalar_select %p503, %s28, 1
      %s505 = smul.addr %s504, 16
      %s506 = smul.addr %s505, 4
      %s507 = scalar_lea.vmem %s0, %s506
      %p508 = pneg %p49
      %p509 = pneg %p46
      %p510 = scmp.lt.s32.totalorder %s28, 1
      %s511 = scalar_select %p510, %s28, 1
      %s512 = smul.addr %s511, 2
      %s513 = smul.addr %s512, 8
      %s514 = scalar_lea.vmem %s1, %s513
      %p515 = pneg %p75
      %p516 = pneg %p72
      %p517 = pneg %p96
      %p518 = pneg %p93
      %p519 = pneg %p117
      %p520 = pneg %p114
      %p521 = pneg %p138
      %p522 = pneg %p135
      %p523 = pneg %p159
      %p524 = pneg %p156
      %p525 = pneg %p180
      %p526 = pneg %p177
      %p527 = pneg %p201
      %p528 = pneg %p198
      %p529 = pneg %p222
      %p530 = pneg %p219
      %p531 = pneg %p243
      %p532 = pneg %p240
      %p533 = pneg %p264
      %p534 = pneg %p261
      %p535 = pneg %p285
      %p536 = pneg %p282
      %p537 = pneg %p306
      %p538 = pneg %p303
      %p539 = pneg %p327
      %p540 = pneg %p324
      %p541 = pneg %p348
      %p542 = pneg %p345
      %p543 = pneg %p369
      %p544 = pneg %p366
      %p545 = pneg %p390
      %p546 = pneg %p387
      %p547 = pneg %p416
      %p548 = pneg %p413
      %p549 = scmp.lt.s32.totalorder %s28, 1
      %s550 = scalar_select %p549, %s28, 1
      %s551 = smul.addr %s550, 2
      %s552 = smul.addr %s551, 8
      %s553 = scalar_lea.vmem %s17, %s552
      %p554 = scmp.lt.s32.totalorder %s28, 1
      %s555 = scalar_select %p554, %s28, 1
      %s556 = smul.addr %s555, 16
      %s557 = smul.addr %s556, 4
      %s558 = scalar_lea.vmem %s0, %s557
      %p559 = scmp.lt.s32.totalorder %s28, 1
      %s560 = scalar_select %p559, %s28, 1
      %s561 = smul.addr %s560, 2
      %s562 = smul.addr %s561, 8
      %s563 = scalar_lea.vmem %s1, %s562
      %p564 = scmp.lt.s32.totalorder %s28, 1
      %s565 = scalar_select %p564, %s28, 1
      %s566 = smul.addr %s565, 2
      %s567 = smul.addr %s566, 8
      %s568 = scalar_lea.vmem %s17, %s567
      %v569 = vld [vmem:[%s558] sm:$0xf]
      %v570 = vld [vmem:[%s558 + $0x4] sm:$0xf]
      %v571 = vld [vmem:[%s558 + $0x8] sm:$0xf]
      %v572 = vld [vmem:[%s558 + $0xc] sm:$0xf]
      %v573 = vld [vmem:[%s558 + $0x10] sm:$0xf]
      %v574 = vld [vmem:[%s558 + $0x14] sm:$0xf]
      %v575 = vld [vmem:[%s558 + $0x18] sm:$0xf]
      %v576 = vld [vmem:[%s558 + $0x1c] sm:$0xf]
      %v577 = vld [vmem:[%s558 + $0x20] sm:$0xf]
      %v578 = vld [vmem:[%s558 + $0x24] sm:$0xf]
      %v579 = vld [vmem:[%s558 + $0x28] sm:$0xf]
      %v580 = vld [vmem:[%s558 + $0x2c] sm:$0xf]
      %v581 = vld [vmem:[%s558 + $0x30] sm:$0xf]
      %v582 = vld [vmem:[%s558 + $0x34] sm:$0xf]
      %v583 = vld [vmem:[%s558 + $0x38] sm:$0xf]
      %v584 = vld [vmem:[%s558 + $0x3c] sm:$0xf]
      %v585 = vld [vmem:[%s563] sm:$0xff]
      %v586 = vld [vmem:[%s563 + $0x8] sm:$0xff]
      %v587 = vld [vmem:[%s2] sm:$0xff]
      %v588 = vld [vmem:[%s2 + $0x8] sm:$0xff]
      %v591 = vcombine.high %v587, %v587
      %v593 = vunpack.c.l.s4 1966171168
      %v594 = vunpack.c.0.s8 %v593
      %v595 = vlaneseq
      %v596 = vshrl.u32 %v595, 7
      %v597 = vsub.s32 %v594, %v596
      %v598 = vrot.slane %v587, %v597
      %v600 = vunpack.c.l.s4 1966171168
      %v601 = vunpack.c.0.s8 %v600
      %v602 = vlaneseq
      %v603 = vshrl.u32 %v602, 7
      %v604 = vsub.s32 %v601, %v603
      %v605 = vrot.slane %v591, %v604
      %v606 = vcombine.high %v598, %v598
      %v607 = vcombine.high %v605, %v605
      %v609 = vunpack.c.l.s4 1966171168
      %v610 = vunpack.c.0.s8 %v609
      %v611 = vlaneseq
      %v612 = vshrl.u32 %v611, 7
      %v613 = vsub.s32 %v610, %v612
      %v614 = vrot.slane %v598, %v613
      %v616 = vunpack.c.l.s4 1966171168
      %v617 = vunpack.c.0.s8 %v616
      %v618 = vlaneseq
      %v619 = vshrl.u32 %v618, 7
      %v620 = vsub.s32 %v617, %v619
      %v621 = vrot.slane %v605, %v620
      %v623 = vunpack.c.l.s4 1966171168
      %v624 = vunpack.c.0.s8 %v623
      %v625 = vlaneseq
      %v626 = vshrl.u32 %v625, 7
      %v627 = vsub.s32 %v624, %v626
      %v628 = vrot.slane %v606, %v627
      %v630 = vunpack.c.l.s4 1966171168
      %v631 = vunpack.c.0.s8 %v630
      %v632 = vlaneseq
      %v633 = vshrl.u32 %v632, 7
      %v634 = vsub.s32 %v631, %v633
      %v635 = vrot.slane %v607, %v634
      %v636 = vcombine.high %v614, %v614
      %v637 = vcombine.high %v621, %v621
      %v638 = vcombine.high %v628, %v628
      %v639 = vcombine.high %v635, %v635
      %v640 = vcombine.high %v588, %v588
      %v642 = vunpack.c.l.s4 1966171168
      %v643 = vunpack.c.0.s8 %v642
      %v644 = vlaneseq
      %v645 = vshrl.u32 %v644, 7
      %v646 = vsub.s32 %v643, %v645
      %v647 = vrot.slane %v588, %v646
      %v649 = vunpack.c.l.s4 1966171168
      %v650 = vunpack.c.0.s8 %v649
      %v651 = vlaneseq
      %v652 = vshrl.u32 %v651, 7
      %v653 = vsub.s32 %v650, %v652
      %v654 = vrot.slane %v640, %v653
      %v655 = vcombine.high %v647, %v647
      %v656 = vcombine.high %v654, %v654
      %v658 = vunpack.c.l.s4 1966171168
      %v659 = vunpack.c.0.s8 %v658
      %v660 = vlaneseq
      %v661 = vshrl.u32 %v660, 7
      %v662 = vsub.s32 %v659, %v661
      %v663 = vrot.slane %v647, %v662
      %v665 = vunpack.c.l.s4 1966171168
      %v666 = vunpack.c.0.s8 %v665
      %v667 = vlaneseq
      %v668 = vshrl.u32 %v667, 7
      %v669 = vsub.s32 %v666, %v668
      %v670 = vrot.slane %v654, %v669
      %v672 = vunpack.c.l.s4 1966171168
      %v673 = vunpack.c.0.s8 %v672
      %v674 = vlaneseq
      %v675 = vshrl.u32 %v674, 7
      %v676 = vsub.s32 %v673, %v675
      %v677 = vrot.slane %v655, %v676
      %v679 = vunpack.c.l.s4 1966171168
      %v680 = vunpack.c.0.s8 %v679
      %v681 = vlaneseq
      %v682 = vshrl.u32 %v681, 7
      %v683 = vsub.s32 %v680, %v682
      %v684 = vrot.slane %v656, %v683
      %v685 = vcombine.high %v663, %v663
      %v686 = vcombine.high %v670, %v670
      %v687 = vcombine.high %v677, %v677
      %v688 = vcombine.high %v684, %v684
      %v689 = vlaneseq
      %v690 = vshrl.u32 %v689, 7
      %v691 = vsub.s32 0, %v690
      %v692 = vrot.slane %v614, %v691
      %v693 = vlaneseq
      %v694 = vshrl.u32 %v693, 7
      %v695 = vsub.s32 0, %v694
      %v696 = vrot.slane %v628, %v695
      %v697 = vlaneseq
      %v698 = vshrl.u32 %v697, 7
      %v699 = vsub.s32 0, %v698
      %v700 = vrot.slane %v636, %v699
      %v701 = vlaneseq
      %v702 = vshrl.u32 %v701, 7
      %v703 = vsub.s32 0, %v702
      %v704 = vrot.slane %v638, %v703
      %v705 = vlaneseq
      %v706 = vshrl.u32 %v705, 7
      %v707 = vsub.s32 0, %v706
      %v708 = vrot.slane %v621, %v707
      %v709 = vlaneseq
      %v710 = vshrl.u32 %v709, 7
      %v711 = vsub.s32 0, %v710
      %v712 = vrot.slane %v635, %v711
      %v713 = vlaneseq
      %v714 = vshrl.u32 %v713, 7
      %v715 = vsub.s32 0, %v714
      %v716 = vrot.slane %v637, %v715
      %v717 = vlaneseq
      %v718 = vshrl.u32 %v717, 7
      %v719 = vsub.s32 0, %v718
      %v720 = vrot.slane %v639, %v719
      %v721 = vlaneseq
      %v722 = vshrl.u32 %v721, 7
      %v723 = vsub.s32 0, %v722
      %v724 = vrot.slane %v663, %v723
      %v725 = vlaneseq
      %v726 = vshrl.u32 %v725, 7
      %v727 = vsub.s32 0, %v726
      %v728 = vrot.slane %v677, %v727
      %v729 = vlaneseq
      %v730 = vshrl.u32 %v729, 7
      %v731 = vsub.s32 0, %v730
      %v732 = vrot.slane %v685, %v731
      %v733 = vlaneseq
      %v734 = vshrl.u32 %v733, 7
      %v735 = vsub.s32 0, %v734
      %v736 = vrot.slane %v687, %v735
      %v737 = vlaneseq
      %v738 = vshrl.u32 %v737, 7
      %v739 = vsub.s32 0, %v738
      %v740 = vrot.slane %v670, %v739
      %v741 = vlaneseq
      %v742 = vshrl.u32 %v741, 7
      %v743 = vsub.s32 0, %v742
      %v744 = vrot.slane %v684, %v743
      %v745 = vlaneseq
      %v746 = vshrl.u32 %v745, 7
      %v747 = vsub.s32 0, %v746
      %v748 = vrot.slane %v686, %v747
      %v749 = vlaneseq
      %v750 = vshrl.u32 %v749, 7
      %v751 = vsub.s32 0, %v750
      %v752 = vrot.slane %v688, %v751
      %753 = vset.pattern.permute.xlu0 0
      %754 = vperm.xlu0 %753, %v692
      %v755 = vpop.permute.xlu0 %754
      %757 = vset.pattern.permute.xlu0 0
      %758 = vperm.xlu0 %757, %v696
      %v759 = vpop.permute.xlu0 %758
      %761 = vset.pattern.permute.xlu0 0
      %762 = vperm.xlu0 %761, %v700
      %v763 = vpop.permute.xlu0 %762
      %765 = vset.pattern.permute.xlu0 0
      %766 = vperm.xlu0 %765, %v704
      %v767 = vpop.permute.xlu0 %766
      %769 = vset.pattern.permute.xlu0 0
      %770 = vperm.xlu0 %769, %v708
      %v771 = vpop.permute.xlu0 %770
      %773 = vset.pattern.permute.xlu0 0
      %774 = vperm.xlu0 %773, %v712
      %v775 = vpop.permute.xlu0 %774
      %777 = vset.pattern.permute.xlu0 0
      %778 = vperm.xlu0 %777, %v716
      %v779 = vpop.permute.xlu0 %778
      %781 = vset.pattern.permute.xlu0 0
      %782 = vperm.xlu0 %781, %v720
      %v783 = vpop.permute.xlu0 %782
      %785 = vset.pattern.permute.xlu0 0
      %786 = vperm.xlu0 %785, %v724
      %v787 = vpop.permute.xlu0 %786
      %789 = vset.pattern.permute.xlu0 0
      %790 = vperm.xlu0 %789, %v728
      %v791 = vpop.permute.xlu0 %790
      %793 = vset.pattern.permute.xlu0 0
      %794 = vperm.xlu0 %793, %v732
      %v795 = vpop.permute.xlu0 %794
      %797 = vset.pattern.permute.xlu0 0
      %798 = vperm.xlu0 %797, %v736
      %v799 = vpop.permute.xlu0 %798
      %801 = vset.pattern.permute.xlu0 0
      %802 = vperm.xlu0 %801, %v740
      %v803 = vpop.permute.xlu0 %802
      %805 = vset.pattern.permute.xlu0 0
      %806 = vperm.xlu0 %805, %v744
      %v807 = vpop.permute.xlu0 %806
      %809 = vset.pattern.permute.xlu0 0
      %810 = vperm.xlu0 %809, %v748
      %v811 = vpop.permute.xlu0 %810
      %813 = vset.pattern.permute.xlu0 0
      %814 = vperm.xlu0 %813, %v752
      %v815 = vpop.permute.xlu0 %814
      %v817 = vmul.f32 %v569, %v755
      %v818 = vmul.f32 %v570, %v759
      %v819 = vmul.f32 %v571, %v763
      %v820 = vmul.f32 %v572, %v767
      %v821 = vmul.f32 %v573, %v771
      %v822 = vmul.f32 %v574, %v775
      %v823 = vmul.f32 %v575, %v779
      %v824 = vmul.f32 %v576, %v783
      %v825 = vmul.f32 %v577, %v787
      %v826 = vmul.f32 %v578, %v791
      %v827 = vmul.f32 %v579, %v795
      %v828 = vmul.f32 %v580, %v799
      %v829 = vmul.f32 %v581, %v803
      %v830 = vmul.f32 %v582, %v807
      %v831 = vmul.f32 %v583, %v811
      %v832 = vmul.f32 %v584, %v815
      %vm833 = vcmask 60416
      %v834 = vsel %vm833, %v817, 0.0
      %v835 = vsel %vm833, %v818, 0.0
      %v836 = vadd.f32 %v834, %v835
      %v837 = vsel %vm833, %v819, 0.0
      %v838 = vadd.f32 %v836, %v837
      %v839 = vsel %vm833, %v820, 0.0
      %v840 = vadd.f32 %v838, %v839
      %v841 = vsel %vm833, %v821, 0.0
      %v842 = vadd.f32 %v840, %v841
      %v843 = vsel %vm833, %v822, 0.0
      %v844 = vadd.f32 %v842, %v843
      %v845 = vsel %vm833, %v823, 0.0
      %v846 = vadd.f32 %v844, %v845
      %v847 = vsel %vm833, %v824, 0.0
      %v848 = vadd.f32 %v846, %v847
      %v849 = vsel %vm833, %v825, 0.0
      %v850 = vadd.f32 %v848, %v849
      %v851 = vsel %vm833, %v826, 0.0
      %v852 = vadd.f32 %v850, %v851
      %v853 = vsel %vm833, %v827, 0.0
      %v854 = vadd.f32 %v852, %v853
      %v855 = vsel %vm833, %v828, 0.0
      %v856 = vadd.f32 %v854, %v855
      %v857 = vsel %vm833, %v829, 0.0
      %v858 = vadd.f32 %v856, %v857
      %v859 = vsel %vm833, %v830, 0.0
      %v860 = vadd.f32 %v858, %v859
      %v861 = vsel %vm833, %v831, 0.0
      %v862 = vadd.f32 %v860, %v861
      %v863 = vsel %vm833, %v832, 0.0
      %v864 = vadd.f32 %v862, %v863
      %v865 = vld [vmem:[%s3] sm:$0xff]
      %v866 = vld [vmem:[%s3 + $0x8] sm:$0xff]
      %vm867 = vcmask 31744
      %v869 = vsel %vm867, %v865, 0
      %v872 = vsel %vm867, %v866, 0
      %vm874 = vcmask 1043456
      %v876 = vsel %vm874, %v864, 0
      %878 = vmatprep.subr.mxu0 0.0
      %879 = vmatpush1.msra.mxu0 0.0
      %880 = vmatprep.subr.mxu0 0.0
      %881 = vmatpush1.msra.mxu0 0.0
      %882 = vmatprep.subr.mxu0 0.0
      %883 = vmatpush1.msra.mxu0 0.0
      %884 = vmatprep.subr.mxu0 0.0
      %885 = vmatpush1.msra.mxu0 0.0
      %886 = vmatprep.subr.mxu0 0.0
      %887 = vmatpush1.msra.mxu0 0.0
      %888 = vmatprep.subr.mxu0 0.0
      %889 = vmatpush1.msra.mxu0 0.0
      %890 = vmatprep.subr.mxu0 0.0
      %891 = vmatpush1.msra.mxu0 0.0
      %892 = vmatprep.subr.mxu0 0.0
      %893 = vmatpush1.msra.mxu0 0.0
      %894 = vmatprep.subr.mxu0 0.0
      %895 = vmatpush1.msra.mxu0 0.0
      %896 = vmatprep.subr.mxu0 0.0
      %897 = vmatpush1.msra.mxu0 0.0
      %898 = vmatprep.subr.mxu0 0.0
      %899 = vmatpush1.msra.mxu0 0.0
      %900 = vmatprep.subr.mxu0 0.0
      %901 = vmatpush1.msra.mxu0 0.0
      %902 = vmatprep.subr.mxu0 0.0
      %903 = vmatpush1.msra.mxu0 0.0
      %904 = vmatprep.subr.mxu0 0.0
      %905 = vmatpush1.msra.mxu0 0.0
      %906 = vmatprep.subr.mxu0 0.0
      %907 = vmatpush1.msra.mxu0 0.0
      %908 = vmatprep.subr.mxu0 0.0
      %909 = vmatpush1.msra.mxu0 %v876
      %910 = vmatprep.subr.mxu0 0.0
      %911 = vmatpush2.msra.mxu0 0.0
      %912 = vmatprep.subr.mxu0 0.0
      %913 = vmatpush2.msra.mxu0 0.0
      %914 = vmatprep.subr.mxu0 0.0
      %915 = vmatpush2.msra.mxu0 0.0
      %916 = vmatprep.subr.mxu0 0.0
      %917 = vmatpush2.msra.mxu0 0.0
      %918 = vmatprep.subr.mxu0 0.0
      %919 = vmatpush2.msra.mxu0 0.0
      %920 = vmatprep.subr.mxu0 0.0
      %921 = vmatpush2.msra.mxu0 0.0
      %922 = vmatprep.subr.mxu0 0.0
      %923 = vmatpush2.msra.mxu0 0.0
      %924 = vmatprep.subr.mxu0 0.0
      %925 = vmatpush2.msra.mxu0 0.0
      %926 = vmatprep.subr.mxu0 0.0
      %927 = vmatpush2.msra.mxu0 0.0
      %928 = vmatprep.subr.mxu0 0.0
      %929 = vmatpush2.msra.mxu0 0.0
      %930 = vmatprep.subr.mxu0 0.0
      %931 = vmatpush2.msra.mxu0 0.0
      %932 = vmatprep.subr.mxu0 0.0
      %933 = vmatpush2.msra.mxu0 0.0
      %934 = vmatprep.subr.mxu0 0.0
      %935 = vmatpush2.msra.mxu0 0.0
      %936 = vmatprep.subr.mxu0 0.0
      %937 = vmatpush2.msra.mxu0 0.0
      %938 = vmatprep.subr.mxu0 0.0
      %939 = vmatpush2.msra.mxu0 0.0
      %940 = vmatprep.subr.mxu0 0.0
      %941 = vmatpush2.msra.mxu0 0.0
      %942 = vmatprep.mubr.f32.mxu0 0.0
      %943 = vmatmul.mubr.f32.gmra.mxu0 %v869
      %v944 = vpop.f32.mrf.mxu0
      %v945 = vadd.f32 0.0, %v944
      %v946 = vpop.f32.mrf.mxu0
      %947 = vmatprep.mubr.f32.mxu0 0.0
      %948 = vmatmul.mubr.f32.gmra.mxu0 %v872
      %v949 = vpop.f32.mrf.mxu0
      %v950 = vadd.f32 0.0, %v949
      %v951 = vpop.f32.mrf.mxu0
      %952 = vdwg.mxu0
      %v953 = vld [vmem:[%s4] sm:$0x1]
      %v954 = vlaneseq
      %v955 = vshrl.u32 %v954, 7
      %v956 = vsub.s32 0, %v955
      %v957 = vrot.slane %v953, %v956
      %959 = vbcast.lane.b32.xlu0 %v957, 256
      %v960 = vpop.permute.xlu0 %959
      %v961 = vmul.f32 %v569, %v960
      %v962 = vmul.f32 %v570, %v960
      %v963 = vmul.f32 %v571, %v960
      %v964 = vmul.f32 %v572, %v960
      %v965 = vmul.f32 %v573, %v960
      %v966 = vmul.f32 %v574, %v960
      %v967 = vmul.f32 %v575, %v960
      %v968 = vmul.f32 %v576, %v960
      %v969 = vmul.f32 %v577, %v960
      %v970 = vmul.f32 %v578, %v960
      %v971 = vmul.f32 %v579, %v960
      %v972 = vmul.f32 %v580, %v960
      %v973 = vmul.f32 %v581, %v960
      %v974 = vmul.f32 %v582, %v960
      %v975 = vmul.f32 %v583, %v960
      %v976 = vmul.f32 %v584, %v960
      %v977 = vsel %vm833, %v961, 0.0
      %v978 = vrot.slane %v977, 4
      %v979 = vadd.f32 %v977, %v978
      %v980 = vrot.slane %v979, 2
      %v981 = vadd.f32 %v979, %v980
      %v982 = vrot.slane %v981, 1
      %v983 = vadd.f32 %v981, %v982
      %v984 = vsel %vm833, %v962, 0.0
      %v985 = vrot.slane %v984, 4
      %v986 = vadd.f32 %v984, %v985
      %v987 = vrot.slane %v986, 2
      %v988 = vadd.f32 %v986, %v987
      %v989 = vrot.slane %v988, 1
      %v990 = vadd.f32 %v988, %v989
      %v991 = vsel %vm833, %v963, 0.0
      %v992 = vrot.slane %v991, 4
      %v993 = vadd.f32 %v991, %v992
      %v994 = vrot.slane %v993, 2
      %v995 = vadd.f32 %v993, %v994
      %v996 = vrot.slane %v995, 1
      %v997 = vadd.f32 %v995, %v996
      %v998 = vsel %vm833, %v964, 0.0
      %v999 = vrot.slane %v998, 4
      %v1000 = vadd.f32 %v998, %v999
      %v1001 = vrot.slane %v1000, 2
      %v1002 = vadd.f32 %v1000, %v1001
      %v1003 = vrot.slane %v1002, 1
      %v1004 = vadd.f32 %v1002, %v1003
      %v1005 = vsel %vm833, %v965, 0.0
      %v1006 = vrot.slane %v1005, 4
      %v1007 = vadd.f32 %v1005, %v1006
      %v1008 = vrot.slane %v1007, 2
      %v1009 = vadd.f32 %v1007, %v1008
      %v1010 = vrot.slane %v1009, 1
      %v1011 = vadd.f32 %v1009, %v1010
      %v1012 = vsel %vm833, %v966, 0.0
      %v1013 = vrot.slane %v1012, 4
      %v1014 = vadd.f32 %v1012, %v1013
      %v1015 = vrot.slane %v1014, 2
      %v1016 = vadd.f32 %v1014, %v1015
      %v1017 = vrot.slane %v1016, 1
      %v1018 = vadd.f32 %v1016, %v1017
      %v1019 = vsel %vm833, %v967, 0.0
      %v1020 = vrot.slane %v1019, 4
      %v1021 = vadd.f32 %v1019, %v1020
      %v1022 = vrot.slane %v1021, 2
      %v1023 = vadd.f32 %v1021, %v1022
      %v1024 = vrot.slane %v1023, 1
      %v1025 = vadd.f32 %v1023, %v1024
      %v1026 = vsel %vm833, %v968, 0.0
      %v1027 = vrot.slane %v1026, 4
      %v1028 = vadd.f32 %v1026, %v1027
      %v1029 = vrot.slane %v1028, 2
      %v1030 = vadd.f32 %v1028, %v1029
      %v1031 = vrot.slane %v1030, 1
      %v1032 = vadd.f32 %v1030, %v1031
      %v1033 = vsel %vm833, %v969, 0.0
      %v1034 = vrot.slane %v1033, 4
      %v1035 = vadd.f32 %v1033, %v1034
      %v1036 = vrot.slane %v1035, 2
      %v1037 = vadd.f32 %v1035, %v1036
      %v1038 = vrot.slane %v1037, 1
      %v1039 = vadd.f32 %v1037, %v1038
      %v1040 = vsel %vm833, %v970, 0.0
      %v1041 = vrot.slane %v1040, 4
      %v1042 = vadd.f32 %v1040, %v1041
      %v1043 = vrot.slane %v1042, 2
      %v1044 = vadd.f32 %v1042, %v1043
      %v1045 = vrot.slane %v1044, 1
      %v1046 = vadd.f32 %v1044, %v1045
      %v1047 = vsel %vm833, %v971, 0.0
      %v1048 = vrot.slane %v1047, 4
      %v1049 = vadd.f32 %v1047, %v1048
      %v1050 = vrot.slane %v1049, 2
      %v1051 = vadd.f32 %v1049, %v1050
      %v1052 = vrot.slane %v1051, 1
      %v1053 = vadd.f32 %v1051, %v1052
      %v1054 = vsel %vm833, %v972, 0.0
      %v1055 = vrot.slane %v1054, 4
      %v1056 = vadd.f32 %v1054, %v1055
      %v1057 = vrot.slane %v1056, 2
      %v1058 = vadd.f32 %v1056, %v1057
      %v1059 = vrot.slane %v1058, 1
      %v1060 = vadd.f32 %v1058, %v1059
      %v1061 = vsel %vm833, %v973, 0.0
      %v1062 = vrot.slane %v1061, 4
      %v1063 = vadd.f32 %v1061, %v1062
      %v1064 = vrot.slane %v1063, 2
      %v1065 = vadd.f32 %v1063, %v1064
      %v1066 = vrot.slane %v1065, 1
      %v1067 = vadd.f32 %v1065, %v1066
      %v1068 = vsel %vm833, %v974, 0.0
      %v1069 = vrot.slane %v1068, 4
      %v1070 = vadd.f32 %v1068, %v1069
      %v1071 = vrot.slane %v1070, 2
      %v1072 = vadd.f32 %v1070, %v1071
      %v1073 = vrot.slane %v1072, 1
      %v1074 = vadd.f32 %v1072, %v1073
      %v1075 = vsel %vm833, %v975, 0.0
      %v1076 = vrot.slane %v1075, 4
      %v1077 = vadd.f32 %v1075, %v1076
      %v1078 = vrot.slane %v1077, 2
      %v1079 = vadd.f32 %v1077, %v1078
      %v1080 = vrot.slane %v1079, 1
      %v1081 = vadd.f32 %v1079, %v1080
      %v1082 = vsel %vm833, %v976, 0.0
      %v1083 = vrot.slane %v1082, 4
      %v1084 = vadd.f32 %v1082, %v1083
      %v1085 = vrot.slane %v1084, 2
      %v1086 = vadd.f32 %v1084, %v1085
      %v1087 = vrot.slane %v1086, 1
      %v1088 = vadd.f32 %v1086, %v1087
      %v1089 = vld [vmem:[%s6] sm:$0xff]
      %v1090 = vld [vmem:[%s5] sm:$0xff]
      %1091 = vxpose.xlu0.b32.start [1/16] %v945, 128
      %1092 = vxpose.xlu0.b32.cont [2/16] %v950, 128
      %1093 = vxpose.xlu0.b32.cont [3/16] 0.0, 128
      %1094 = vxpose.xlu0.b32.cont [4/16] 0.0, 128
      %1095 = vxpose.xlu0.b32.cont [5/16] 0.0, 128
      %1096 = vxpose.xlu0.b32.cont [6/16] 0.0, 128
      %1097 = vxpose.xlu0.b32.cont [7/16] 0.0, 128
      %1098 = vxpose.xlu0.b32.cont [8/16] 0.0, 128
      %1099 = vxpose.xlu0.b32.cont [9/16] 0.0, 128
      %1100 = vxpose.xlu0.b32.cont [10/16] 0.0, 128
      %1101 = vxpose.xlu0.b32.cont [11/16] 0.0, 128
      %1102 = vxpose.xlu0.b32.cont [12/16] 0.0, 128
      %1103 = vxpose.xlu0.b32.cont [13/16] 0.0, 128
      %1104 = vxpose.xlu0.b32.cont [14/16] 0.0, 128
      %1105 = vxpose.xlu0.b32.cont [15/16] 0.0, 128
      %1106 = vxpose.xlu0.b32.end [16/16] 0.0, 128
      %v1107 = vpop.trf.xlu0
      %v1108 = vpop.trf.xlu0
      %v1109 = vpop.trf.xlu0
      %v1110 = vpop.trf.xlu0
      %v1111 = vpop.trf.xlu0
      %v1112 = vpop.trf.xlu0
      %v1113 = vpop.trf.xlu0
      %v1114 = vpop.trf.xlu0
      %v1115 = vpop.trf.xlu0
      %v1116 = vpop.trf.xlu0
      %v1117 = vpop.trf.xlu0
      %v1118 = vpop.trf.xlu0
      %v1119 = vpop.trf.xlu0
      %v1120 = vpop.trf.xlu0
      %v1121 = vpop.trf.xlu0
      %v1122 = vpop.trf.xlu0
      %vm1139 = vcmask 1041409
      %v1140 = vsel %vm1139, %v990, %v983
      %vm1141 = vcmask 1042434
      %v1142 = vsel %vm1141, %v997, %v1140
      %vm1143 = vcmask 1043459
      %v1144 = vsel %vm1143, %v1004, %v1142
      %vm1145 = vcmask 1044484
      %v1146 = vsel %vm1145, %v1011, %v1144
      %vm1147 = vcmask 1045509
      %v1148 = vsel %vm1147, %v1018, %v1146
      %vm1149 = vcmask 1046534
      %v1150 = vsel %vm1149, %v1025, %v1148
      %vm1151 = vcmask 1047559
      %v1152 = vsel %vm1151, %v1032, %v1150
      %v1153 = vsel %vm1139, %v1046, %v1039
      %v1154 = vsel %vm1141, %v1053, %v1153
      %v1155 = vsel %vm1143, %v1060, %v1154
      %v1156 = vsel %vm1145, %v1067, %v1155
      %v1157 = vsel %vm1147, %v1074, %v1156
      %v1158 = vsel %vm1149, %v1081, %v1157
      %v1159 = vsel %vm1151, %v1088, %v1158
      %vm1162 = vcmask 130048
      %v1164 = vsel %vm1162, %v1107, 0
      %1166 = vmatprep.subr.mxu0 0.0
      %1167 = vmatpush1.msra.mxu0 0.0
      %1168 = vmatprep.subr.mxu0 0.0
      %1169 = vmatpush1.msra.mxu0 0.0
      %1170 = vmatprep.subr.mxu0 0.0
      %1171 = vmatpush1.msra.mxu0 0.0
      %1172 = vmatprep.subr.mxu0 0.0
      %1173 = vmatpush1.msra.mxu0 0.0
      %1174 = vmatprep.subr.mxu0 0.0
      %1175 = vmatpush1.msra.mxu0 0.0
      %1176 = vmatprep.subr.mxu0 0.0
      %1177 = vmatpush1.msra.mxu0 0.0
      %1178 = vmatprep.subr.mxu0 0.0
      %1179 = vmatpush1.msra.mxu0 0.0
      %1180 = vmatprep.subr.mxu0 0.0
      %1181 = vmatpush1.msra.mxu0 0.0
      %1182 = vmatprep.subr.mxu0 0.0
      %1183 = vmatpush1.msra.mxu0 0.0
      %1184 = vmatprep.subr.mxu0 0.0
      %1185 = vmatpush1.msra.mxu0 0.0
      %1186 = vmatprep.subr.mxu0 0.0
      %1187 = vmatpush1.msra.mxu0 0.0
      %1188 = vmatprep.subr.mxu0 0.0
      %1189 = vmatpush1.msra.mxu0 0.0
      %1190 = vmatprep.subr.mxu0 0.0
      %1191 = vmatpush1.msra.mxu0 0.0
      %1192 = vmatprep.subr.mxu0 0.0
      %1193 = vmatpush1.msra.mxu0 0.0
      %1194 = vmatprep.subr.mxu0 0.0
      %1195 = vmatpush1.msra.mxu0 %v1159
      %1196 = vmatprep.subr.mxu0 0.0
      %1197 = vmatpush1.msra.mxu0 %v1152
      %1198 = vmatprep.subr.mxu0 0.0
      %1199 = vmatpush2.msra.mxu0 0.0
      %1200 = vmatprep.subr.mxu0 0.0
      %1201 = vmatpush2.msra.mxu0 0.0
      %1202 = vmatprep.subr.mxu0 0.0
      %1203 = vmatpush2.msra.mxu0 0.0
      %1204 = vmatprep.subr.mxu0 0.0
      %1205 = vmatpush2.msra.mxu0 0.0
      %1206 = vmatprep.subr.mxu0 0.0
      %1207 = vmatpush2.msra.mxu0 0.0
      %1208 = vmatprep.subr.mxu0 0.0
      %1209 = vmatpush2.msra.mxu0 0.0
      %1210 = vmatprep.subr.mxu0 0.0
      %1211 = vmatpush2.msra.mxu0 0.0
      %1212 = vmatprep.subr.mxu0 0.0
      %1213 = vmatpush2.msra.mxu0 0.0
      %1214 = vmatprep.subr.mxu0 0.0
      %1215 = vmatpush2.msra.mxu0 0.0
      %1216 = vmatprep.subr.mxu0 0.0
      %1217 = vmatpush2.msra.mxu0 0.0
      %1218 = vmatprep.subr.mxu0 0.0
      %1219 = vmatpush2.msra.mxu0 0.0
      %1220 = vmatprep.subr.mxu0 0.0
      %1221 = vmatpush2.msra.mxu0 0.0
      %1222 = vmatprep.subr.mxu0 0.0
      %1223 = vmatpush2.msra.mxu0 0.0
      %1224 = vmatprep.subr.mxu0 0.0
      %1225 = vmatpush2.msra.mxu0 0.0
      %1226 = vmatprep.subr.mxu0 0.0
      %1227 = vmatpush2.msra.mxu0 0.0
      %1228 = vmatprep.subr.mxu0 0.0
      %1229 = vmatpush2.msra.mxu0 0.0
      %1230 = vmatprep.mubr.f32.mxu0 0.0
      %1231 = vmatmul.mubr.f32.gmra.mxu0 %v1164
      %v1232 = vpop.f32.mrf.mxu0
      %v1233 = vadd.f32 %v1090, %v1232
      %v1234 = vpop.f32.mrf.mxu0
      %1235 = vdwg.mxu0
      %v1236 = vxor.u32 %v1233, 2147483648
      %v1237 = vmul.f32 %v1236, 1.442695
      %v1238 = vpow.pop %v1237
      %v1239 = vadd.f32 %v1238, 1.0
      %v1240 = vrcp.pop %v1239
      %v1241 = vmul.f32 1.0, %v1240
      %vm1242 = vcmask 64512
      %v1244 = vsel %vm1242, %v1089, 0
      %1246 = vmatprep.subr.mxu0 0.0
      %1247 = vmatpush1.msra.mxu0 0.0
      %1248 = vmatprep.subr.mxu0 0.0
      %1249 = vmatpush1.msra.mxu0 0.0
      %1250 = vmatprep.subr.mxu0 0.0
      %1251 = vmatpush1.msra.mxu0 0.0
      %1252 = vmatprep.subr.mxu0 0.0
      %1253 = vmatpush1.msra.mxu0 0.0
      %1254 = vmatprep.subr.mxu0 0.0
      %1255 = vmatpush1.msra.mxu0 0.0
      %1256 = vmatprep.subr.mxu0 0.0
      %1257 = vmatpush1.msra.mxu0 0.0
      %1258 = vmatprep.subr.mxu0 0.0
      %1259 = vmatpush1.msra.mxu0 0.0
      %1260 = vmatprep.subr.mxu0 0.0
      %1261 = vmatpush1.msra.mxu0 0.0
      %1262 = vmatprep.subr.mxu0 0.0
      %1263 = vmatpush1.msra.mxu0 0.0
      %1264 = vmatprep.subr.mxu0 0.0
      %1265 = vmatpush1.msra.mxu0 0.0
      %1266 = vmatprep.subr.mxu0 0.0
      %1267 = vmatpush1.msra.mxu0 0.0
      %1268 = vmatprep.subr.mxu0 0.0
      %1269 = vmatpush1.msra.mxu0 0.0
      %1270 = vmatprep.subr.mxu0 0.0
      %1271 = vmatpush1.msra.mxu0 0.0
      %1272 = vmatprep.subr.mxu0 0.0
      %1273 = vmatpush1.msra.mxu0 0.0
      %1274 = vmatprep.subr.mxu0 0.0
      %1275 = vmatpush1.msra.mxu0 0.0
      %1276 = vmatprep.subr.mxu0 0.0
      %1277 = vmatpush1.msra.mxu0 %v1241
      %1278 = vmatprep.subr.mxu0 0.0
      %1279 = vmatpush2.msra.mxu0 0.0
      %1280 = vmatprep.subr.mxu0 0.0
      %1281 = vmatpush2.msra.mxu0 0.0
      %1282 = vmatprep.subr.mxu0 0.0
      %1283 = vmatpush2.msra.mxu0 0.0
      %1284 = vmatprep.subr.mxu0 0.0
      %1285 = vmatpush2.msra.mxu0 0.0
      %1286 = vmatprep.subr.mxu0 0.0
      %1287 = vmatpush2.msra.mxu0 0.0
      %1288 = vmatprep.subr.mxu0 0.0
      %1289 = vmatpush2.msra.mxu0 0.0
      %1290 = vmatprep.subr.mxu0 0.0
      %1291 = vmatpush2.msra.mxu0 0.0
      %1292 = vmatprep.subr.mxu0 0.0
      %1293 = vmatpush2.msra.mxu0 0.0
      %1294 = vmatprep.subr.mxu0 0.0
      %1295 = vmatpush2.msra.mxu0 0.0
      %1296 = vmatprep.subr.mxu0 0.0
      %1297 = vmatpush2.msra.mxu0 0.0
      %1298 = vmatprep.subr.mxu0 0.0
      %1299 = vmatpush2.msra.mxu0 0.0
      %1300 = vmatprep.subr.mxu0 0.0
      %1301 = vmatpush2.msra.mxu0 0.0
      %1302 = vmatprep.subr.mxu0 0.0
      %1303 = vmatpush2.msra.mxu0 0.0
      %1304 = vmatprep.subr.mxu0 0.0
      %1305 = vmatpush2.msra.mxu0 0.0
      %1306 = vmatprep.subr.mxu0 0.0
      %1307 = vmatpush2.msra.mxu0 0.0
      %1308 = vmatprep.subr.mxu0 0.0
      %1309 = vmatpush2.msra.mxu0 0.0
      %1310 = vmatprep.mubr.f32.mxu0 0.0
      %1311 = vmatmul.mubr.f32.gmra.mxu0 %v1244
      %v1312 = vpop.f32.mrf.mxu0
      %v1313 = vadd.f32 0.0, %v1312
      %v1314 = vpop.f32.mrf.mxu0
      %1315 = vdwg.mxu0
      %v1316 = vsel %vm1242, %v1313, -inf
      %v1317 = vrot.slane %v1316, 4
      %v1318 = vmax.f32 %v1316, %v1317
      %v1319 = vrot.slane %v1318, 2
      %v1320 = vmax.f32 %v1318, %v1319
      %v1321 = vrot.slane %v1320, 1
      %v1322 = vmax.f32 %v1320, %v1321
      %v1323 = vsub.f32 %v1313, %v1322
      %v1324 = vmul.f32 %v1323, 1.442695
      %v1325 = vpow.pop %v1324
      %v1326 = vsel %vm1242, %v1325, 0.0
      %v1327 = vrot.slane %v1326, 4
      %v1328 = vadd.f32 %v1326, %v1327
      %v1329 = vrot.slane %v1328, 2
      %v1330 = vadd.f32 %v1328, %v1329
      %v1331 = vrot.slane %v1330, 1
      %v1332 = vadd.f32 %v1330, %v1331
      %v1333 = vrcp.pop %v1332
      %v1334 = vmul.f32 %v1325, %v1333
      %vm1335 = vcmask 261120
      %1336 = vst.msk [vmem:[#allocation2] sm:$0xff] %vm1335, 0.0
      %1337 = vst.msk [vmem:[#allocation2 + $0x8] sm:$0xff] %vm1335, 0.0
      %1338 = vst.msk [vmem:[#allocation2 + $0x10] sm:$0xff] %vm1335, 0.0
      %1339 = vst.msk [vmem:[#allocation2 + $0x18] sm:$0xff] %vm1335, 0.0
      %1340 = vst.msk [vmem:[#allocation2] sm:$0xff] %vm1242, %v1334
      %1342 = vrot.lane.b32.xlu0 %v1334, 8
      %v1343 = vpop.permute.xlu0 %1342
      %vm1345 = vcmask 130112
      %1346 = vst.msk [vmem:[#allocation2 + $0x8] sm:$0xff] %vm1345, %v1343
      %1347 = vrot.lane.b32.xlu0 %v1334, 16
      %v1348 = vpop.permute.xlu0 %1347
      %vm1350 = vcmask 195712
      %1351 = vst.msk [vmem:[#allocation2 + $0x10] sm:$0xff] %vm1350, %v1348
      %1352 = vrot.lane.b32.xlu0 %v1334, 24
      %v1353 = vpop.permute.xlu0 %1352
      %vm1355 = vcmask 261312
      %1356 = vst.msk [vmem:[#allocation2 + $0x18] sm:$0xff] %vm1355, %v1353
      %v1357 = vld [vmem:[%s7] sm:$0xff]
      %v1358 = vld [vmem:[%s7 + $0x8] sm:$0xff]
      %v1359 = vld [vmem:[%s7 + $0x10] sm:$0xff]
      %v1360 = vld [vmem:[%s7 + $0x18] sm:$0xff]
      %v1361 = vld [vmem:[%s7 + $0x20] sm:$0xff]
      %v1362 = vld [vmem:[%s7 + $0x28] sm:$0xff]
      %v1363 = vld [vmem:[%s7 + $0x30] sm:$0xff]
      %v1364 = vld [vmem:[%s7 + $0x38] sm:$0xff]
      %v1365 = vld [vmem:[%s7 + $0x40] sm:$0xff]
      %v1366 = vld [vmem:[%s7 + $0x48] sm:$0xff]
      %v1367 = vld [vmem:[%s7 + $0x50] sm:$0xff]
      %v1368 = vld [vmem:[%s7 + $0x58] sm:$0xff]
      %v1369 = vld [vmem:[%s7 + $0x60] sm:$0xff]
      %v1370 = vld [vmem:[%s7 + $0x68] sm:$0xff]
      %v1371 = vld [vmem:[%s7 + $0x70] sm:$0xff]
      %v1372 = vld [vmem:[%s7 + $0x78] sm:$0xff]
      %v1373 = vld [vmem:[%s7 + $0x80] sm:$0xff]
      %v1374 = vld [vmem:[%s7 + $0x88] sm:$0xff]
      %v1376 = vsel %vm1162, %v1357, 0
      %v1379 = vsel %vm1162, %v1358, 0
      %v1382 = vsel %vm1162, %v1359, 0
      %v1385 = vsel %vm1162, %v1360, 0
      %v1388 = vsel %vm1162, %v1361, 0
      %v1391 = vsel %vm1162, %v1362, 0
      %v1394 = vsel %vm1162, %v1363, 0
      %v1397 = vsel %vm1162, %v1364, 0
      %v1400 = vsel %vm1162, %v1365, 0
      %v1403 = vsel %vm1162, %v1366, 0
      %v1406 = vsel %vm1162, %v1367, 0
      %v1409 = vsel %vm1162, %v1368, 0
      %v1412 = vsel %vm1162, %v1369, 0
      %v1415 = vsel %vm1162, %v1370, 0
      %v1418 = vsel %vm1162, %v1371, 0
      %v1421 = vsel %vm1162, %v1372, 0
      %v1424 = vsel %vm1162, %v1373, 0
      %v1427 = vsel %vm1162, %v1374, 0
      %1429 = vmatprep.subr.mxu0 0.0
      %1430 = vmatpush1.msra.mxu0 0.0
      %1431 = vmatprep.subr.mxu0 0.0
      %1432 = vmatpush1.msra.mxu0 0.0
      %1433 = vmatprep.subr.mxu0 0.0
      %1434 = vmatpush1.msra.mxu0 0.0
      %1435 = vmatprep.subr.mxu0 0.0
      %1436 = vmatpush1.msra.mxu0 0.0
      %1437 = vmatprep.subr.mxu0 0.0
      %1438 = vmatpush1.msra.mxu0 0.0
      %1439 = vmatprep.subr.mxu0 0.0
      %1440 = vmatpush1.msra.mxu0 0.0
      %1441 = vmatprep.subr.mxu0 0.0
      %1442 = vmatpush1.msra.mxu0 0.0
      %1443 = vmatprep.subr.mxu0 0.0
      %1444 = vmatpush1.msra.mxu0 0.0
      %1445 = vmatprep.subr.mxu0 0.0
      %1446 = vmatpush1.msra.mxu0 0.0
      %1447 = vmatprep.subr.mxu0 0.0
      %1448 = vmatpush1.msra.mxu0 0.0
      %1449 = vmatprep.subr.mxu0 0.0
      %1450 = vmatpush1.msra.mxu0 0.0
      %1451 = vmatprep.subr.mxu0 0.0
      %1452 = vmatpush1.msra.mxu0 0.0
      %1453 = vmatprep.subr.mxu0 0.0
      %1454 = vmatpush1.msra.mxu0 0.0
      %1455 = vmatprep.subr.mxu0 0.0
      %1456 = vmatpush1.msra.mxu0 0.0
      %1457 = vmatprep.subr.mxu0 0.0
      %1458 = vmatpush1.msra.mxu0 %v586
      %1459 = vmatprep.subr.mxu0 0.0
      %1460 = vmatpush1.msra.mxu0 %v585
      %1461 = vmatprep.subr.mxu0 0.0
      %1462 = vmatpush2.msra.mxu0 0.0
      %1463 = vmatprep.subr.mxu0 0.0
      %1464 = vmatpush2.msra.mxu0 0.0
      %1465 = vmatprep.subr.mxu0 0.0
      %1466 = vmatpush2.msra.mxu0 0.0
      %1467 = vmatprep.subr.mxu0 0.0
      %1468 = vmatpush2.msra.mxu0 0.0
      %1469 = vmatprep.subr.mxu0 0.0
      %1470 = vmatpush2.msra.mxu0 0.0
      %1471 = vmatprep.subr.mxu0 0.0
      %1472 = vmatpush2.msra.mxu0 0.0
      %1473 = vmatprep.subr.mxu0 0.0
      %1474 = vmatpush2.msra.mxu0 0.0
      %1475 = vmatprep.subr.mxu0 0.0
      %1476 = vmatpush2.msra.mxu0 0.0
      %1477 = vmatprep.subr.mxu0 0.0
      %1478 = vmatpush2.msra.mxu0 0.0
      %1479 = vmatprep.subr.mxu0 0.0
      %1480 = vmatpush2.msra.mxu0 0.0
      %1481 = vmatprep.subr.mxu0 0.0
      %1482 = vmatpush2.msra.mxu0 0.0
      %1483 = vmatprep.subr.mxu0 0.0
      %1484 = vmatpush2.msra.mxu0 0.0
      %1485 = vmatprep.subr.mxu0 0.0
      %1486 = vmatpush2.msra.mxu0 0.0
      %1487 = vmatprep.subr.mxu0 0.0
      %1488 = vmatpush2.msra.mxu0 0.0
      %1489 = vmatprep.subr.mxu0 0.0
      %1490 = vmatpush2.msra.mxu0 0.0
      %1491 = vmatprep.subr.mxu0 0.0
      %1492 = vmatpush2.msra.mxu0 0.0
      %1493 = vmatprep.mubr.f32.mxu0 0.0
      %1494 = vmatmul.mubr.f32.gmra.mxu0 %v1376
      %v1495 = vpop.f32.mrf.mxu0
      %v1496 = vadd.f32 0.0, %v1495
      %v1497 = vpop.f32.mrf.mxu0
      %1498 = vmatprep.mubr.f32.mxu0 0.0
      %1499 = vmatmul.mubr.f32.gmra.mxu0 %v1379
      %v1500 = vpop.f32.mrf.mxu0
      %v1501 = vadd.f32 0.0, %v1500
      %v1502 = vpop.f32.mrf.mxu0
      %1503 = vmatprep.mubr.f32.mxu0 0.0
      %1504 = vmatmul.mubr.f32.gmra.mxu0 %v1382
      %v1505 = vpop.f32.mrf.mxu0
      %v1506 = vadd.f32 0.0, %v1505
      %v1507 = vpop.f32.mrf.mxu0
      %1508 = vmatprep.mubr.f32.mxu0 0.0
      %1509 = vmatmul.mubr.f32.gmra.mxu0 %v1385
      %v1510 = vpop.f32.mrf.mxu0
      %v1511 = vadd.f32 0.0, %v1510
      %v1512 = vpop.f32.mrf.mxu0
      %1513 = vmatprep.mubr.f32.mxu0 0.0
      %1514 = vmatmul.mubr.f32.gmra.mxu0 %v1388
      %v1515 = vpop.f32.mrf.mxu0
      %v1516 = vadd.f32 0.0, %v1515
      %v1517 = vpop.f32.mrf.mxu0
      %1518 = vmatprep.mubr.f32.mxu0 0.0
      %1519 = vmatmul.mubr.f32.gmra.mxu0 %v1391
      %v1520 = vpop.f32.mrf.mxu0
      %v1521 = vadd.f32 0.0, %v1520
      %v1522 = vpop.f32.mrf.mxu0
      %1523 = vmatprep.mubr.f32.mxu0 0.0
      %1524 = vmatmul.mubr.f32.gmra.mxu0 %v1394
      %v1525 = vpop.f32.mrf.mxu0
      %v1526 = vadd.f32 0.0, %v1525
      %v1527 = vpop.f32.mrf.mxu0
      %1528 = vmatprep.mubr.f32.mxu0 0.0
      %1529 = vmatmul.mubr.f32.gmra.mxu0 %v1397
      %v1530 = vpop.f32.mrf.mxu0
      %v1531 = vadd.f32 0.0, %v1530
      %v1532 = vpop.f32.mrf.mxu0
      %1533 = vmatprep.mubr.f32.mxu0 0.0
      %1534 = vmatmul.mubr.f32.gmra.mxu0 %v1400
      %v1535 = vpop.f32.mrf.mxu0
      %v1536 = vadd.f32 0.0, %v1535
      %v1537 = vpop.f32.mrf.mxu0
      %1538 = vmatprep.mubr.f32.mxu0 0.0
      %1539 = vmatmul.mubr.f32.gmra.mxu0 %v1403
      %v1540 = vpop.f32.mrf.mxu0
      %v1541 = vadd.f32 0.0, %v1540
      %v1542 = vpop.f32.mrf.mxu0
      %1543 = vmatprep.mubr.f32.mxu0 0.0
      %1544 = vmatmul.mubr.f32.gmra.mxu0 %v1406
      %v1545 = vpop.f32.mrf.mxu0
      %v1546 = vadd.f32 0.0, %v1545
      %v1547 = vpop.f32.mrf.mxu0
      %1548 = vmatprep.mubr.f32.mxu0 0.0
      %1549 = vmatmul.mubr.f32.gmra.mxu0 %v1409
      %v1550 = vpop.f32.mrf.mxu0
      %v1551 = vadd.f32 0.0, %v1550
      %v1552 = vpop.f32.mrf.mxu0
      %1553 = vmatprep.mubr.f32.mxu0 0.0
      %1554 = vmatmul.mubr.f32.gmra.mxu0 %v1412
      %v1555 = vpop.f32.mrf.mxu0
      %v1556 = vadd.f32 0.0, %v1555
      %v1557 = vpop.f32.mrf.mxu0
      %1558 = vmatprep.mubr.f32.mxu0 0.0
      %1559 = vmatmul.mubr.f32.gmra.mxu0 %v1415
      %v1560 = vpop.f32.mrf.mxu0
      %v1561 = vadd.f32 0.0, %v1560
      %v1562 = vpop.f32.mrf.mxu0
      %1563 = vmatprep.mubr.f32.mxu0 0.0
      %1564 = vmatmul.mubr.f32.gmra.mxu0 %v1418
      %v1565 = vpop.f32.mrf.mxu0
      %v1566 = vadd.f32 0.0, %v1565
      %v1567 = vpop.f32.mrf.mxu0
      %1568 = vmatprep.mubr.f32.mxu0 0.0
      %1569 = vmatmul.mubr.f32.gmra.mxu0 %v1421
      %v1570 = vpop.f32.mrf.mxu0
      %v1571 = vadd.f32 0.0, %v1570
      %v1572 = vpop.f32.mrf.mxu0
      %1573 = vmatprep.mubr.f32.mxu0 0.0
      %1574 = vmatmul.mubr.f32.gmra.mxu0 %v1424
      %v1575 = vpop.f32.mrf.mxu0
      %v1576 = vadd.f32 0.0, %v1575
      %v1577 = vpop.f32.mrf.mxu0
      %1578 = vmatprep.mubr.f32.mxu0 0.0
      %1579 = vmatmul.mubr.f32.gmra.mxu0 %v1427
      %v1580 = vpop.f32.mrf.mxu0
      %v1581 = vadd.f32 0.0, %v1580
      %v1582 = vpop.f32.mrf.mxu0
      %1583 = vdwg.mxu0
      %v1584 = vld [vmem:[#allocation2] sm:$0xff]
      %v1585 = vld [vmem:[#allocation2 + $0x8] sm:$0xff]
      %v1586 = vld [vmem:[#allocation2 + $0x10] sm:$0xff]
      %v1587 = vld [vmem:[#allocation2 + $0x18] sm:$0xff]
      %v1589 = vsel %vm1335, %v1496, 0
      %v1592 = vsel %vm1335, %v1501, 0
      %v1595 = vsel %vm1335, %v1506, 0
      %v1598 = vsel %vm1335, %v1511, 0
      %v1601 = vsel %vm1335, %v1516, 0
      %v1604 = vsel %vm1335, %v1521, 0
      %v1607 = vsel %vm1335, %v1526, 0
      %v1610 = vsel %vm1335, %v1531, 0
      %v1613 = vsel %vm1335, %v1536, 0
      %v1616 = vsel %vm1335, %v1541, 0
      %v1619 = vsel %vm1335, %v1546, 0
      %v1622 = vsel %vm1335, %v1551, 0
      %v1625 = vsel %vm1335, %v1556, 0
      %v1628 = vsel %vm1335, %v1561, 0
      %v1631 = vsel %vm1335, %v1566, 0
      %v1634 = vsel %vm1335, %v1571, 0
      %v1637 = vsel %vm1335, %v1576, 0
      %v1640 = vsel %vm1335, %v1581, 0
      %1642 = vmatprep.subr.mxu0 0.0
      %1643 = vmatpush1.msra.mxu0 0.0
      %1644 = vmatprep.subr.mxu0 0.0
      %1645 = vmatpush1.msra.mxu0 0.0
      %1646 = vmatprep.subr.mxu0 0.0
      %1647 = vmatpush1.msra.mxu0 0.0
      %1648 = vmatprep.subr.mxu0 0.0
      %1649 = vmatpush1.msra.mxu0 0.0
      %1650 = vmatprep.subr.mxu0 0.0
      %1651 = vmatpush1.msra.mxu0 0.0
      %1652 = vmatprep.subr.mxu0 0.0
      %1653 = vmatpush1.msra.mxu0 0.0
      %1654 = vmatprep.subr.mxu0 0.0
      %1655 = vmatpush1.msra.mxu0 0.0
      %1656 = vmatprep.subr.mxu0 0.0
      %1657 = vmatpush1.msra.mxu0 0.0
      %1658 = vmatprep.subr.mxu0 0.0
      %1659 = vmatpush1.msra.mxu0 0.0
      %1660 = vmatprep.subr.mxu0 0.0
      %1661 = vmatpush1.msra.mxu0 0.0
      %1662 = vmatprep.subr.mxu0 0.0
      %1663 = vmatpush1.msra.mxu0 0.0
      %1664 = vmatprep.subr.mxu0 0.0
      %1665 = vmatpush1.msra.mxu0 0.0
      %1666 = vmatprep.subr.mxu0 0.0
      %1667 = vmatpush1.msra.mxu0 %v1587
      %1668 = vmatprep.subr.mxu0 0.0
      %1669 = vmatpush1.msra.mxu0 %v1586
      %1670 = vmatprep.subr.mxu0 0.0
      %1671 = vmatpush1.msra.mxu0 %v1585
      %1672 = vmatprep.subr.mxu0 0.0
      %1673 = vmatpush1.msra.mxu0 %v1584
      %1674 = vmatprep.subr.mxu0 0.0
      %1675 = vmatpush2.msra.mxu0 0.0
      %1676 = vmatprep.subr.mxu0 0.0
      %1677 = vmatpush2.msra.mxu0 0.0
      %1678 = vmatprep.subr.mxu0 0.0
      %1679 = vmatpush2.msra.mxu0 0.0
      %1680 = vmatprep.subr.mxu0 0.0
      %1681 = vmatpush2.msra.mxu0 0.0
      %1682 = vmatprep.subr.mxu0 0.0
      %1683 = vmatpush2.msra.mxu0 0.0
      %1684 = vmatprep.subr.mxu0 0.0
      %1685 = vmatpush2.msra.mxu0 0.0
      %1686 = vmatprep.subr.mxu0 0.0
      %1687 = vmatpush2.msra.mxu0 0.0
      %1688 = vmatprep.subr.mxu0 0.0
      %1689 = vmatpush2.msra.mxu0 0.0
      %1690 = vmatprep.subr.mxu0 0.0
      %1691 = vmatpush2.msra.mxu0 0.0
      %1692 = vmatprep.subr.mxu0 0.0
      %1693 = vmatpush2.msra.mxu0 0.0
      %1694 = vmatprep.subr.mxu0 0.0
      %1695 = vmatpush2.msra.mxu0 0.0
      %1696 = vmatprep.subr.mxu0 0.0
      %1697 = vmatpush2.msra.mxu0 0.0
      %1698 = vmatprep.subr.mxu0 0.0
      %1699 = vmatpush2.msra.mxu0 0.0
      %1700 = vmatprep.subr.mxu0 0.0
      %1701 = vmatpush2.msra.mxu0 0.0
      %1702 = vmatprep.subr.mxu0 0.0
      %1703 = vmatpush2.msra.mxu0 0.0
      %1704 = vmatprep.subr.mxu0 0.0
      %1705 = vmatpush2.msra.mxu0 0.0
      %1706 = vmatprep.mubr.f32.mxu0 0.0
      %1707 = vmatmul.mubr.f32.gmra.mxu0 %v1589
      %v1708 = vpop.f32.mrf.mxu0
      %v1709 = vadd.f32 0.0, %v1708
      %v1710 = vpop.f32.mrf.mxu0
      %1711 = vmatprep.mubr.f32.mxu0 0.0
      %1712 = vmatmul.mubr.f32.gmra.mxu0 %v1592
      %v1713 = vpop.f32.mrf.mxu0
      %v1714 = vadd.f32 0.0, %v1713
      %v1715 = vpop.f32.mrf.mxu0
      %1716 = vmatprep.mubr.f32.mxu0 0.0
      %1717 = vmatmul.mubr.f32.gmra.mxu0 %v1595
      %v1718 = vpop.f32.mrf.mxu0
      %v1719 = vadd.f32 0.0, %v1718
      %v1720 = vpop.f32.mrf.mxu0
      %1721 = vmatprep.mubr.f32.mxu0 0.0
      %1722 = vmatmul.mubr.f32.gmra.mxu0 %v1598
      %v1723 = vpop.f32.mrf.mxu0
      %v1724 = vadd.f32 0.0, %v1723
      %v1725 = vpop.f32.mrf.mxu0
      %1726 = vmatprep.mubr.f32.mxu0 0.0
      %1727 = vmatmul.mubr.f32.gmra.mxu0 %v1601
      %v1728 = vpop.f32.mrf.mxu0
      %v1729 = vadd.f32 0.0, %v1728
      %v1730 = vpop.f32.mrf.mxu0
      %1731 = vmatprep.mubr.f32.mxu0 0.0
      %1732 = vmatmul.mubr.f32.gmra.mxu0 %v1604
      %v1733 = vpop.f32.mrf.mxu0
      %v1734 = vadd.f32 0.0, %v1733
      %v1735 = vpop.f32.mrf.mxu0
      %1736 = vmatprep.mubr.f32.mxu0 0.0
      %1737 = vmatmul.mubr.f32.gmra.mxu0 %v1607
      %v1738 = vpop.f32.mrf.mxu0
      %v1739 = vadd.f32 0.0, %v1738
      %v1740 = vpop.f32.mrf.mxu0
      %1741 = vmatprep.mubr.f32.mxu0 0.0
      %1742 = vmatmul.mubr.f32.gmra.mxu0 %v1610
      %v1743 = vpop.f32.mrf.mxu0
      %v1744 = vadd.f32 0.0, %v1743
      %v1745 = vpop.f32.mrf.mxu0
      %1746 = vmatprep.mubr.f32.mxu0 0.0
      %1747 = vmatmul.mubr.f32.gmra.mxu0 %v1613
      %v1748 = vpop.f32.mrf.mxu0
      %v1749 = vadd.f32 0.0, %v1748
      %v1750 = vpop.f32.mrf.mxu0
      %1751 = vmatprep.mubr.f32.mxu0 0.0
      %1752 = vmatmul.mubr.f32.gmra.mxu0 %v1616
      %v1753 = vpop.f32.mrf.mxu0
      %v1754 = vadd.f32 0.0, %v1753
      %v1755 = vpop.f32.mrf.mxu0
      %1756 = vmatprep.mubr.f32.mxu0 0.0
      %1757 = vmatmul.mubr.f32.gmra.mxu0 %v1619
      %v1758 = vpop.f32.mrf.mxu0
      %v1759 = vadd.f32 0.0, %v1758
      %v1760 = vpop.f32.mrf.mxu0
      %1761 = vmatprep.mubr.f32.mxu0 0.0
      %1762 = vmatmul.mubr.f32.gmra.mxu0 %v1622
      %v1763 = vpop.f32.mrf.mxu0
      %v1764 = vadd.f32 0.0, %v1763
      %v1765 = vpop.f32.mrf.mxu0
      %1766 = vmatprep.mubr.f32.mxu0 0.0
      %1767 = vmatmul.mubr.f32.gmra.mxu0 %v1625
      %v1768 = vpop.f32.mrf.mxu0
      %v1769 = vadd.f32 0.0, %v1768
      %v1770 = vpop.f32.mrf.mxu0
      %1771 = vmatprep.mubr.f32.mxu0 0.0
      %1772 = vmatmul.mubr.f32.gmra.mxu0 %v1628
      %v1773 = vpop.f32.mrf.mxu0
      %v1774 = vadd.f32 0.0, %v1773
      %v1775 = vpop.f32.mrf.mxu0
      %1776 = vmatprep.mubr.f32.mxu0 0.0
      %1777 = vmatmul.mubr.f32.gmra.mxu0 %v1631
      %v1778 = vpop.f32.mrf.mxu0
      %v1779 = vadd.f32 0.0, %v1778
      %v1780 = vpop.f32.mrf.mxu0
      %1781 = vmatprep.mubr.f32.mxu0 0.0
      %1782 = vmatmul.mubr.f32.gmra.mxu0 %v1634
      %v1783 = vpop.f32.mrf.mxu0
      %v1784 = vadd.f32 0.0, %v1783
      %v1785 = vpop.f32.mrf.mxu0
      %1786 = vmatprep.mubr.f32.mxu0 0.0
      %1787 = vmatmul.mubr.f32.gmra.mxu0 %v1637
      %v1788 = vpop.f32.mrf.mxu0
      %v1789 = vadd.f32 0.0, %v1788
      %v1790 = vpop.f32.mrf.mxu0
      %1791 = vmatprep.mubr.f32.mxu0 0.0
      %1792 = vmatmul.mubr.f32.gmra.mxu0 %v1640
      %v1793 = vpop.f32.mrf.mxu0
      %v1794 = vadd.f32 0.0, %v1793
      %v1795 = vpop.f32.mrf.mxu0
      %1796 = vdwg.mxu0
      %1797 = vst.msk [vmem:[#allocation3] sm:$0xff] %vm1335, %v1709
      %1798 = vst.msk [vmem:[#allocation3 + $0x8] sm:$0xff] %vm1335, %v1714
      %1801 = vrot.lane.b32.xlu0 %v1719, 32
      %v1802 = vpop.permute.xlu0 %1801
      %1803 = vrot.lane.b32.xlu0 %v1724, 32
      %v1804 = vpop.permute.xlu0 %1803
      %vm1807 = vcmask 523520
      %1808 = vst.msk [vmem:[#allocation3] sm:$0xff] %vm1807, %v1802
      %1809 = vst.msk [vmem:[#allocation3 + $0x8] sm:$0xff] %vm1807, %v1804
      %1812 = vrot.lane.b32.xlu0 %v1729, 64
      %v1813 = vpop.permute.xlu0 %1812
      %1814 = vrot.lane.b32.xlu0 %v1734, 64
      %v1815 = vpop.permute.xlu0 %1814
      %vm1818 = vcmask 785920
      %1819 = vst.msk [vmem:[#allocation3] sm:$0xff] %vm1818, %v1813
      %1820 = vst.msk [vmem:[#allocation3 + $0x8] sm:$0xff] %vm1818, %v1815
      %v1821 = vld [vmem:[#allocation3] sm:$0xff]
      %v1822 = vld [vmem:[#allocation3 + $0x8] sm:$0xff]
      %v1823 = vld [vmem:[%s8] sm:$0xff]
      %v1824 = vld [vmem:[%s8 + $0x8] sm:$0xff]
      %v1825 = vld [vmem:[%s8 + $0x10] sm:$0xff]
      %v1826 = vld [vmem:[%s8 + $0x18] sm:$0xff]
      %v1827 = vld [vmem:[%s8 + $0x20] sm:$0xff]
      %v1828 = vld [vmem:[%s8 + $0x28] sm:$0xff]
      %v1829 = vld [vmem:[%s8 + $0x30] sm:$0xff]
      %v1830 = vld [vmem:[%s8 + $0x38] sm:$0xff]
      %v1831 = vld [vmem:[%s8 + $0x40] sm:$0xff]
      %v1832 = vld [vmem:[%s8 + $0x48] sm:$0xff]
      %v1833 = vld [vmem:[%s8 + $0x50] sm:$0xff]
      %v1834 = vld [vmem:[%s8 + $0x58] sm:$0xff]
      %v1835 = vld [vmem:[%s9] sm:$0x1]
      %v1837 = vlaneseq
      %v1838 = vshrl.u32 %v1837, 7
      %v1839 = vsub.s32 0, %v1838
      %v1840 = vrot.slane %v1835, %v1839
      %vm1842 = vcmask 785408
      %v1844 = vsel %vm1842, %v1821, 0
      %v1847 = vsel %vm1842, %v1822, 0
      %1849 = vmatprep.subr.mxu0 0.0
      %1850 = vmatpush1.msra.mxu0 0.0
      %1851 = vmatprep.subr.mxu0 0.0
      %1852 = vmatpush1.msra.mxu0 0.0
      %1853 = vmatprep.subr.mxu0 0.0
      %1854 = vmatpush1.msra.mxu0 0.0
      %1855 = vmatprep.subr.mxu0 0.0
      %1856 = vmatpush1.msra.mxu0 0.0
      %1857 = vmatprep.subr.mxu0 0.0
      %1858 = vmatpush1.msra.mxu0 %v1834
      %1859 = vmatprep.subr.mxu0 0.0
      %1860 = vmatpush1.msra.mxu0 %v1833
      %1861 = vmatprep.subr.mxu0 0.0
      %1862 = vmatpush1.msra.mxu0 %v1832
      %1863 = vmatprep.subr.mxu0 0.0
      %1864 = vmatpush1.msra.mxu0 %v1831
      %1865 = vmatprep.subr.mxu0 0.0
      %1866 = vmatpush1.msra.mxu0 %v1830
      %1867 = vmatprep.subr.mxu0 0.0
      %1868 = vmatpush1.msra.mxu0 %v1829
      %1869 = vmatprep.subr.mxu0 0.0
      %1870 = vmatpush1.msra.mxu0 %v1828
      %1871 = vmatprep.subr.mxu0 0.0
      %1872 = vmatpush1.msra.mxu0 %v1827
      %1873 = vmatprep.subr.mxu0 0.0
      %1874 = vmatpush1.msra.mxu0 %v1826
      %1875 = vmatprep.subr.mxu0 0.0
      %1876 = vmatpush1.msra.mxu0 %v1825
      %1877 = vmatprep.subr.mxu0 0.0
      %1878 = vmatpush1.msra.mxu0 %v1824
      %1879 = vmatprep.subr.mxu0 0.0
      %1880 = vmatpush1.msra.mxu0 %v1823
      %1881 = vmatprep.subr.mxu0 0.0
      %1882 = vmatpush2.msra.mxu0 0.0
      %1883 = vmatprep.subr.mxu0 0.0
      %1884 = vmatpush2.msra.mxu0 0.0
      %1885 = vmatprep.subr.mxu0 0.0
      %1886 = vmatpush2.msra.mxu0 0.0
      %1887 = vmatprep.subr.mxu0 0.0
      %1888 = vmatpush2.msra.mxu0 0.0
      %1889 = vmatprep.subr.mxu0 0.0
      %1890 = vmatpush2.msra.mxu0 0.0
      %1891 = vmatprep.subr.mxu0 0.0
      %1892 = vmatpush2.msra.mxu0 0.0
      %1893 = vmatprep.subr.mxu0 0.0
      %1894 = vmatpush2.msra.mxu0 0.0
      %1895 = vmatprep.subr.mxu0 0.0
      %1896 = vmatpush2.msra.mxu0 0.0
      %1897 = vmatprep.subr.mxu0 0.0
      %1898 = vmatpush2.msra.mxu0 0.0
      %1899 = vmatprep.subr.mxu0 0.0
      %1900 = vmatpush2.msra.mxu0 0.0
      %1901 = vmatprep.subr.mxu0 0.0
      %1902 = vmatpush2.msra.mxu0 0.0
      %1903 = vmatprep.subr.mxu0 0.0
      %1904 = vmatpush2.msra.mxu0 0.0
      %1905 = vmatprep.subr.mxu0 0.0
      %1906 = vmatpush2.msra.mxu0 0.0
      %1907 = vmatprep.subr.mxu0 0.0
      %1908 = vmatpush2.msra.mxu0 0.0
      %1909 = vmatprep.subr.mxu0 0.0
      %1910 = vmatpush2.msra.mxu0 0.0
      %1911 = vmatprep.subr.mxu0 0.0
      %1912 = vmatpush2.msra.mxu0 0.0
      %1913 = vmatprep.mubr.f32.mxu0 0.0
      %1914 = vmatmul.mubr.f32.gmra.mxu0 %v1844
      %v1915 = vpop.f32.mrf.mxu0
      %v1916 = vadd.f32 %v1840, %v1915
      %v1917 = vpop.f32.mrf.mxu0
      %1918 = vmatprep.mubr.f32.mxu0 0.0
      %1919 = vmatmul.mubr.f32.gmra.mxu0 %v1847
      %v1920 = vpop.f32.mrf.mxu0
      %v1921 = vadd.f32 %v1840, %v1920
      %v1922 = vpop.f32.mrf.mxu0
      %1923 = vdwg.mxu0
      %v1924 = vmax.f32 %v1916, 0.0
      %v1925 = vmax.f32 %v1921, 0.0
      %v1926 = vadd.f32 %v1924, 0.0
      %v1927 = vadd.f32 %v1925, 0.0
      %1928 = vst.msk [vmem:[#allocation3] sm:$0xff] %vm1335, %v1739
      %1929 = vst.msk [vmem:[#allocation3 + $0x8] sm:$0xff] %vm1335, %v1744
      %1932 = vrot.lane.b32.xlu0 %v1749, 32
      %v1933 = vpop.permute.xlu0 %1932
      %1934 = vrot.lane.b32.xlu0 %v1754, 32
      %v1935 = vpop.permute.xlu0 %1934
      %1938 = vst.msk [vmem:[#allocation3] sm:$0xff] %vm1807, %v1933
      %1939 = vst.msk [vmem:[#allocation3 + $0x8] sm:$0xff] %vm1807, %v1935
      %1942 = vrot.lane.b32.xlu0 %v1759, 64
      %v1943 = vpop.permute.xlu0 %1942
      %1944 = vrot.lane.b32.xlu0 %v1764, 64
      %v1945 = vpop.permute.xlu0 %1944
      %1948 = vst.msk [vmem:[#allocation3] sm:$0xff] %vm1818, %v1943
      %1949 = vst.msk [vmem:[#allocation3 + $0x8] sm:$0xff] %vm1818, %v1945
      %v1950 = vld [vmem:[#allocation3] sm:$0xff]
      %v1951 = vld [vmem:[#allocation3 + $0x8] sm:$0xff]
      %s1952 = scalar_lea.vmem %s8, 96
      %v1953 = vld [vmem:[%s1952] sm:$0xff]
      %v1954 = vld [vmem:[%s1952 + $0x8] sm:$0xff]
      %v1955 = vld [vmem:[%s1952 + $0x10] sm:$0xff]
      %v1956 = vld [vmem:[%s1952 + $0x18] sm:$0xff]
      %v1957 = vld [vmem:[%s1952 + $0x20] sm:$0xff]
      %v1958 = vld [vmem:[%s1952 + $0x28] sm:$0xff]
      %v1959 = vld [vmem:[%s1952 + $0x30] sm:$0xff]
      %v1960 = vld [vmem:[%s1952 + $0x38] sm:$0xff]
      %v1961 = vld [vmem:[%s1952 + $0x40] sm:$0xff]
      %v1962 = vld [vmem:[%s1952 + $0x48] sm:$0xff]
      %v1963 = vld [vmem:[%s1952 + $0x50] sm:$0xff]
      %v1964 = vld [vmem:[%s1952 + $0x58] sm:$0xff]
      %s1965 = scalar_lea.vmem %s9, 1
      %v1966 = vld [vmem:[%s1965] sm:$0x1]
      %v1968 = vlaneseq
      %v1969 = vshrl.u32 %v1968, 7
      %v1970 = vsub.s32 0, %v1969
      %v1971 = vrot.slane %v1966, %v1970
      %v1974 = vsel %vm1842, %v1950, 0
      %v1977 = vsel %vm1842, %v1951, 0
      %1979 = vmatprep.subr.mxu0 0.0
      %1980 = vmatpush1.msra.mxu0 0.0
      %1981 = vmatprep.subr.mxu0 0.0
      %1982 = vmatpush1.msra.mxu0 0.0
      %1983 = vmatprep.subr.mxu0 0.0
      %1984 = vmatpush1.msra.mxu0 0.0
      %1985 = vmatprep.subr.mxu0 0.0
      %1986 = vmatpush1.msra.mxu0 0.0
      %1987 = vmatprep.subr.mxu0 0.0
      %1988 = vmatpush1.msra.mxu0 %v1964
      %1989 = vmatprep.subr.mxu0 0.0
      %1990 = vmatpush1.msra.mxu0 %v1963
      %1991 = vmatprep.subr.mxu0 0.0
      %1992 = vmatpush1.msra.mxu0 %v1962
      %1993 = vmatprep.subr.mxu0 0.0
      %1994 = vmatpush1.msra.mxu0 %v1961
      %1995 = vmatprep.subr.mxu0 0.0
      %1996 = vmatpush1.msra.mxu0 %v1960
      %1997 = vmatprep.subr.mxu0 0.0
      %1998 = vmatpush1.msra.mxu0 %v1959
      %1999 = vmatprep.subr.mxu0 0.0
      %2000 = vmatpush1.msra.mxu0 %v1958
      %2001 = vmatprep.subr.mxu0 0.0
      %2002 = vmatpush1.msra.mxu0 %v1957
      %2003 = vmatprep.subr.mxu0 0.0
      %2004 = vmatpush1.msra.mxu0 %v1956
      %2005 = vmatprep.subr.mxu0 0.0
      %2006 = vmatpush1.msra.mxu0 %v1955
      %2007 = vmatprep.subr.mxu0 0.0
      %2008 = vmatpush1.msra.mxu0 %v1954
      %2009 = vmatprep.subr.mxu0 0.0
      %2010 = vmatpush1.msra.mxu0 %v1953
      %2011 = vmatprep.subr.mxu0 0.0
      %2012 = vmatpush2.msra.mxu0 0.0
      %2013 = vmatprep.subr.mxu0 0.0
      %2014 = vmatpush2.msra.mxu0 0.0
      %2015 = vmatprep.subr.mxu0 0.0
      %2016 = vmatpush2.msra.mxu0 0.0
      %2017 = vmatprep.subr.mxu0 0.0
      %2018 = vmatpush2.msra.mxu0 0.0
      %2019 = vmatprep.subr.mxu0 0.0
      %2020 = vmatpush2.msra.mxu0 0.0
      %2021 = vmatprep.subr.mxu0 0.0
      %2022 = vmatpush2.msra.mxu0 0.0
      %2023 = vmatprep.subr.mxu0 0.0
      %2024 = vmatpush2.msra.mxu0 0.0
      %2025 = vmatprep.subr.mxu0 0.0
      %2026 = vmatpush2.msra.mxu0 0.0
      %2027 = vmatprep.subr.mxu0 0.0
      %2028 = vmatpush2.msra.mxu0 0.0
      %2029 = vmatprep.subr.mxu0 0.0
      %2030 = vmatpush2.msra.mxu0 0.0
      %2031 = vmatprep.subr.mxu0 0.0
      %2032 = vmatpush2.msra.mxu0 0.0
      %2033 = vmatprep.subr.mxu0 0.0
      %2034 = vmatpush2.msra.mxu0 0.0
      %2035 = vmatprep.subr.mxu0 0.0
      %2036 = vmatpush2.msra.mxu0 0.0
      %2037 = vmatprep.subr.mxu0 0.0
      %2038 = vmatpush2.msra.mxu0 0.0
      %2039 = vmatprep.subr.mxu0 0.0
      %2040 = vmatpush2.msra.mxu0 0.0
      %2041 = vmatprep.subr.mxu0 0.0
      %2042 = vmatpush2.msra.mxu0 0.0
      %2043 = vmatprep.mubr.f32.mxu0 0.0
      %2044 = vmatmul.mubr.f32.gmra.mxu0 %v1974
      %v2045 = vpop.f32.mrf.mxu0
      %v2046 = vadd.f32 %v1971, %v2045
      %v2047 = vpop.f32.mrf.mxu0
      %2048 = vmatprep.mubr.f32.mxu0 0.0
      %2049 = vmatmul.mubr.f32.gmra.mxu0 %v1977
      %v2050 = vpop.f32.mrf.mxu0
      %v2051 = vadd.f32 %v1971, %v2050
      %v2052 = vpop.f32.mrf.mxu0
      %2053 = vdwg.mxu0
      %v2054 = vmax.f32 %v2046, 0.0
      %v2055 = vmax.f32 %v2051, 0.0
      %v2056 = vadd.f32 %v1926, %v2054
      %v2057 = vadd.f32 %v1927, %v2055
      %2058 = vst.msk [vmem:[#allocation3] sm:$0xff] %vm1335, %v1769
      %2059 = vst.msk [vmem:[#allocation3 + $0x8] sm:$0xff] %vm1335, %v1774
      %2062 = vrot.lane.b32.xlu0 %v1779, 32
      %v2063 = vpop.permute.xlu0 %2062
      %2064 = vrot.lane.b32.xlu0 %v1784, 32
      %v2065 = vpop.permute.xlu0 %2064
      %2068 = vst.msk [vmem:[#allocation3] sm:$0xff] %vm1807, %v2063
      %2069 = vst.msk [vmem:[#allocation3 + $0x8] sm:$0xff] %vm1807, %v2065
      %2072 = vrot.lane.b32.xlu0 %v1789, 64
      %v2073 = vpop.permute.xlu0 %2072
      %2074 = vrot.lane.b32.xlu0 %v1794, 64
      %v2075 = vpop.permute.xlu0 %2074
      %2078 = vst.msk [vmem:[#allocation3] sm:$0xff] %vm1818, %v2073
      %2079 = vst.msk [vmem:[#allocation3 + $0x8] sm:$0xff] %vm1818, %v2075
      %v2080 = vld [vmem:[#allocation3] sm:$0xff]
      %v2081 = vld [vmem:[#allocation3 + $0x8] sm:$0xff]
      %s2082 = scalar_lea.vmem %s8, 192
      %v2083 = vld [vmem:[%s2082] sm:$0xff]
      %v2084 = vld [vmem:[%s2082 + $0x8] sm:$0xff]
      %v2085 = vld [vmem:[%s2082 + $0x10] sm:$0xff]
      %v2086 = vld [vmem:[%s2082 + $0x18] sm:$0xff]
      %v2087 = vld [vmem:[%s2082 + $0x20] sm:$0xff]
      %v2088 = vld [vmem:[%s2082 + $0x28] sm:$0xff]
      %v2089 = vld [vmem:[%s2082 + $0x30] sm:$0xff]
      %v2090 = vld [vmem:[%s2082 + $0x38] sm:$0xff]
      %v2091 = vld [vmem:[%s2082 + $0x40] sm:$0xff]
      %v2092 = vld [vmem:[%s2082 + $0x48] sm:$0xff]
      %v2093 = vld [vmem:[%s2082 + $0x50] sm:$0xff]
      %v2094 = vld [vmem:[%s2082 + $0x58] sm:$0xff]
      %s2095 = scalar_lea.vmem %s9, 2
      %v2096 = vld [vmem:[%s2095] sm:$0x1]
      %v2098 = vlaneseq
      %v2099 = vshrl.u32 %v2098, 7
      %v2100 = vsub.s32 0, %v2099
      %v2101 = vrot.slane %v2096, %v2100
      %v2104 = vsel %vm1842, %v2080, 0
      %v2107 = vsel %vm1842, %v2081, 0
      %2109 = vmatprep.subr.mxu0 0.0
      %2110 = vmatpush1.msra.mxu0 0.0
      %2111 = vmatprep.subr.mxu0 0.0
      %2112 = vmatpush1.msra.mxu0 0.0
      %2113 = vmatprep.subr.mxu0 0.0
      %2114 = vmatpush1.msra.mxu0 0.0
      %2115 = vmatprep.subr.mxu0 0.0
      %2116 = vmatpush1.msra.mxu0 0.0
      %2117 = vmatprep.subr.mxu0 0.0
      %2118 = vmatpush1.msra.mxu0 %v2094
      %2119 = vmatprep.subr.mxu0 0.0
      %2120 = vmatpush1.msra.mxu0 %v2093
      %2121 = vmatprep.subr.mxu0 0.0
      %2122 = vmatpush1.msra.mxu0 %v2092
      %2123 = vmatprep.subr.mxu0 0.0
      %2124 = vmatpush1.msra.mxu0 %v2091
      %2125 = vmatprep.subr.mxu0 0.0
      %2126 = vmatpush1.msra.mxu0 %v2090
      %2127 = vmatprep.subr.mxu0 0.0
      %2128 = vmatpush1.msra.mxu0 %v2089
      %2129 = vmatprep.subr.mxu0 0.0
      %2130 = vmatpush1.msra.mxu0 %v2088
      %2131 = vmatprep.subr.mxu0 0.0
      %2132 = vmatpush1.msra.mxu0 %v2087
      %2133 = vmatprep.subr.mxu0 0.0
      %2134 = vmatpush1.msra.mxu0 %v2086
      %2135 = vmatprep.subr.mxu0 0.0
      %2136 = vmatpush1.msra.mxu0 %v2085
      %2137 = vmatprep.subr.mxu0 0.0
      %2138 = vmatpush1.msra.mxu0 %v2084
      %2139 = vmatprep.subr.mxu0 0.0
      %2140 = vmatpush1.msra.mxu0 %v2083
      %2141 = vmatprep.subr.mxu0 0.0
      %2142 = vmatpush2.msra.mxu0 0.0
      %2143 = vmatprep.subr.mxu0 0.0
      %2144 = vmatpush2.msra.mxu0 0.0
      %2145 = vmatprep.subr.mxu0 0.0
      %2146 = vmatpush2.msra.mxu0 0.0
      %2147 = vmatprep.subr.mxu0 0.0
      %2148 = vmatpush2.msra.mxu0 0.0
      %2149 = vmatprep.subr.mxu0 0.0
      %2150 = vmatpush2.msra.mxu0 0.0
      %2151 = vmatprep.subr.mxu0 0.0
      %2152 = vmatpush2.msra.mxu0 0.0
      %2153 = vmatprep.subr.mxu0 0.0
      %2154 = vmatpush2.msra.mxu0 0.0
      %2155 = vmatprep.subr.mxu0 0.0
      %2156 = vmatpush2.msra.mxu0 0.0
      %2157 = vmatprep.subr.mxu0 0.0
      %2158 = vmatpush2.msra.mxu0 0.0
      %2159 = vmatprep.subr.mxu0 0.0
      %2160 = vmatpush2.msra.mxu0 0.0
      %2161 = vmatprep.subr.mxu0 0.0
      %2162 = vmatpush2.msra.mxu0 0.0
      %2163 = vmatprep.subr.mxu0 0.0
      %2164 = vmatpush2.msra.mxu0 0.0
      %2165 = vmatprep.subr.mxu0 0.0
      %2166 = vmatpush2.msra.mxu0 0.0
      %2167 = vmatprep.subr.mxu0 0.0
      %2168 = vmatpush2.msra.mxu0 0.0
      %2169 = vmatprep.subr.mxu0 0.0
      %2170 = vmatpush2.msra.mxu0 0.0
      %2171 = vmatprep.subr.mxu0 0.0
      %2172 = vmatpush2.msra.mxu0 0.0
      %2173 = vmatprep.mubr.f32.mxu0 0.0
      %2174 = vmatmul.mubr.f32.gmra.mxu0 %v2104
      %v2175 = vpop.f32.mrf.mxu0
      %v2176 = vadd.f32 %v2101, %v2175
      %v2177 = vpop.f32.mrf.mxu0
      %2178 = vmatprep.mubr.f32.mxu0 0.0
      %2179 = vmatmul.mubr.f32.gmra.mxu0 %v2107
      %v2180 = vpop.f32.mrf.mxu0
      %v2181 = vadd.f32 %v2101, %v2180
      %v2182 = vpop.f32.mrf.mxu0
      %2183 = vdwg.mxu0
      %v2184 = vmax.f32 %v2176, 0.0
      %v2185 = vmax.f32 %v2181, 0.0
      %v2186 = vadd.f32 %v2056, %v2184
      %v2187 = vadd.f32 %v2057, %v2185
      %2188 = vst.msk [vmem:[#allocation4] sm:$0xff] %vm1335, 0.0
      %2189 = vst.msk [vmem:[#allocation4 + $0x10] sm:$0xff] %vm1335, 0.0
      %2190 = vst.msk [vmem:[#allocation4 + $0x8] sm:$0xff] %vm1807, 0.0
      %2191 = vst.msk [vmem:[#allocation4 + $0x18] sm:$0xff] %vm1807, 0.0
      %2194 = vrot.lane.b32.xlu0 %v2186, 32
      %v2195 = vpop.permute.xlu0 %2194
      %2196 = vrot.lane.b32.xlu0 %v2187, 32
      %v2197 = vpop.permute.xlu0 %2196
      %vm2200 = vcmask 1047808
      %2201 = vst.msk [vmem:[#allocation4] sm:$0xff] %vm2200, %v2195
      %2202 = vst.msk [vmem:[#allocation4 + $0x8] sm:$0xff] %vm1335, %v2195
      %2203 = vst.msk [vmem:[#allocation4 + $0x10] sm:$0xff] %vm2200, %v2197
      %2204 = vst.msk [vmem:[#allocation4 + $0x18] sm:$0xff] %vm1335, %v2197
      %v2205 = vld [vmem:[#allocation4] sm:$0xff]
      %v2206 = vld [vmem:[#allocation4 + $0x10] sm:$0xff]
      %v2207 = vld [vmem:[%s10] sm:$0xff]
      %v2208 = vld [vmem:[%s10 + $0x8] sm:$0xff]
      %v2209 = vld [vmem:[%s10 + $0x10] sm:$0xff]
      %v2210 = vld [vmem:[%s10 + $0x18] sm:$0xff]
      %v2211 = vld [vmem:[%s10 + $0x20] sm:$0xff]
      %v2212 = vld [vmem:[%s10 + $0x28] sm:$0xff]
      %v2213 = vld [vmem:[%s10 + $0x30] sm:$0xff]
      %v2214 = vld [vmem:[%s10 + $0x38] sm:$0xff]
      %v2215 = vld [vmem:[%s10 + $0x40] sm:$0xff]
      %v2216 = vld [vmem:[%s10 + $0x48] sm:$0xff]
      %v2217 = vld [vmem:[%s10 + $0x50] sm:$0xff]
      %v2218 = vld [vmem:[%s10 + $0x58] sm:$0xff]
      %v2219 = vld [vmem:[%s10 + $0x60] sm:$0xff]
      %v2220 = vld [vmem:[%s10 + $0x68] sm:$0xff]
      %v2221 = vld [vmem:[%s10 + $0x70] sm:$0xff]
      %v2222 = vld [vmem:[%s10 + $0x78] sm:$0xff]
      %v2223 = vld [vmem:[%s10 + $0x80] sm:$0xff]
      %v2224 = vld [vmem:[%s10 + $0x88] sm:$0xff]
      %v2225 = vld [vmem:[%s10 + $0x90] sm:$0xff]
      %v2226 = vld [vmem:[%s10 + $0x98] sm:$0xff]
      %v2227 = vld [vmem:[%s10 + $0xa0] sm:$0xff]
      %v2228 = vld [vmem:[%s10 + $0xa8] sm:$0xff]
      %v2229 = vld [vmem:[%s10 + $0xb0] sm:$0xff]
      %v2230 = vld [vmem:[%s10 + $0xb8] sm:$0xff]
      %v2231 = vld [vmem:[%s10 + $0xc0] sm:$0xff]
      %v2232 = vld [vmem:[%s10 + $0xc8] sm:$0xff]
      %v2233 = vld [vmem:[%s10 + $0xd0] sm:$0xff]
      %v2234 = vld [vmem:[%s10 + $0xd8] sm:$0xff]
      %v2235 = vld [vmem:[%s10 + $0xe0] sm:$0xff]
      %v2236 = vld [vmem:[%s10 + $0xe8] sm:$0xff]
      %v2237 = vld [vmem:[%s10 + $0xf0] sm:$0xff]
      %v2238 = vld [vmem:[%s10 + $0xf8] sm:$0xff]
      %v2239 = vld [vmem:[#allocation4 + $0x8] sm:$0xff]
      %v2240 = vld [vmem:[#allocation4 + $0x18] sm:$0xff]
      %s2241 = scalar_lea.vmem %s10, 256
      %v2242 = vld [vmem:[%s2241] sm:$0xff]
      %v2243 = vld [vmem:[%s2241 + $0x8] sm:$0xff]
      %v2244 = vld [vmem:[%s2241 + $0x10] sm:$0xff]
      %v2245 = vld [vmem:[%s2241 + $0x18] sm:$0xff]
      %v2246 = vld [vmem:[%s2241 + $0x20] sm:$0xff]
      %v2247 = vld [vmem:[%s2241 + $0x28] sm:$0xff]
      %v2248 = vld [vmem:[%s2241 + $0x30] sm:$0xff]
      %v2249 = vld [vmem:[%s2241 + $0x38] sm:$0xff]
      %v2250 = vld [vmem:[%s2241 + $0x40] sm:$0xff]
      %v2251 = vld [vmem:[%s2241 + $0x48] sm:$0xff]
      %v2252 = vld [vmem:[%s2241 + $0x50] sm:$0xff]
      %v2253 = vld [vmem:[%s2241 + $0x58] sm:$0xff]
      %v2254 = vld [vmem:[%s2241 + $0x60] sm:$0xff]
      %v2255 = vld [vmem:[%s2241 + $0x68] sm:$0xff]
      %v2256 = vld [vmem:[%s2241 + $0x70] sm:$0xff]
      %v2257 = vld [vmem:[%s2241 + $0x78] sm:$0xff]
      %v2258 = vld [vmem:[%s2241 + $0x80] sm:$0xff]
      %v2259 = vld [vmem:[%s2241 + $0x88] sm:$0xff]
      %v2260 = vld [vmem:[%s2241 + $0x90] sm:$0xff]
      %v2261 = vld [vmem:[%s2241 + $0x98] sm:$0xff]
      %v2262 = vld [vmem:[%s2241 + $0xa0] sm:$0xff]
      %v2263 = vld [vmem:[%s2241 + $0xa8] sm:$0xff]
      %v2264 = vld [vmem:[%s2241 + $0xb0] sm:$0xff]
      %v2265 = vld [vmem:[%s2241 + $0xb8] sm:$0xff]
      %v2266 = vld [vmem:[%s2241 + $0xc0] sm:$0xff]
      %v2267 = vld [vmem:[%s2241 + $0xc8] sm:$0xff]
      %v2268 = vld [vmem:[%s2241 + $0xd0] sm:$0xff]
      %v2269 = vld [vmem:[%s2241 + $0xd8] sm:$0xff]
      %v2270 = vld [vmem:[%s2241 + $0xe0] sm:$0xff]
      %v2271 = vld [vmem:[%s2241 + $0xe8] sm:$0xff]
      %v2272 = vld [vmem:[%s2241 + $0xf0] sm:$0xff]
      %v2273 = vld [vmem:[%s2241 + $0xf8] sm:$0xff]
      %2278 = vrot.lane.b32.xlu0 %v2205, 96
      %v2279 = vpop.permute.xlu0 %2278
      %2280 = vrot.lane.b32.xlu0 %v2239, 96
      %v2281 = vpop.permute.xlu0 %2280
      %2282 = vrot.lane.b32.xlu0 %v2206, 96
      %v2283 = vpop.permute.xlu0 %2282
      %2284 = vrot.lane.b32.xlu0 %v2240, 96
      %v2285 = vpop.permute.xlu0 %2284
      %v2286 = vsel %vm1842, %v2279, %v2281
      %v2287 = vsel %vm1842, %v2283, %v2285
      %2290 = vmatprep.subr.mxu0 %v2273
      %2291 = vmatpush1.msra.mxu0 %v2272
      %2292 = vmatprep.subr.mxu0 %v2271
      %2293 = vmatpush1.msra.mxu0 %v2270
      %2294 = vmatprep.subr.mxu0 %v2269
      %2295 = vmatpush1.msra.mxu0 %v2268
      %2296 = vmatprep.subr.mxu0 %v2267
      %2297 = vmatpush1.msra.mxu0 %v2266
      %2298 = vmatprep.subr.mxu0 %v2265
      %2299 = vmatpush1.msra.mxu0 %v2264
      %2300 = vmatprep.subr.mxu0 %v2263
      %2301 = vmatpush1.msra.mxu0 %v2262
      %2302 = vmatprep.subr.mxu0 %v2261
      %2303 = vmatpush1.msra.mxu0 %v2260
      %2304 = vmatprep.subr.mxu0 %v2259
      %2305 = vmatpush1.msra.mxu0 %v2258
      %2306 = vmatprep.subr.mxu0 %v2257
      %2307 = vmatpush1.msra.mxu0 %v2256
      %2308 = vmatprep.subr.mxu0 %v2255
      %2309 = vmatpush1.msra.mxu0 %v2254
      %2310 = vmatprep.subr.mxu0 %v2253
      %2311 = vmatpush1.msra.mxu0 %v2252
      %2312 = vmatprep.subr.mxu0 %v2251
      %2313 = vmatpush1.msra.mxu0 %v2250
      %2314 = vmatprep.subr.mxu0 %v2249
      %2315 = vmatpush1.msra.mxu0 %v2248
      %2316 = vmatprep.subr.mxu0 %v2247
      %2317 = vmatpush1.msra.mxu0 %v2246
      %2318 = vmatprep.subr.mxu0 %v2245
      %2319 = vmatpush1.msra.mxu0 %v2244
      %2320 = vmatprep.subr.mxu0 %v2243
      %2321 = vmatpush1.msra.mxu0 %v2242
      %2322 = vmatprep.subr.mxu0 0.0
      %2323 = vmatpush2.msra.mxu0 0.0
      %2324 = vmatprep.subr.mxu0 0.0
      %2325 = vmatpush2.msra.mxu0 0.0
      %2326 = vmatprep.subr.mxu0 0.0
      %2327 = vmatpush2.msra.mxu0 0.0
      %2328 = vmatprep.subr.mxu0 0.0
      %2329 = vmatpush2.msra.mxu0 0.0
      %2330 = vmatprep.subr.mxu0 0.0
      %2331 = vmatpush2.msra.mxu0 0.0
      %2332 = vmatprep.subr.mxu0 0.0
      %2333 = vmatpush2.msra.mxu0 0.0
      %2334 = vmatprep.subr.mxu0 0.0
      %2335 = vmatpush2.msra.mxu0 0.0
      %2336 = vmatprep.subr.mxu0 0.0
      %2337 = vmatpush2.msra.mxu0 0.0
      %2338 = vmatprep.subr.mxu0 0.0
      %2339 = vmatpush2.msra.mxu0 0.0
      %2340 = vmatprep.subr.mxu0 0.0
      %2341 = vmatpush2.msra.mxu0 0.0
      %2342 = vmatprep.subr.mxu0 0.0
      %2343 = vmatpush2.msra.mxu0 0.0
      %2344 = vmatprep.subr.mxu0 0.0
      %2345 = vmatpush2.msra.mxu0 0.0
      %2346 = vmatprep.subr.mxu0 0.0
      %2347 = vmatpush2.msra.mxu0 0.0
      %2348 = vmatprep.subr.mxu0 0.0
      %2349 = vmatpush2.msra.mxu0 0.0
      %2350 = vmatprep.subr.mxu0 0.0
      %2351 = vmatpush2.msra.mxu0 0.0
      %2352 = vmatprep.subr.mxu0 0.0
      %2353 = vmatpush2.msra.mxu0 0.0
      %2354 = vmatprep.mubr.f32.mxu0 0.0
      %2355 = vmatmul.mubr.f32.gmra.mxu0 %v2286
      %v2356 = vpop.f32.mrf.mxu0
      %v2357 = vadd.f32 0.0, %v2356
      %v2358 = vpop.f32.mrf.mxu0
      %v2359 = vadd.f32 0.0, %v2358
      %2360 = vmatprep.mubr.f32.mxu0 0.0
      %2361 = vmatmul.mubr.f32.gmra.mxu0 %v2287
      %v2362 = vpop.f32.mrf.mxu0
      %v2363 = vadd.f32 0.0, %v2362
      %v2364 = vpop.f32.mrf.mxu0
      %v2365 = vadd.f32 0.0, %v2364
      %2366 = vdwg.mxu0
      %2367 = vmatprep.subr.mxu0 %v2238
      %2368 = vmatpush1.msra.mxu0 %v2237
      %2369 = vmatprep.subr.mxu0 %v2236
      %2370 = vmatpush1.msra.mxu0 %v2235
      %2371 = vmatprep.subr.mxu0 %v2234
      %2372 = vmatpush1.msra.mxu0 %v2233
      %2373 = vmatprep.subr.mxu0 %v2232
      %2374 = vmatpush1.msra.mxu0 %v2231
      %2375 = vmatprep.subr.mxu0 %v2230
      %2376 = vmatpush1.msra.mxu0 %v2229
      %2377 = vmatprep.subr.mxu0 %v2228
      %2378 = vmatpush1.msra.mxu0 %v2227
      %2379 = vmatprep.subr.mxu0 %v2226
      %2380 = vmatpush1.msra.mxu0 %v2225
      %2381 = vmatprep.subr.mxu0 %v2224
      %2382 = vmatpush1.msra.mxu0 %v2223
      %2383 = vmatprep.subr.mxu0 %v2222
      %2384 = vmatpush1.msra.mxu0 %v2221
      %2385 = vmatprep.subr.mxu0 %v2220
      %2386 = vmatpush1.msra.mxu0 %v2219
      %2387 = vmatprep.subr.mxu0 %v2218
      %2388 = vmatpush1.msra.mxu0 %v2217
      %2389 = vmatprep.subr.mxu0 %v2216
      %2390 = vmatpush1.msra.mxu0 %v2215
      %2391 = vmatprep.subr.mxu0 %v2214
      %2392 = vmatpush1.msra.mxu0 %v2213
      %2393 = vmatprep.subr.mxu0 %v2212
      %2394 = vmatpush1.msra.mxu0 %v2211
      %2395 = vmatprep.subr.mxu0 %v2210
      %2396 = vmatpush1.msra.mxu0 %v2209
      %2397 = vmatprep.subr.mxu0 %v2208
      %2398 = vmatpush1.msra.mxu0 %v2207
      %2399 = vmatprep.subr.mxu0 0.0
      %2400 = vmatpush2.msra.mxu0 0.0
      %2401 = vmatprep.subr.mxu0 0.0
      %2402 = vmatpush2.msra.mxu0 0.0
      %2403 = vmatprep.subr.mxu0 0.0
      %2404 = vmatpush2.msra.mxu0 0.0
      %2405 = vmatprep.subr.mxu0 0.0
      %2406 = vmatpush2.msra.mxu0 0.0
      %2407 = vmatprep.subr.mxu0 0.0
      %2408 = vmatpush2.msra.mxu0 0.0
      %2409 = vmatprep.subr.mxu0 0.0
      %2410 = vmatpush2.msra.mxu0 0.0
      %2411 = vmatprep.subr.mxu0 0.0
      %2412 = vmatpush2.msra.mxu0 0.0
      %2413 = vmatprep.subr.mxu0 0.0
      %2414 = vmatpush2.msra.mxu0 0.0
      %2415 = vmatprep.subr.mxu0 0.0
      %2416 = vmatpush2.msra.mxu0 0.0
      %2417 = vmatprep.subr.mxu0 0.0
      %2418 = vmatpush2.msra.mxu0 0.0
      %2419 = vmatprep.subr.mxu0 0.0
      %2420 = vmatpush2.msra.mxu0 0.0
      %2421 = vmatprep.subr.mxu0 0.0
      %2422 = vmatpush2.msra.mxu0 0.0
      %2423 = vmatprep.subr.mxu0 0.0
      %2424 = vmatpush2.msra.mxu0 0.0
      %2425 = vmatprep.subr.mxu0 0.0
      %2426 = vmatpush2.msra.mxu0 0.0
      %2427 = vmatprep.subr.mxu0 0.0
      %2428 = vmatpush2.msra.mxu0 0.0
      %2429 = vmatprep.subr.mxu0 0.0
      %2430 = vmatpush2.msra.mxu0 0.0
      %2431 = vmatprep.mubr.f32.mxu0 0.0
      %2432 = vmatmul.mubr.f32.gmra.mxu0 %v2205
      %v2433 = vpop.f32.mrf.mxu0
      %v2434 = vadd.f32 %v2357, %v2433
      %v2435 = vpop.f32.mrf.mxu0
      %v2436 = vadd.f32 %v2359, %v2435
      %2437 = vmatprep.mubr.f32.mxu0 0.0
      %2438 = vmatmul.mubr.f32.gmra.mxu0 %v2206
      %v2439 = vpop.f32.mrf.mxu0
      %v2440 = vadd.f32 %v2363, %v2439
      %v2441 = vpop.f32.mrf.mxu0
      %v2442 = vadd.f32 %v2365, %v2441
      %2443 = vdwg.mxu0
      %s2444 = scalar_lea.vmem %s10, 512
      %v2445 = vld [vmem:[%s2444] sm:$0xff]
      %v2446 = vld [vmem:[%s2444 + $0x8] sm:$0xff]
      %v2447 = vld [vmem:[%s2444 + $0x10] sm:$0xff]
      %v2448 = vld [vmem:[%s2444 + $0x18] sm:$0xff]
      %v2449 = vld [vmem:[%s2444 + $0x20] sm:$0xff]
      %v2450 = vld [vmem:[%s2444 + $0x28] sm:$0xff]
      %v2451 = vld [vmem:[%s2444 + $0x30] sm:$0xff]
      %v2452 = vld [vmem:[%s2444 + $0x38] sm:$0xff]
      %v2453 = vld [vmem:[%s2444 + $0x40] sm:$0xff]
      %v2454 = vld [vmem:[%s2444 + $0x48] sm:$0xff]
      %v2455 = vld [vmem:[%s2444 + $0x50] sm:$0xff]
      %v2456 = vld [vmem:[%s2444 + $0x58] sm:$0xff]
      %v2457 = vld [vmem:[%s2444 + $0x60] sm:$0xff]
      %v2458 = vld [vmem:[%s2444 + $0x68] sm:$0xff]
      %v2459 = vld [vmem:[%s2444 + $0x70] sm:$0xff]
      %v2460 = vld [vmem:[%s2444 + $0x78] sm:$0xff]
      %v2461 = vld [vmem:[%s2444 + $0x80] sm:$0xff]
      %v2462 = vld [vmem:[%s2444 + $0x88] sm:$0xff]
      %v2463 = vld [vmem:[%s2444 + $0x90] sm:$0xff]
      %v2464 = vld [vmem:[%s2444 + $0x98] sm:$0xff]
      %v2465 = vld [vmem:[%s2444 + $0xa0] sm:$0xff]
      %v2466 = vld [vmem:[%s2444 + $0xa8] sm:$0xff]
      %v2467 = vld [vmem:[%s2444 + $0xb0] sm:$0xff]
      %v2468 = vld [vmem:[%s2444 + $0xb8] sm:$0xff]
      %v2469 = vld [vmem:[%s2444 + $0xc0] sm:$0xff]
      %v2470 = vld [vmem:[%s2444 + $0xc8] sm:$0xff]
      %v2471 = vld [vmem:[%s2444 + $0xd0] sm:$0xff]
      %v2472 = vld [vmem:[%s2444 + $0xd8] sm:$0xff]
      %v2473 = vld [vmem:[%s2444 + $0xe0] sm:$0xff]
      %v2474 = vld [vmem:[%s2444 + $0xe8] sm:$0xff]
      %v2475 = vld [vmem:[%s2444 + $0xf0] sm:$0xff]
      %v2476 = vld [vmem:[%s2444 + $0xf8] sm:$0xff]
      %2477 = vrot.lane.b32.xlu0 %v2205, 64
      %v2478 = vpop.permute.xlu0 %2477
      %2479 = vrot.lane.b32.xlu0 %v2239, 64
      %v2480 = vpop.permute.xlu0 %2479
      %2481 = vrot.lane.b32.xlu0 %v2206, 64
      %v2482 = vpop.permute.xlu0 %2481
      %2483 = vrot.lane.b32.xlu0 %v2240, 64
      %v2484 = vpop.permute.xlu0 %2483
      %vm2485 = vcmask 523264
      %v2486 = vsel %vm2485, %v2478, %v2480
      %v2487 = vsel %vm2485, %v2482, %v2484
      %2490 = vmatprep.subr.mxu0 %v2476
      %2491 = vmatpush1.msra.mxu0 %v2475
      %2492 = vmatprep.subr.mxu0 %v2474
      %2493 = vmatpush1.msra.mxu0 %v2473
      %2494 = vmatprep.subr.mxu0 %v2472
      %2495 = vmatpush1.msra.mxu0 %v2471
      %2496 = vmatprep.subr.mxu0 %v2470
      %2497 = vmatpush1.msra.mxu0 %v2469
      %2498 = vmatprep.subr.mxu0 %v2468
      %2499 = vmatpush1.msra.mxu0 %v2467
      %2500 = vmatprep.subr.mxu0 %v2466
      %2501 = vmatpush1.msra.mxu0 %v2465
      %2502 = vmatprep.subr.mxu0 %v2464
      %2503 = vmatpush1.msra.mxu0 %v2463
      %2504 = vmatprep.subr.mxu0 %v2462
      %2505 = vmatpush1.msra.mxu0 %v2461
      %2506 = vmatprep.subr.mxu0 %v2460
      %2507 = vmatpush1.msra.mxu0 %v2459
      %2508 = vmatprep.subr.mxu0 %v2458
      %2509 = vmatpush1.msra.mxu0 %v2457
      %2510 = vmatprep.subr.mxu0 %v2456
      %2511 = vmatpush1.msra.mxu0 %v2455
      %2512 = vmatprep.subr.mxu0 %v2454
      %2513 = vmatpush1.msra.mxu0 %v2453
      %2514 = vmatprep.subr.mxu0 %v2452
      %2515 = vmatpush1.msra.mxu0 %v2451
      %2516 = vmatprep.subr.mxu0 %v2450
      %2517 = vmatpush1.msra.mxu0 %v2449
      %2518 = vmatprep.subr.mxu0 %v2448
      %2519 = vmatpush1.msra.mxu0 %v2447
      %2520 = vmatprep.subr.mxu0 %v2446
      %2521 = vmatpush1.msra.mxu0 %v2445
      %2522 = vmatprep.subr.mxu0 0.0
      %2523 = vmatpush2.msra.mxu0 0.0
      %2524 = vmatprep.subr.mxu0 0.0
      %2525 = vmatpush2.msra.mxu0 0.0
      %2526 = vmatprep.subr.mxu0 0.0
      %2527 = vmatpush2.msra.mxu0 0.0
      %2528 = vmatprep.subr.mxu0 0.0
      %2529 = vmatpush2.msra.mxu0 0.0
      %2530 = vmatprep.subr.mxu0 0.0
      %2531 = vmatpush2.msra.mxu0 0.0
      %2532 = vmatprep.subr.mxu0 0.0
      %2533 = vmatpush2.msra.mxu0 0.0
      %2534 = vmatprep.subr.mxu0 0.0
      %2535 = vmatpush2.msra.mxu0 0.0
      %2536 = vmatprep.subr.mxu0 0.0
      %2537 = vmatpush2.msra.mxu0 0.0
      %2538 = vmatprep.subr.mxu0 0.0
      %2539 = vmatpush2.msra.mxu0 0.0
      %2540 = vmatprep.subr.mxu0 0.0
      %2541 = vmatpush2.msra.mxu0 0.0
      %2542 = vmatprep.subr.mxu0 0.0
      %2543 = vmatpush2.msra.mxu0 0.0
      %2544 = vmatprep.subr.mxu0 0.0
      %2545 = vmatpush2.msra.mxu0 0.0
      %2546 = vmatprep.subr.mxu0 0.0
      %2547 = vmatpush2.msra.mxu0 0.0
      %2548 = vmatprep.subr.mxu0 0.0
      %2549 = vmatpush2.msra.mxu0 0.0
      %2550 = vmatprep.subr.mxu0 0.0
      %2551 = vmatpush2.msra.mxu0 0.0
      %2552 = vmatprep.subr.mxu0 0.0
      %2553 = vmatpush2.msra.mxu0 0.0
      %2554 = vmatprep.mubr.f32.mxu0 0.0
      %2555 = vmatmul.mubr.f32.gmra.mxu0 %v2486
      %v2556 = vpop.f32.mrf.mxu0
      %v2557 = vadd.f32 0.0, %v2556
      %v2558 = vpop.f32.mrf.mxu0
      %v2559 = vadd.f32 0.0, %v2558
      %2560 = vmatprep.mubr.f32.mxu0 0.0
      %2561 = vmatmul.mubr.f32.gmra.mxu0 %v2487
      %v2562 = vpop.f32.mrf.mxu0
      %v2563 = vadd.f32 0.0, %v2562
      %v2564 = vpop.f32.mrf.mxu0
      %v2565 = vadd.f32 0.0, %v2564
      %2566 = vdwg.mxu0
      %v2567 = vadd.f32 %v2434, %v2557
      %v2568 = vadd.f32 %v2436, %v2559
      %v2569 = vadd.f32 %v2440, %v2563
      %v2570 = vadd.f32 %v2442, %v2565
      %v2571 = vld [vmem:[%s11] sm:$0x3]
      %v2573 = vlaneseq
      %v2574 = vshrl.u32 %v2573, 7
      %v2575 = vsub.s32 0, %v2574
      %v2576 = vrot.slane %v2571, %v2575
      %v2577 = vlaneseq
      %v2578 = vshrl.u32 %v2577, 7
      %v2579 = vsub.s32 1, %v2578
      %v2580 = vrot.slane %v2571, %v2579
      %v2583 = vadd.f32 %v2567, %v2576
      %v2584 = vadd.f32 %v2568, %v2580
      %v2585 = vadd.f32 %v2569, %v2576
      %v2586 = vadd.f32 %v2570, %v2580
      %v2587 = vtanh.pop %v2583
      %v2588 = vtanh.pop %v2585
      %v2589 = vxor.u32 %v2584, 2147483648
      %v2590 = vxor.u32 %v2586, 2147483648
      %v2591 = vmul.f32 %v2589, 1.442695
      %v2592 = vpow.pop %v2591
      %v2593 = vmul.f32 %v2590, 1.442695
      %v2594 = vpow.pop %v2593
      %v2595 = vadd.f32 %v2592, 1.0
      %v2596 = vadd.f32 %v2594, 1.0
      %v2597 = vrcp.pop %v2595
      %v2598 = vmul.f32 1.0, %v2597
      %v2599 = vrcp.pop %v2596
      %v2600 = vmul.f32 1.0, %v2599
      %v2601 = vmul.f32 %v2587, %v2598
      %v2602 = vmul.f32 %v2588, %v2600
      %v2603 = vld [vmem:[%s12] sm:$0xff]
      %v2604 = vld [vmem:[%s12 + $0x8] sm:$0xff]
      %v2605 = vld [vmem:[%s12 + $0x10] sm:$0xff]
      %v2606 = vld [vmem:[%s12 + $0x18] sm:$0xff]
      %v2607 = vld [vmem:[%s13] sm:$0x1]
      %v2609 = vlaneseq
      %v2610 = vshrl.u32 %v2609, 7
      %v2611 = vsub.s32 0, %v2610
      %v2612 = vrot.slane %v2607, %v2611
      %v2615 = vsel %vm1335, %v585, 0
      %v2618 = vsel %vm1335, %v586, 0
      %2620 = vmatprep.subr.mxu0 0.0
      %2621 = vmatpush1.msra.mxu0 0.0
      %2622 = vmatprep.subr.mxu0 0.0
      %2623 = vmatpush1.msra.mxu0 0.0
      %2624 = vmatprep.subr.mxu0 0.0
      %2625 = vmatpush1.msra.mxu0 0.0
      %2626 = vmatprep.subr.mxu0 0.0
      %2627 = vmatpush1.msra.mxu0 0.0
      %2628 = vmatprep.subr.mxu0 0.0
      %2629 = vmatpush1.msra.mxu0 0.0
      %2630 = vmatprep.subr.mxu0 0.0
      %2631 = vmatpush1.msra.mxu0 0.0
      %2632 = vmatprep.subr.mxu0 0.0
      %2633 = vmatpush1.msra.mxu0 0.0
      %2634 = vmatprep.subr.mxu0 0.0
      %2635 = vmatpush1.msra.mxu0 0.0
      %2636 = vmatprep.subr.mxu0 0.0
      %2637 = vmatpush1.msra.mxu0 0.0
      %2638 = vmatprep.subr.mxu0 0.0
      %2639 = vmatpush1.msra.mxu0 0.0
      %2640 = vmatprep.subr.mxu0 0.0
      %2641 = vmatpush1.msra.mxu0 0.0
      %2642 = vmatprep.subr.mxu0 0.0
      %2643 = vmatpush1.msra.mxu0 0.0
      %2644 = vmatprep.subr.mxu0 0.0
      %2645 = vmatpush1.msra.mxu0 %v2606
      %2646 = vmatprep.subr.mxu0 0.0
      %2647 = vmatpush1.msra.mxu0 %v2605
      %2648 = vmatprep.subr.mxu0 0.0
      %2649 = vmatpush1.msra.mxu0 %v2604
      %2650 = vmatprep.subr.mxu0 0.0
      %2651 = vmatpush1.msra.mxu0 %v2603
      %2652 = vmatprep.subr.mxu0 0.0
      %2653 = vmatpush2.msra.mxu0 0.0
      %2654 = vmatprep.subr.mxu0 0.0
      %2655 = vmatpush2.msra.mxu0 0.0
      %2656 = vmatprep.subr.mxu0 0.0
      %2657 = vmatpush2.msra.mxu0 0.0
      %2658 = vmatprep.subr.mxu0 0.0
      %2659 = vmatpush2.msra.mxu0 0.0
      %2660 = vmatprep.subr.mxu0 0.0
      %2661 = vmatpush2.msra.mxu0 0.0
      %2662 = vmatprep.subr.mxu0 0.0
      %2663 = vmatpush2.msra.mxu0 0.0
      %2664 = vmatprep.subr.mxu0 0.0
      %2665 = vmatpush2.msra.mxu0 0.0
      %2666 = vmatprep.subr.mxu0 0.0
      %2667 = vmatpush2.msra.mxu0 0.0
      %2668 = vmatprep.subr.mxu0 0.0
      %2669 = vmatpush2.msra.mxu0 0.0
      %2670 = vmatprep.subr.mxu0 0.0
      %2671 = vmatpush2.msra.mxu0 0.0
      %2672 = vmatprep.subr.mxu0 0.0
      %2673 = vmatpush2.msra.mxu0 0.0
      %2674 = vmatprep.subr.mxu0 0.0
      %2675 = vmatpush2.msra.mxu0 0.0
      %2676 = vmatprep.subr.mxu0 0.0
      %2677 = vmatpush2.msra.mxu0 0.0
      %2678 = vmatprep.subr.mxu0 0.0
      %2679 = vmatpush2.msra.mxu0 0.0
      %2680 = vmatprep.subr.mxu0 0.0
      %2681 = vmatpush2.msra.mxu0 0.0
      %2682 = vmatprep.subr.mxu0 0.0
      %2683 = vmatpush2.msra.mxu0 0.0
      %2684 = vmatprep.mubr.f32.mxu0 0.0
      %2685 = vmatmul.mubr.f32.gmra.mxu0 %v2615
      %v2686 = vpop.f32.mrf.mxu0
      %v2687 = vadd.f32 %v2612, %v2686
      %v2688 = vpop.f32.mrf.mxu0
      %2689 = vmatprep.mubr.f32.mxu0 0.0
      %2690 = vmatmul.mubr.f32.gmra.mxu0 %v2618
      %v2691 = vpop.f32.mrf.mxu0
      %v2692 = vadd.f32 %v2612, %v2691
      %v2693 = vpop.f32.mrf.mxu0
      %2694 = vdwg.mxu0
      %v2695 = vadd.f32 %v2687, %v2601
      %v2696 = vadd.f32 %v2692, %v2602
      %v2697 = vmax.f32 %v2695, 0.0
      %v2698 = vmax.f32 %v2696, 0.0
      %v2699 = vld [vmem:[%s14] sm:$0xff]
      %v2700 = vld [vmem:[%s14 + $0x8] sm:$0xff]
      %v2701 = vld [vmem:[%s14 + $0x10] sm:$0xff]
      %v2702 = vld [vmem:[%s14 + $0x18] sm:$0xff]
      %v2703 = vld [vmem:[%s14 + $0x20] sm:$0xff]
      %v2704 = vld [vmem:[%s14 + $0x28] sm:$0xff]
      %v2705 = vld [vmem:[%s14 + $0x30] sm:$0xff]
      %v2706 = vld [vmem:[%s14 + $0x38] sm:$0xff]
      %v2707 = vld [vmem:[%s14 + $0x40] sm:$0xff]
      %v2708 = vld [vmem:[%s14 + $0x48] sm:$0xff]
      %v2709 = vld [vmem:[%s14 + $0x50] sm:$0xff]
      %v2710 = vld [vmem:[%s14 + $0x58] sm:$0xff]
      %v2711 = vld [vmem:[%s14 + $0x60] sm:$0xff]
      %v2712 = vld [vmem:[%s14 + $0x68] sm:$0xff]
      %v2713 = vld [vmem:[%s14 + $0x70] sm:$0xff]
      %v2714 = vld [vmem:[%s14 + $0x78] sm:$0xff]
      %2715 = vmatprep.subr.mxu0 0.0
      %2716 = vmatpush1.msra.mxu0 %v2714
      %2717 = vmatprep.subr.mxu0 0.0
      %2718 = vmatpush1.msra.mxu0 %v2713
      %2719 = vmatprep.subr.mxu0 0.0
      %2720 = vmatpush1.msra.mxu0 %v2712
      %2721 = vmatprep.subr.mxu0 0.0
      %2722 = vmatpush1.msra.mxu0 %v2711
      %2723 = vmatprep.subr.mxu0 0.0
      %2724 = vmatpush1.msra.mxu0 %v2710
      %2725 = vmatprep.subr.mxu0 0.0
      %2726 = vmatpush1.msra.mxu0 %v2709
      %2727 = vmatprep.subr.mxu0 0.0
      %2728 = vmatpush1.msra.mxu0 %v2708
      %2729 = vmatprep.subr.mxu0 0.0
      %2730 = vmatpush1.msra.mxu0 %v2707
      %2731 = vmatprep.subr.mxu0 0.0
      %2732 = vmatpush1.msra.mxu0 %v2706
      %2733 = vmatprep.subr.mxu0 0.0
      %2734 = vmatpush1.msra.mxu0 %v2705
      %2735 = vmatprep.subr.mxu0 0.0
      %2736 = vmatpush1.msra.mxu0 %v2704
      %2737 = vmatprep.subr.mxu0 0.0
      %2738 = vmatpush1.msra.mxu0 %v2703
      %2739 = vmatprep.subr.mxu0 0.0
      %2740 = vmatpush1.msra.mxu0 %v2702
      %2741 = vmatprep.subr.mxu0 0.0
      %2742 = vmatpush1.msra.mxu0 %v2701
      %2743 = vmatprep.subr.mxu0 0.0
      %2744 = vmatpush1.msra.mxu0 %v2700
      %2745 = vmatprep.subr.mxu0 0.0
      %2746 = vmatpush1.msra.mxu0 %v2699
      %2747 = vmatprep.subr.mxu0 0.0
      %2748 = vmatpush2.msra.mxu0 0.0
      %2749 = vmatprep.subr.mxu0 0.0
      %2750 = vmatpush2.msra.mxu0 0.0
      %2751 = vmatprep.subr.mxu0 0.0
      %2752 = vmatpush2.msra.mxu0 0.0
      %2753 = vmatprep.subr.mxu0 0.0
      %2754 = vmatpush2.msra.mxu0 0.0
      %2755 = vmatprep.subr.mxu0 0.0
      %2756 = vmatpush2.msra.mxu0 0.0
      %2757 = vmatprep.subr.mxu0 0.0
      %2758 = vmatpush2.msra.mxu0 0.0
      %2759 = vmatprep.subr.mxu0 0.0
      %2760 = vmatpush2.msra.mxu0 0.0
      %2761 = vmatprep.subr.mxu0 0.0
      %2762 = vmatpush2.msra.mxu0 0.0
      %2763 = vmatprep.subr.mxu0 0.0
      %2764 = vmatpush2.msra.mxu0 0.0
      %2765 = vmatprep.subr.mxu0 0.0
      %2766 = vmatpush2.msra.mxu0 0.0
      %2767 = vmatprep.subr.mxu0 0.0
      %2768 = vmatpush2.msra.mxu0 0.0
      %2769 = vmatprep.subr.mxu0 0.0
      %2770 = vmatpush2.msra.mxu0 0.0
      %2771 = vmatprep.subr.mxu0 0.0
      %2772 = vmatpush2.msra.mxu0 0.0
      %2773 = vmatprep.subr.mxu0 0.0
      %2774 = vmatpush2.msra.mxu0 0.0
      %2775 = vmatprep.subr.mxu0 0.0
      %2776 = vmatpush2.msra.mxu0 0.0
      %2777 = vmatprep.subr.mxu0 0.0
      %2778 = vmatpush2.msra.mxu0 0.0
      %2779 = vmatprep.mubr.f32.mxu0 0.0
      %2780 = vmatmul.mubr.f32.gmra.mxu0 %v2697
      %v2781 = vpop.f32.mrf.mxu0
      %v2782 = vadd.f32 0.0, %v2781
      %v2783 = vpop.f32.mrf.mxu0
      %2784 = vmatprep.mubr.f32.mxu0 0.0
      %2785 = vmatmul.mubr.f32.gmra.mxu0 %v2698
      %v2786 = vpop.f32.mrf.mxu0
      %v2787 = vadd.f32 0.0, %v2786
      %v2788 = vpop.f32.mrf.mxu0
      %2789 = vdwg.mxu0
      %v2790 = vsub.f32 %v2697, %v2782
      %v2791 = vsub.f32 %v2698, %v2787
      %v2792 = vmul.f32 %v2790, %v2790
      %v2793 = vmul.f32 %v2791, %v2791
      %2794 = vmatprep.subr.mxu0 0.0
      %2795 = vmatpush1.msra.mxu0 %v2714
      %2796 = vmatprep.subr.mxu0 0.0
      %2797 = vmatpush1.msra.mxu0 %v2713
      %2798 = vmatprep.subr.mxu0 0.0
      %2799 = vmatpush1.msra.mxu0 %v2712
      %2800 = vmatprep.subr.mxu0 0.0
      %2801 = vmatpush1.msra.mxu0 %v2711
      %2802 = vmatprep.subr.mxu0 0.0
      %2803 = vmatpush1.msra.mxu0 %v2710
      %2804 = vmatprep.subr.mxu0 0.0
      %2805 = vmatpush1.msra.mxu0 %v2709
      %2806 = vmatprep.subr.mxu0 0.0
      %2807 = vmatpush1.msra.mxu0 %v2708
      %2808 = vmatprep.subr.mxu0 0.0
      %2809 = vmatpush1.msra.mxu0 %v2707
      %2810 = vmatprep.subr.mxu0 0.0
      %2811 = vmatpush1.msra.mxu0 %v2706
      %2812 = vmatprep.subr.mxu0 0.0
      %2813 = vmatpush1.msra.mxu0 %v2705
      %2814 = vmatprep.subr.mxu0 0.0
      %2815 = vmatpush1.msra.mxu0 %v2704
      %2816 = vmatprep.subr.mxu0 0.0
      %2817 = vmatpush1.msra.mxu0 %v2703
      %2818 = vmatprep.subr.mxu0 0.0
      %2819 = vmatpush1.msra.mxu0 %v2702
      %2820 = vmatprep.subr.mxu0 0.0
      %2821 = vmatpush1.msra.mxu0 %v2701
      %2822 = vmatprep.subr.mxu0 0.0
      %2823 = vmatpush1.msra.mxu0 %v2700
      %2824 = vmatprep.subr.mxu0 0.0
      %2825 = vmatpush1.msra.mxu0 %v2699
      %2826 = vmatprep.subr.mxu0 0.0
      %2827 = vmatpush2.msra.mxu0 0.0
      %2828 = vmatprep.subr.mxu0 0.0
      %2829 = vmatpush2.msra.mxu0 0.0
      %2830 = vmatprep.subr.mxu0 0.0
      %2831 = vmatpush2.msra.mxu0 0.0
      %2832 = vmatprep.subr.mxu0 0.0
      %2833 = vmatpush2.msra.mxu0 0.0
      %2834 = vmatprep.subr.mxu0 0.0
      %2835 = vmatpush2.msra.mxu0 0.0
      %2836 = vmatprep.subr.mxu0 0.0
      %2837 = vmatpush2.msra.mxu0 0.0
      %2838 = vmatprep.subr.mxu0 0.0
      %2839 = vmatpush2.msra.mxu0 0.0
      %2840 = vmatprep.subr.mxu0 0.0
      %2841 = vmatpush2.msra.mxu0 0.0
      %2842 = vmatprep.subr.mxu0 0.0
      %2843 = vmatpush2.msra.mxu0 0.0
      %2844 = vmatprep.subr.mxu0 0.0
      %2845 = vmatpush2.msra.mxu0 0.0
      %2846 = vmatprep.subr.mxu0 0.0
      %2847 = vmatpush2.msra.mxu0 0.0
      %2848 = vmatprep.subr.mxu0 0.0
      %2849 = vmatpush2.msra.mxu0 0.0
      %2850 = vmatprep.subr.mxu0 0.0
      %2851 = vmatpush2.msra.mxu0 0.0
      %2852 = vmatprep.subr.mxu0 0.0
      %2853 = vmatpush2.msra.mxu0 0.0
      %2854 = vmatprep.subr.mxu0 0.0
      %2855 = vmatpush2.msra.mxu0 0.0
      %2856 = vmatprep.subr.mxu0 0.0
      %2857 = vmatpush2.msra.mxu0 0.0
      %2858 = vmatprep.mubr.f32.mxu0 0.0
      %2859 = vmatmul.mubr.f32.gmra.mxu0 %v2792
      %v2860 = vpop.f32.mrf.mxu0
      %v2861 = vadd.f32 1e-05, %v2860
      %v2862 = vpop.f32.mrf.mxu0
      %2863 = vmatprep.mubr.f32.mxu0 0.0
      %2864 = vmatmul.mubr.f32.gmra.mxu0 %v2793
      %v2865 = vpop.f32.mrf.mxu0
      %v2866 = vadd.f32 1e-05, %v2865
      %v2867 = vpop.f32.mrf.mxu0
      %2868 = vdwg.mxu0
      %v2869 = vrsqrt.pop %v2861
      %v2870 = vrsqrt.pop %v2866
      %v2871 = vmul.f32 %v2790, %v2869
      %v2872 = vmul.f32 %v2791, %v2870
      %v2873 = vld [vmem:[%s15] sm:$0x1]
      %v2875 = vlaneseq
      %v2876 = vshrl.u32 %v2875, 7
      %v2877 = vsub.s32 0, %v2876
      %v2878 = vrot.slane %v2873, %v2877
      %v2880 = vmul.f32 %v2871, %v2878
      %v2881 = vmul.f32 %v2872, %v2878
      %v2882 = vld [vmem:[%s16] sm:$0x1]
      %v2884 = vlaneseq
      %v2885 = vshrl.u32 %v2884, 7
      %v2886 = vsub.s32 0, %v2885
      %v2887 = vrot.slane %v2882, %v2886
      %v2889 = vadd.f32 %v2880, %v2887
      %v2890 = vadd.f32 %v2881, %v2887
      %2891 = vst [vmem:[%s568] sm:$0xff] %v2889
      %2892 = vst [vmem:[%s568 + $0x8] sm:$0xff] %v2890
      %p2893 = scmp.lt.s32.totalorder %s28, 1
      %s2894 = scalar_select %p2893, %s28, 1
      %s2895 = smul.addr %s2894, 2
      %s2896 = smul.addr %s2895, 8
      %s2897 = scalar_lea.vmem %s17, %s2896
      // Predicated region
      $region89: #{sta_mgcn_block_pallas.1} parent=87 // pred_check
        %p2898 = pneg %p413
      $region90: #{sta_mgcn_block_pallas.1} parent=87 // pred_check_branch
        %2900 = sbr.rel (%p2898) target = $region92
      $region91: #{sta_mgcn_block_pallas.1} parent=87 // pred_region
        _
      $region92: #{sta_mgcn_block_pallas.1} parent=87 // pred_fallthru
        _
    $region88: #{sta_mgcn_block_pallas.1} parent=5 // pred_fallthru
      _
    %p2901 = scmp.le.s32.totalorder 2, %s23
    // Predicated region
    $region93: #{sta_mgcn_block_pallas.1} parent=5 // pred_check
      %p2902 = pneg %p2901
    $region94: #{sta_mgcn_block_pallas.1} parent=5 // pred_check_branch
      %2904 = sbr.rel (%p2902) target = $region96
    $region95: #{sta_mgcn_block_pallas.1} parent=5 // pred_region
      %s2905 = ssub.s32 %s23, 2
      // Predicated region
      $region97: #{sta_mgcn_block_pallas.1} parent=95 // pred_check
        %p2906 = pneg %p419
      $region98: #{sta_mgcn_block_pallas.1} parent=95 // pred_check_branch
        %2908 = sbr.rel (%p2906) target = $region100
      $region99: #{sta_mgcn_block_pallas.1} parent=95 // pred_region
        %p2909 = scmp.lt.s32.totalorder %s29, 1
        %s2910 = scalar_select %p2909, %s29, 1
        %s2911 = smul.addr %s2910, 2
        %s2912 = smul.addr %s2911, 8
        %s2913 = scalar_lea.vmem %s17, %s2912
      $region100: #{sta_mgcn_block_pallas.1} parent=95 // pred_fallthru
        _
    $region96: #{sta_mgcn_block_pallas.1} parent=5 // pred_fallthru
      _
  $region6: #{sta_mgcn_block_pallas.1} parent=0 // loop_footer
    %s27 = sadd.s32 1, %s23
  $region7: #{sta_mgcn_block_pallas.1} parent=0 // loop_footer_branch
    %22 = sbr.rel target = $region3
  $region8: #{sta_mgcn_block_pallas.1} parent=0 // loop_exit
    _

</llo_original>
